<compile_context>
chip_gen: v6e
topology: v6e:2x2x1
jax: 0.10.0
libtpu: 0.0.40
codegen_flags: <defaults>
</compile_context>

<pallas_src>
import functools

import jax
import jax.numpy as jnp
from jax import lax
from jax.experimental import pallas as pl
from jax.experimental.pallas import tpu as pltpu


def _round_up(x, m):
    return ((x + m - 1) // m) * m


# ---------------------------------------------------------------------------
# Fused multi-layer LSTM kernel (no grid; everything resident in VMEM).
# ---------------------------------------------------------------------------
def _encoder_lstm_kernel(num_layers, unroll, x_ref, *refs):
    """Fused LSTM forward.

    x_ref : (T*Np, Ep) f32  padded, time-major, batch-flattened embedded input.
    refs  : per layer (wih (in,4Hp), whh (Hp,4Hp), bias (1,4Hp)),
            then outputs h_out (L,Np,Hp), c_out (L,Np,Hp),
            then scratch gx (T*Np,4Hp), seq (T*Np,Hp).
    """
    w_refs = refs[: 3 * num_layers]
    h_out_ref = refs[3 * num_layers]
    c_out_ref = refs[3 * num_layers + 1]
    gx_sc = refs[3 * num_layers + 2]
    seq_sc = refs[3 * num_layers + 3]

    _, Np, Hp = h_out_ref.shape
    T = x_ref.shape[0] // Np

    def cell(gates, c_prev):
        # PyTorch gate order: i, f, g, o. Hp is a multiple of 128 so every slice is
        # lane-aligned (no cross-lane relayout).
        i_g = jax.nn.sigmoid(gates[:, 0 * Hp:1 * Hp])
        f_g = jax.nn.sigmoid(gates[:, 1 * Hp:2 * Hp])
        g_g = jnp.tanh(gates[:, 2 * Hp:3 * Hp])
        o_g = jax.nn.sigmoid(gates[:, 3 * Hp:4 * Hp])
        c_new = f_g * c_prev + i_g * g_g
        h_new = o_g * jnp.tanh(c_new)
        return h_new, c_new

    for l in range(num_layers):
        wih_ref, whh_ref, b_ref = w_refs[3 * l: 3 * l + 3]
        layer_in = x_ref if l == 0 else seq_sc
        write_seq = (l + 1 < num_layers)   # last layer's per-step output is dead

        # Bulk (non-recurrent) input projection for the whole sequence: one MXU matmul.
        gx_sc[...] = (
            jnp.dot(layer_in[...], wih_ref[...], preferred_element_type=jnp.float32)
            + b_ref[...]
        )

        def body(t, carry, whh_ref=whh_ref, write_seq=write_seq):
            h_prev, c_prev = carry
            row = pl.multiple_of(t * Np, Np)
            gates = gx_sc[pl.ds(row, Np), :] + jnp.dot(
                h_prev, whh_ref[...], preferred_element_type=jnp.float32)
            h_new, c_new = cell(gates, c_prev)
            if write_seq:
                seq_sc[pl.ds(row, Np), :] = h_new
            return (h_new, c_new)

        zeros = jnp.zeros((Np, Hp), jnp.float32)
        h_f, c_f = lax.fori_loop(0, T, body, (zeros, zeros), unroll=unroll)

        h_out_ref[l, :, :] = h_f
        c_out_ref[l, :, :] = c_f


def _fused_lstm(x_pad, layer_params, T, Np, Hp, num_layers):
    """x_pad: (T*Np, Ep). layer_params: list of (wih (in,4Hp), whh (Hp,4Hp), bias (1,4Hp))."""
    unroll = True if T <= 16 else 8
    kernel = functools.partial(_encoder_lstm_kernel, num_layers, unroll)
    vmem = pl.BlockSpec(memory_space=pltpu.MemorySpace.VMEM)

    flat_w = []
    for wih, whh, b in layer_params:
        flat_w += [wih, whh, b]

    out_shape = (
        jax.ShapeDtypeStruct((num_layers, Np, Hp), jnp.float32),
        jax.ShapeDtypeStruct((num_layers, Np, Hp), jnp.float32),
    )
    return pl.pallas_call(
        kernel,
        out_shape=out_shape,
        in_specs=[vmem] * (1 + 3 * num_layers),
        out_specs=(vmem, vmem),
        scratch_shapes=[
            pltpu.VMEM((T * Np, 4 * Hp), jnp.float32),   # precomputed x-projections
            pltpu.VMEM((T * Np, Hp), jnp.float32),       # inter-layer sequence (VMEM only)
        ],
    )(x_pad, *flat_w)


# ---------------------------------------------------------------------------
# Padding helpers (per-gate padding so gate order i|f|g|o is preserved).
# ---------------------------------------------------------------------------
def _pad_gate_matrix(w, in_pad, H, Hp):
    """(in_dim, 4H) -> (in_pad, 4*Hp); each gate block padded independently with zeros."""
    in_dim = w.shape[0]
    w4 = w.reshape(in_dim, 4, H)
    w4p = jnp.zeros((in_pad, 4, Hp), w.dtype).at[:in_dim, :, :H].set(w4)
    return w4p.reshape(in_pad, 4 * Hp)


def _pad_gate_bias(b, H, Hp):
    """(1, 4H) -> (1, 4*Hp), per-gate zero padding."""
    b4 = b.reshape(4, H)
    b4p = jnp.zeros((4, Hp), b.dtype).at[:, :H].set(b4)
    return b4p.reshape(1, 4 * Hp)


# ---------------------------------------------------------------------------
# Parameters & forward pass.
# ---------------------------------------------------------------------------
def init_encoder_params(key, input_size, embedding_size, hidden_size, num_layers):
    """PyTorch-like init: N(0,1) embedding, uniform(-1/sqrt(H), 1/sqrt(H)) LSTM params."""
    keys = jax.random.split(key, 1 + 4 * num_layers)
    emb = jax.random.normal(keys[0], (input_size, embedding_size), jnp.float32)
    bound = 1.0 / jnp.sqrt(hidden_size)
    layers = []
    for l in range(num_layers):
        in_dim = embedding_size if l == 0 else hidden_size
        k_ih, k_hh, k_bih, k_bhh = keys[1 + 4 * l: 5 + 4 * l]
        w_ih = jax.random.uniform(k_ih, (4 * hidden_size, in_dim), jnp.float32, -bound, bound)
        w_hh = jax.random.uniform(k_hh, (4 * hidden_size, hidden_size), jnp.float32, -bound, bound)
        b_ih = jax.random.uniform(k_bih, (4 * hidden_size,), jnp.float32, -bound, bound)
        b_hh = jax.random.uniform(k_bhh, (4 * hidden_size,), jnp.float32, -bound, bound)
        layers.append({
            "wih_t": w_ih.T,                                    # (in_dim, 4H)
            "whh_t": w_hh.T,                                    # (H, 4H)
            "bias": (b_ih + b_hh).reshape(1, 4 * hidden_size),  # combined bias
        })
    return {"embedding": emb, "layers": layers}


@jax.jit
def encoder_forward(params, x_tokens):
    """x_tokens: (T, N) int32. Returns (hidden, cell), each (num_layers, N, H)."""
    # Embedding lookup (gather) — glue, plain JAX.
    emb = jnp.take(params["embedding"], x_tokens, axis=0)        # (T, N, E)
    # TODO(synk): nn.Dropout is identity in eval mode; training-mode dropout mask not implemented.

    T, N, E = emb.shape
    layers = params["layers"]
    L = len(layers)
    H = layers[0]["whh_t"].shape[0]
    Np, Ep, Hp = _round_up(N, 8), _round_up(E, 128), _round_up(H, 128)

    # Pad & flatten input to (T*Np, Ep); zero padding is exactly correctness-preserving.
    x_pad = jnp.zeros((T, Np, Ep), jnp.float32).at[:, :N, :E].set(emb)
    x_pad = x_pad.reshape(T * Np, Ep)

    padded = []
    for l, lp in enumerate(layers):
        in_pad = Ep if l == 0 else Hp
        padded.append((
            _pad_gate_matrix(lp["wih_t"], in_pad, H, Hp),
            _pad_gate_matrix(lp["whh_t"], Hp, H, Hp),
            _pad_gate_bias(lp["bias"], H, Hp),
        ))

    h_pad, c_pad = _fused_lstm(x_pad, padded, T, Np, Hp, L)
    return h_pad[:, :N, :H], c_pad[:, :N, :H]


# ---------------------------------------------------------------------------
# Pure-JAX reference (lax.scan) for correctness check.
# ---------------------------------------------------------------------------
def _reference_forward(params, x_tokens):
    emb = jnp.take(params["embedding"], x_tokens, axis=0)
    layer_in = emb
    h_list, c_list = [], []
    for lp in params["layers"]:
        H = lp["whh_t"].shape[0]
        N = layer_in.shape[1]

        def step(carry, x_t, lp=lp, H=H):
            h, c = carry
            gates = x_t @ lp["wih_t"] + h @ lp["whh_t"] + lp["bias"]
            i = jax.nn.sigmoid(gates[:, 0 * H:1 * H])
            f = jax.nn.sigmoid(gates[:, 1 * H:2 * H])
            g = jnp.tanh(gates[:, 2 * H:3 * H])
            o = jax.nn.sigmoid(gates[:, 3 * H:4 * H])
            c_new = f * c + i * g
            h_new = o * jnp.tanh(c_new)
            return (h_new, c_new), h_new

        init = (jnp.zeros((N, H), jnp.float32), jnp.zeros((N, H), jnp.float32))
        (h_f, c_f), out_seq = jax.lax.scan(step, init, layer_in)
        h_list.append(h_f)
        c_list.append(c_f)
        layer_in = out_seq
    return jnp.stack(h_list, 0), jnp.stack(c_list, 0)


if __name__ == "__main__":
    # Small, module-consistent shapes.
    input_size = 64        # vocab size
    embedding_size = 32
    hidden_size = 32
    num_layers = 2
    T, N = 8, 4            # (seq_length, batch) — PyTorch forward takes (seq_length, N)

    key = jax.random.PRNGKey(0)
    kp, kx = jax.random.split(key)
    params = init_encoder_params(kp, input_size, embedding_size, hidden_size, num_layers)
    x_tokens = jax.random.randint(kx, (T, N), 0, input_size, dtype=jnp.int32)

    hidden, cell = encoder_forward(params, x_tokens)
    jax.block_until_ready((hidden, cell))

    # Sanity check against pure-JAX reference.
    h_ref, c_ref = _reference_forward(params, x_tokens)
    assert hidden.shape == (num_layers, N, hidden_size)
    assert cell.shape == (num_layers, N, hidden_size)
    assert jnp.allclose(hidden, h_ref, atol=1e-4, rtol=1e-4)
    assert jnp.allclose(cell, c_ref, atol=1e-4, rtol=1e-4)

    print("KERNEL_OK")
</pallas_src>

<mosaic_0001>
module attributes {stable_mosaic.version = 11 : i64} {
  func.func @_encoder_lstm_kernel(%arg0: memref<64x128xf32, #tpu.memory_space<vmem>>, %arg1: memref<128x512xf32, #tpu.memory_space<vmem>>, %arg2: memref<128x512xf32, #tpu.memory_space<vmem>>, %arg3: memref<1x512xf32, #tpu.memory_space<vmem>>, %arg4: memref<128x512xf32, #tpu.memory_space<vmem>>, %arg5: memref<128x512xf32, #tpu.memory_space<vmem>>, %arg6: memref<1x512xf32, #tpu.memory_space<vmem>>, %arg7: memref<2x8x128xf32, #tpu.memory_space<vmem>>, %arg8: memref<2x8x128xf32, #tpu.memory_space<vmem>>, %arg9: memref<64x512xf32, #tpu.memory_space<vmem>>, %arg10: memref<64x128xf32, #tpu.memory_space<vmem>>) attributes {dimension_semantics = [], scalar_prefetch = 0 : i64, scratch_operands = 2 : i64, tpu.core_type = #tpu.core_type<tc>} {
    %c0 = arith.constant 0 : index
    %c0_0 = arith.constant 0 : index
    %0 = vector.load %arg0[%c0, %c0_0] : memref<64x128xf32, #tpu.memory_space<vmem>>, vector<64x128xf32>
    %c0_1 = arith.constant 0 : index
    %c0_2 = arith.constant 0 : index
    %1 = vector.load %arg1[%c0_1, %c0_2] : memref<128x512xf32, #tpu.memory_space<vmem>>, vector<128x512xf32>
    %cst = arith.constant dense<0.000000e+00> : vector<64x512xf32>
    %2 = tpu.matmul %0, %1, %cst {dimension_numbers = #tpu.dot_dimension_numbers<[1], [0], [0], [1], [0, 0, 1, 1], [], []>} : vector<64x128xf32>, vector<128x512xf32>, vector<64x512xf32> -> vector<64x512xf32>
    %c0_3 = arith.constant 0 : index
    %c0_4 = arith.constant 0 : index
    %3 = vector.load %arg3[%c0_3, %c0_4] : memref<1x512xf32, #tpu.memory_space<vmem>>, vector<1x512xf32>
    %4 = vector.broadcast %3 : vector<1x512xf32> to vector<64x512xf32>
    %5 = arith.addf %2, %4 : vector<64x512xf32>
    %c0_5 = arith.constant 0 : index
    %c0_6 = arith.constant 0 : index
    %6 = vector.load %arg9[%c0_5, %c0_6] : memref<64x512xf32, #tpu.memory_space<vmem>>, vector<64x512xf32>
    tpu.vector_store %arg9[%c0_5, %c0_6], %5 {strides = array<i32>} : memref<64x512xf32, #tpu.memory_space<vmem>>, vector<64x512xf32>,
    %cst_7 = arith.constant 0.000000e+00 : f32
    %7 = vector.broadcast %cst_7 : f32 to vector<8x128xf32>
    %c0_i32 = arith.constant 0 : i32
    %c8_i32 = arith.constant 8 : i32
    %8 = arith.muli %c0_i32, %c8_i32 : i32
    %9 = tpu.assume_multiple %8, 8 : i32
    %10 = arith.index_cast %9 : i32 to index
    %c0_8 = arith.constant 0 : index
    %11 = vector.load %arg9[%10, %c0_8] : memref<64x512xf32, #tpu.memory_space<vmem>>, vector<8x512xf32>
    %c0_9 = arith.constant 0 : index
    %c0_10 = arith.constant 0 : index
    %12 = vector.load %arg2[%c0_9, %c0_10] : memref<128x512xf32, #tpu.memory_space<vmem>>, vector<128x512xf32>
    %cst_11 = arith.constant dense<0.000000e+00> : vector<8x512xf32>
    %13 = tpu.matmul %7, %12, %cst_11 {dimension_numbers = #tpu.dot_dimension_numbers<[1], [0], [0], [1], [0, 0, 1, 1], [], []>} : vector<8x128xf32>, vector<128x512xf32>, vector<8x512xf32> -> vector<8x512xf32>
    %14 = arith.addf %11, %13 : vector<8x512xf32>
    %15 = vector.extract_strided_slice %14 {offsets = [0, 0], sizes = [8, 128], strides = [1, 1]} : vector<8x512xf32> to vector<8x128xf32>
    %16 = arith.negf %15 : vector<8x128xf32>
    %17 = math.exp %16 : vector<8x128xf32>
    %cst_12 = arith.constant 1.000000e+00 : f32
    %18 = vector.broadcast %cst_12 : f32 to vector<8x128xf32>
    %19 = arith.addf %18, %17 : vector<8x128xf32>
    %20 = arith.divf %18, %19 : vector<8x128xf32>
    %21 = vector.extract_strided_slice %14 {offsets = [0, 128], sizes = [8, 128], strides = [1, 1]} : vector<8x512xf32> to vector<8x128xf32>
    %22 = arith.negf %21 : vector<8x128xf32>
    %23 = math.exp %22 : vector<8x128xf32>
    %cst_13 = arith.constant 1.000000e+00 : f32
    %24 = vector.broadcast %cst_13 : f32 to vector<8x128xf32>
    %25 = arith.addf %24, %23 : vector<8x128xf32>
    %26 = arith.divf %24, %25 : vector<8x128xf32>
    %27 = vector.extract_strided_slice %14 {offsets = [0, 256], sizes = [8, 128], strides = [1, 1]} : vector<8x512xf32> to vector<8x128xf32>
    %28 = math.tanh %27 : vector<8x128xf32>
    %29 = vector.extract_strided_slice %14 {offsets = [0, 384], sizes = [8, 128], strides = [1, 1]} : vector<8x512xf32> to vector<8x128xf32>
    %30 = arith.negf %29 : vector<8x128xf32>
    %31 = math.exp %30 : vector<8x128xf32>
    %cst_14 = arith.constant 1.000000e+00 : f32
    %32 = vector.broadcast %cst_14 : f32 to vector<8x128xf32>
    %33 = arith.addf %32, %31 : vector<8x128xf32>
    %34 = arith.divf %32, %33 : vector<8x128xf32>
    %35 = arith.mulf %26, %7 : vector<8x128xf32>
    %36 = arith.mulf %20, %28 : vector<8x128xf32>
    %37 = arith.addf %35, %36 : vector<8x128xf32>
    %38 = math.tanh %37 : vector<8x128xf32>
    %39 = arith.mulf %34, %38 : vector<8x128xf32>
    %40 = arith.index_cast %9 : i32 to index
    %c0_15 = arith.constant 0 : index
    %41 = vector.load %arg10[%40, %c0_15] : memref<64x128xf32, #tpu.memory_space<vmem>>, vector<8x128xf32>
    tpu.vector_store %arg10[%40, %c0_15], %39 {strides = array<i32>} : memref<64x128xf32, #tpu.memory_space<vmem>>, vector<8x128xf32>,
    %c1_i32 = arith.constant 1 : i32
    %c8_i32_16 = arith.constant 8 : i32
    %42 = arith.muli %c1_i32, %c8_i32_16 : i32
    %43 = tpu.assume_multiple %42, 8 : i32
    %44 = arith.index_cast %43 : i32 to index
    %c0_17 = arith.constant 0 : index
    %45 = vector.load %arg9[%44, %c0_17] : memref<64x512xf32, #tpu.memory_space<vmem>>, vector<8x512xf32>
    %c0_18 = arith.constant 0 : index
    %c0_19 = arith.constant 0 : index
    %46 = vector.load %arg2[%c0_18, %c0_19] : memref<128x512xf32, #tpu.memory_space<vmem>>, vector<128x512xf32>
    %cst_20 = arith.constant dense<0.000000e+00> : vector<8x512xf32>
    %47 = tpu.matmul %39, %46, %cst_20 {dimension_numbers = #tpu.dot_dimension_numbers<[1], [0], [0], [1], [0, 0, 1, 1], [], []>} : vector<8x128xf32>, vector<128x512xf32>, vector<8x512xf32> -> vector<8x512xf32>
    %48 = arith.addf %45, %47 : vector<8x512xf32>
    %49 = vector.extract_strided_slice %48 {offsets = [0, 0], sizes = [8, 128], strides = [1, 1]} : vector<8x512xf32> to vector<8x128xf32>
    %50 = arith.negf %49 : vector<8x128xf32>
    %51 = math.exp %50 : vector<8x128xf32>
    %cst_21 = arith.constant 1.000000e+00 : f32
    %52 = vector.broadcast %cst_21 : f32 to vector<8x128xf32>
    %53 = arith.addf %52, %51 : vector<8x128xf32>
    %54 = arith.divf %52, %53 : vector<8x128xf32>
    %55 = vector.extract_strided_slice %48 {offsets = [0, 128], sizes = [8, 128], strides = [1, 1]} : vector<8x512xf32> to vector<8x128xf32>
    %56 = arith.negf %55 : vector<8x128xf32>
    %57 = math.exp %56 : vector<8x128xf32>
    %cst_22 = arith.constant 1.000000e+00 : f32
    %58 = vector.broadcast %cst_22 : f32 to vector<8x128xf32>
    %59 = arith.addf %58, %57 : vector<8x128xf32>
    %60 = arith.divf %58, %59 : vector<8x128xf32>
    %61 = vector.extract_strided_slice %48 {offsets = [0, 256], sizes = [8, 128], strides = [1, 1]} : vector<8x512xf32> to vector<8x128xf32>
    %62 = math.tanh %61 : vector<8x128xf32>
    %63 = vector.extract_strided_slice %48 {offsets = [0, 384], sizes = [8, 128], strides = [1, 1]} : vector<8x512xf32> to vector<8x128xf32>
    %64 = arith.negf %63 : vector<8x128xf32>
    %65 = math.exp %64 : vector<8x128xf32>
    %cst_23 = arith.constant 1.000000e+00 : f32
    %66 = vector.broadcast %cst_23 : f32 to vector<8x128xf32>
    %67 = arith.addf %66, %65 : vector<8x128xf32>
    %68 = arith.divf %66, %67 : vector<8x128xf32>
    %69 = arith.mulf %60, %37 : vector<8x128xf32>
    %70 = arith.mulf %54, %62 : vector<8x128xf32>
    %71 = arith.addf %69, %70 : vector<8x128xf32>
    %72 = math.tanh %71 : vector<8x128xf32>
    %73 = arith.mulf %68, %72 : vector<8x128xf32>
    %74 = arith.index_cast %43 : i32 to index
    %c0_24 = arith.constant 0 : index
    %75 = vector.load %arg10[%74, %c0_24] : memref<64x128xf32, #tpu.memory_space<vmem>>, vector<8x128xf32>
    tpu.vector_store %arg10[%74, %c0_24], %73 {strides = array<i32>} : memref<64x128xf32, #tpu.memory_space<vmem>>, vector<8x128xf32>,
    %c2_i32 = arith.constant 2 : i32
    %c8_i32_25 = arith.constant 8 : i32
    %76 = arith.muli %c2_i32, %c8_i32_25 : i32
    %77 = tpu.assume_multiple %76, 8 : i32
    %78 = arith.index_cast %77 : i32 to index
    %c0_26 = arith.constant 0 : index
    %79 = vector.load %arg9[%78, %c0_26] : memref<64x512xf32, #tpu.memory_space<vmem>>, vector<8x512xf32>
    %c0_27 = arith.constant 0 : index
    %c0_28 = arith.constant 0 : index
    %80 = vector.load %arg2[%c0_27, %c0_28] : memref<128x512xf32, #tpu.memory_space<vmem>>, vector<128x512xf32>
    %cst_29 = arith.constant dense<0.000000e+00> : vector<8x512xf32>
    %81 = tpu.matmul %73, %80, %cst_29 {dimension_numbers = #tpu.dot_dimension_numbers<[1], [0], [0], [1], [0, 0, 1, 1], [], []>} : vector<8x128xf32>, vector<128x512xf32>, vector<8x512xf32> -> vector<8x512xf32>
    %82 = arith.addf %79, %81 : vector<8x512xf32>
    %83 = vector.extract_strided_slice %82 {offsets = [0, 0], sizes = [8, 128], strides = [1, 1]} : vector<8x512xf32> to vector<8x128xf32>
    %84 = arith.negf %83 : vector<8x128xf32>
    %85 = math.exp %84 : vector<8x128xf32>
    %cst_30 = arith.constant 1.000000e+00 : f32
    %86 = vector.broadcast %cst_30 : f32 to vector<8x128xf32>
    %87 = arith.addf %86, %85 : vector<8x128xf32>
    %88 = arith.divf %86, %87 : vector<8x128xf32>
    %89 = vector.extract_strided_slice %82 {offsets = [0, 128], sizes = [8, 128], strides = [1, 1]} : vector<8x512xf32> to vector<8x128xf32>
    %90 = arith.negf %89 : vector<8x128xf32>
    %91 = math.exp %90 : vector<8x128xf32>
    %cst_31 = arith.constant 1.000000e+00 : f32
    %92 = vector.broadcast %cst_31 : f32 to vector<8x128xf32>
    %93 = arith.addf %92, %91 : vector<8x128xf32>
    %94 = arith.divf %92, %93 : vector<8x128xf32>
    %95 = vector.extract_strided_slice %82 {offsets = [0, 256], sizes = [8, 128], strides = [1, 1]} : vector<8x512xf32> to vector<8x128xf32>
    %96 = math.tanh %95 : vector<8x128xf32>
    %97 = vector.extract_strided_slice %82 {offsets = [0, 384], sizes = [8, 128], strides = [1, 1]} : vector<8x512xf32> to vector<8x128xf32>
    %98 = arith.negf %97 : vector<8x128xf32>
    %99 = math.exp %98 : vector<8x128xf32>
    %cst_32 = arith.constant 1.000000e+00 : f32
    %100 = vector.broadcast %cst_32 : f32 to vector<8x128xf32>
    %101 = arith.addf %100, %99 : vector<8x128xf32>
    %102 = arith.divf %100, %101 : vector<8x128xf32>
    %103 = arith.mulf %94, %71 : vector<8x128xf32>
    %104 = arith.mulf %88, %96 : vector<8x128xf32>
    %105 = arith.addf %103, %104 : vector<8x128xf32>
    %106 = math.tanh %105 : vector<8x128xf32>
    %107 = arith.mulf %102, %106 : vector<8x128xf32>
    %108 = arith.index_cast %77 : i32 to index
    %c0_33 = arith.constant 0 : index
    %109 = vector.load %arg10[%108, %c0_33] : memref<64x128xf32, #tpu.memory_space<vmem>>, vector<8x128xf32>
    tpu.vector_store %arg10[%108, %c0_33], %107 {strides = array<i32>} : memref<64x128xf32, #tpu.memory_space<vmem>>, vector<8x128xf32>,
    %c3_i32 = arith.constant 3 : i32
    %c8_i32_34 = arith.constant 8 : i32
    %110 = arith.muli %c3_i32, %c8_i32_34 : i32
    %111 = tpu.assume_multiple %110, 8 : i32
    %112 = arith.index_cast %111 : i32 to index
    %c0_35 = arith.constant 0 : index
    %113 = vector.load %arg9[%112, %c0_35] : memref<64x512xf32, #tpu.memory_space<vmem>>, vector<8x512xf32>
    %c0_36 = arith.constant 0 : index
    %c0_37 = arith.constant 0 : index
    %114 = vector.load %arg2[%c0_36, %c0_37] : memref<128x512xf32, #tpu.memory_space<vmem>>, vector<128x512xf32>
    %cst_38 = arith.constant dense<0.000000e+00> : vector<8x512xf32>
    %115 = tpu.matmul %107, %114, %cst_38 {dimension_numbers = #tpu.dot_dimension_numbers<[1], [0], [0], [1], [0, 0, 1, 1], [], []>} : vector<8x128xf32>, vector<128x512xf32>, vector<8x512xf32> -> vector<8x512xf32>
    %116 = arith.addf %113, %115 : vector<8x512xf32>
    %117 = vector.extract_strided_slice %116 {offsets = [0, 0], sizes = [8, 128], strides = [1, 1]} : vector<8x512xf32> to vector<8x128xf32>
    %118 = arith.negf %117 : vector<8x128xf32>
    %119 = math.exp %118 : vector<8x128xf32>
    %cst_39 = arith.constant 1.000000e+00 : f32
    %120 = vector.broadcast %cst_39 : f32 to vector<8x128xf32>
    %121 = arith.addf %120, %119 : vector<8x128xf32>
    %122 = arith.divf %120, %121 : vector<8x128xf32>
    %123 = vector.extract_strided_slice %116 {offsets = [0, 128], sizes = [8, 128], strides = [1, 1]} : vector<8x512xf32> to vector<8x128xf32>
    %124 = arith.negf %123 : vector<8x128xf32>
    %125 = math.exp %124 : vector<8x128xf32>
    %cst_40 = arith.constant 1.000000e+00 : f32
    %126 = vector.broadcast %cst_40 : f32 to vector<8x128xf32>
    %127 = arith.addf %126, %125 : vector<8x128xf32>
    %128 = arith.divf %126, %127 : vector<8x128xf32>
    %129 = vector.extract_strided_slice %116 {offsets = [0, 256], sizes = [8, 128], strides = [1, 1]} : vector<8x512xf32> to vector<8x128xf32>
    %130 = math.tanh %129 : vector<8x128xf32>
    %131 = vector.extract_strided_slice %116 {offsets = [0, 384], sizes = [8, 128], strides = [1, 1]} : vector<8x512xf32> to vector<8x128xf32>
    %132 = arith.negf %131 : vector<8x128xf32>
    %133 = math.exp %132 : vector<8x128xf32>
    %cst_41 = arith.constant 1.000000e+00 : f32
    %134 = vector.broadcast %cst_41 : f32 to vector<8x128xf32>
    %135 = arith.addf %134, %133 : vector<8x128xf32>
    %136 = arith.divf %134, %135 : vector<8x128xf32>
    %137 = arith.mulf %128, %105 : vector<8x128xf32>
    %138 = arith.mulf %122, %130 : vector<8x128xf32>
    %139 = arith.addf %137, %138 : vector<8x128xf32>
    %140 = math.tanh %139 : vector<8x128xf32>
    %141 = arith.mulf %136, %140 : vector<8x128xf32>
    %142 = arith.index_cast %111 : i32 to index
    %c0_42 = arith.constant 0 : index
    %143 = vector.load %arg10[%142, %c0_42] : memref<64x128xf32, #tpu.memory_space<vmem>>, vector<8x128xf32>
    tpu.vector_store %arg10[%142, %c0_42], %141 {strides = array<i32>} : memref<64x128xf32, #tpu.memory_space<vmem>>, vector<8x128xf32>,
    %c4_i32 = arith.constant 4 : i32
    %c8_i32_43 = arith.constant 8 : i32
    %144 = arith.muli %c4_i32, %c8_i32_43 : i32
    %145 = tpu.assume_multiple %144, 8 : i32
    %146 = arith.index_cast %145 : i32 to index
    %c0_44 = arith.constant 0 : index
    %147 = vector.load %arg9[%146, %c0_44] : memref<64x512xf32, #tpu.memory_space<vmem>>, vector<8x512xf32>
    %c0_45 = arith.constant 0 : index
    %c0_46 = arith.constant 0 : index
    %148 = vector.load %arg2[%c0_45, %c0_46] : memref<128x512xf32, #tpu.memory_space<vmem>>, vector<128x512xf32>
    %cst_47 = arith.constant dense<0.000000e+00> : vector<8x512xf32>
    %149 = tpu.matmul %141, %148, %cst_47 {dimension_numbers = #tpu.dot_dimension_numbers<[1], [0], [0], [1], [0, 0, 1, 1], [], []>} : vector<8x128xf32>, vector<128x512xf32>, vector<8x512xf32> -> vector<8x512xf32>
    %150 = arith.addf %147, %149 : vector<8x512xf32>
    %151 = vector.extract_strided_slice %150 {offsets = [0, 0], sizes = [8, 128], strides = [1, 1]} : vector<8x512xf32> to vector<8x128xf32>
    %152 = arith.negf %151 : vector<8x128xf32>
    %153 = math.exp %152 : vector<8x128xf32>
    %cst_48 = arith.constant 1.000000e+00 : f32
    %154 = vector.broadcast %cst_48 : f32 to vector<8x128xf32>
    %155 = arith.addf %154, %153 : vector<8x128xf32>
    %156 = arith.divf %154, %155 : vector<8x128xf32>
    %157 = vector.extract_strided_slice %150 {offsets = [0, 128], sizes = [8, 128], strides = [1, 1]} : vector<8x512xf32> to vector<8x128xf32>
    %158 = arith.negf %157 : vector<8x128xf32>
    %159 = math.exp %158 : vector<8x128xf32>
    %cst_49 = arith.constant 1.000000e+00 : f32
    %160 = vector.broadcast %cst_49 : f32 to vector<8x128xf32>
    %161 = arith.addf %160, %159 : vector<8x128xf32>
    %162 = arith.divf %160, %161 : vector<8x128xf32>
    %163 = vector.extract_strided_slice %150 {offsets = [0, 256], sizes = [8, 128], strides = [1, 1]} : vector<8x512xf32> to vector<8x128xf32>
    %164 = math.tanh %163 : vector<8x128xf32>
    %165 = vector.extract_strided_slice %150 {offsets = [0, 384], sizes = [8, 128], strides = [1, 1]} : vector<8x512xf32> to vector<8x128xf32>
    %166 = arith.negf %165 : vector<8x128xf32>
    %167 = math.exp %166 : vector<8x128xf32>
    %cst_50 = arith.constant 1.000000e+00 : f32
    %168 = vector.broadcast %cst_50 : f32 to vector<8x128xf32>
    %169 = arith.addf %168, %167 : vector<8x128xf32>
    %170 = arith.divf %168, %169 : vector<8x128xf32>
    %171 = arith.mulf %162, %139 : vector<8x128xf32>
    %172 = arith.mulf %156, %164 : vector<8x128xf32>
    %173 = arith.addf %171, %172 : vector<8x128xf32>
    %174 = math.tanh %173 : vector<8x128xf32>
    %175 = arith.mulf %170, %174 : vector<8x128xf32>
    %176 = arith.index_cast %145 : i32 to index
    %c0_51 = arith.constant 0 : index
    %177 = vector.load %arg10[%176, %c0_51] : memref<64x128xf32, #tpu.memory_space<vmem>>, vector<8x128xf32>
    tpu.vector_store %arg10[%176, %c0_51], %175 {strides = array<i32>} : memref<64x128xf32, #tpu.memory_space<vmem>>, vector<8x128xf32>,
    %c5_i32 = arith.constant 5 : i32
    %c8_i32_52 = arith.constant 8 : i32
    %178 = arith.muli %c5_i32, %c8_i32_52 : i32
    %179 = tpu.assume_multiple %178, 8 : i32
    %180 = arith.index_cast %179 : i32 to index
    %c0_53 = arith.constant 0 : index
    %181 = vector.load %arg9[%180, %c0_53] : memref<64x512xf32, #tpu.memory_space<vmem>>, vector<8x512xf32>
    %c0_54 = arith.constant 0 : index
    %c0_55 = arith.constant 0 : index
    %182 = vector.load %arg2[%c0_54, %c0_55] : memref<128x512xf32, #tpu.memory_space<vmem>>, vector<128x512xf32>
    %cst_56 = arith.constant dense<0.000000e+00> : vector<8x512xf32>
    %183 = tpu.matmul %175, %182, %cst_56 {dimension_numbers = #tpu.dot_dimension_numbers<[1], [0], [0], [1], [0, 0, 1, 1], [], []>} : vector<8x128xf32>, vector<128x512xf32>, vector<8x512xf32> -> vector<8x512xf32>
    %184 = arith.addf %181, %183 : vector<8x512xf32>
    %185 = vector.extract_strided_slice %184 {offsets = [0, 0], sizes = [8, 128], strides = [1, 1]} : vector<8x512xf32> to vector<8x128xf32>
    %186 = arith.negf %185 : vector<8x128xf32>
    %187 = math.exp %186 : vector<8x128xf32>
    %cst_57 = arith.constant 1.000000e+00 : f32
    %188 = vector.broadcast %cst_57 : f32 to vector<8x128xf32>
    %189 = arith.addf %188, %187 : vector<8x128xf32>
    %190 = arith.divf %188, %189 : vector<8x128xf32>
    %191 = vector.extract_strided_slice %184 {offsets = [0, 128], sizes = [8, 128], strides = [1, 1]} : vector<8x512xf32> to vector<8x128xf32>
    %192 = arith.negf %191 : vector<8x128xf32>
    %193 = math.exp %192 : vector<8x128xf32>
    %cst_58 = arith.constant 1.000000e+00 : f32
    %194 = vector.broadcast %cst_58 : f32 to vector<8x128xf32>
    %195 = arith.addf %194, %193 : vector<8x128xf32>
    %196 = arith.divf %194, %195 : vector<8x128xf32>
    %197 = vector.extract_strided_slice %184 {offsets = [0, 256], sizes = [8, 128], strides = [1, 1]} : vector<8x512xf32> to vector<8x128xf32>
    %198 = math.tanh %197 : vector<8x128xf32>
    %199 = vector.extract_strided_slice %184 {offsets = [0, 384], sizes = [8, 128], strides = [1, 1]} : vector<8x512xf32> to vector<8x128xf32>
    %200 = arith.negf %199 : vector<8x128xf32>
    %201 = math.exp %200 : vector<8x128xf32>
    %cst_59 = arith.constant 1.000000e+00 : f32
    %202 = vector.broadcast %cst_59 : f32 to vector<8x128xf32>
    %203 = arith.addf %202, %201 : vector<8x128xf32>
    %204 = arith.divf %202, %203 : vector<8x128xf32>
    %205 = arith.mulf %196, %173 : vector<8x128xf32>
    %206 = arith.mulf %190, %198 : vector<8x128xf32>
    %207 = arith.addf %205, %206 : vector<8x128xf32>
    %208 = math.tanh %207 : vector<8x128xf32>
    %209 = arith.mulf %204, %208 : vector<8x128xf32>
    %210 = arith.index_cast %179 : i32 to index
    %c0_60 = arith.constant 0 : index
    %211 = vector.load %arg10[%210, %c0_60] : memref<64x128xf32, #tpu.memory_space<vmem>>, vector<8x128xf32>
    tpu.vector_store %arg10[%210, %c0_60], %209 {strides = array<i32>} : memref<64x128xf32, #tpu.memory_space<vmem>>, vector<8x128xf32>,
    %c6_i32 = arith.constant 6 : i32
    %c8_i32_61 = arith.constant 8 : i32
    %212 = arith.muli %c6_i32, %c8_i32_61 : i32
    %213 = tpu.assume_multiple %212, 8 : i32
    %214 = arith.index_cast %213 : i32 to index
    %c0_62 = arith.constant 0 : index
    %215 = vector.load %arg9[%214, %c0_62] : memref<64x512xf32, #tpu.memory_space<vmem>>, vector<8x512xf32>
    %c0_63 = arith.constant 0 : index
    %c0_64 = arith.constant 0 : index
    %216 = vector.load %arg2[%c0_63, %c0_64] : memref<128x512xf32, #tpu.memory_space<vmem>>, vector<128x512xf32>
    %cst_65 = arith.constant dense<0.000000e+00> : vector<8x512xf32>
    %217 = tpu.matmul %209, %216, %cst_65 {dimension_numbers = #tpu.dot_dimension_numbers<[1], [0], [0], [1], [0, 0, 1, 1], [], []>} : vector<8x128xf32>, vector<128x512xf32>, vector<8x512xf32> -> vector<8x512xf32>
    %218 = arith.addf %215, %217 : vector<8x512xf32>
    %219 = vector.extract_strided_slice %218 {offsets = [0, 0], sizes = [8, 128], strides = [1, 1]} : vector<8x512xf32> to vector<8x128xf32>
    %220 = arith.negf %219 : vector<8x128xf32>
    %221 = math.exp %220 : vector<8x128xf32>
    %cst_66 = arith.constant 1.000000e+00 : f32
    %222 = vector.broadcast %cst_66 : f32 to vector<8x128xf32>
    %223 = arith.addf %222, %221 : vector<8x128xf32>
    %224 = arith.divf %222, %223 : vector<8x128xf32>
    %225 = vector.extract_strided_slice %218 {offsets = [0, 128], sizes = [8, 128], strides = [1, 1]} : vector<8x512xf32> to vector<8x128xf32>
    %226 = arith.negf %225 : vector<8x128xf32>
    %227 = math.exp %226 : vector<8x128xf32>
    %cst_67 = arith.constant 1.000000e+00 : f32
    %228 = vector.broadcast %cst_67 : f32 to vector<8x128xf32>
    %229 = arith.addf %228, %227 : vector<8x128xf32>
    %230 = arith.divf %228, %229 : vector<8x128xf32>
    %231 = vector.extract_strided_slice %218 {offsets = [0, 256], sizes = [8, 128], strides = [1, 1]} : vector<8x512xf32> to vector<8x128xf32>
    %232 = math.tanh %231 : vector<8x128xf32>
    %233 = vector.extract_strided_slice %218 {offsets = [0, 384], sizes = [8, 128], strides = [1, 1]} : vector<8x512xf32> to vector<8x128xf32>
    %234 = arith.negf %233 : vector<8x128xf32>
    %235 = math.exp %234 : vector<8x128xf32>
    %cst_68 = arith.constant 1.000000e+00 : f32
    %236 = vector.broadcast %cst_68 : f32 to vector<8x128xf32>
    %237 = arith.addf %236, %235 : vector<8x128xf32>
    %238 = arith.divf %236, %237 : vector<8x128xf32>
    %239 = arith.mulf %230, %207 : vector<8x128xf32>
    %240 = arith.mulf %224, %232 : vector<8x128xf32>
    %241 = arith.addf %239, %240 : vector<8x128xf32>
    %242 = math.tanh %241 : vector<8x128xf32>
    %243 = arith.mulf %238, %242 : vector<8x128xf32>
    %244 = arith.index_cast %213 : i32 to index
    %c0_69 = arith.constant 0 : index
    %245 = vector.load %arg10[%244, %c0_69] : memref<64x128xf32, #tpu.memory_space<vmem>>, vector<8x128xf32>
    tpu.vector_store %arg10[%244, %c0_69], %243 {strides = array<i32>} : memref<64x128xf32, #tpu.memory_space<vmem>>, vector<8x128xf32>,
    %c7_i32 = arith.constant 7 : i32
    %c8_i32_70 = arith.constant 8 : i32
    %246 = arith.muli %c7_i32, %c8_i32_70 : i32
    %247 = tpu.assume_multiple %246, 8 : i32
    %248 = arith.index_cast %247 : i32 to index
    %c0_71 = arith.constant 0 : index
    %249 = vector.load %arg9[%248, %c0_71] : memref<64x512xf32, #tpu.memory_space<vmem>>, vector<8x512xf32>
    %c0_72 = arith.constant 0 : index
    %c0_73 = arith.constant 0 : index
    %250 = vector.load %arg2[%c0_72, %c0_73] : memref<128x512xf32, #tpu.memory_space<vmem>>, vector<128x512xf32>
    %cst_74 = arith.constant dense<0.000000e+00> : vector<8x512xf32>
    %251 = tpu.matmul %243, %250, %cst_74 {dimension_numbers = #tpu.dot_dimension_numbers<[1], [0], [0], [1], [0, 0, 1, 1], [], []>} : vector<8x128xf32>, vector<128x512xf32>, vector<8x512xf32> -> vector<8x512xf32>
    %252 = arith.addf %249, %251 : vector<8x512xf32>
    %253 = vector.extract_strided_slice %252 {offsets = [0, 0], sizes = [8, 128], strides = [1, 1]} : vector<8x512xf32> to vector<8x128xf32>
    %254 = arith.negf %253 : vector<8x128xf32>
    %255 = math.exp %254 : vector<8x128xf32>
    %cst_75 = arith.constant 1.000000e+00 : f32
    %256 = vector.broadcast %cst_75 : f32 to vector<8x128xf32>
    %257 = arith.addf %256, %255 : vector<8x128xf32>
    %258 = arith.divf %256, %257 : vector<8x128xf32>
    %259 = vector.extract_strided_slice %252 {offsets = [0, 128], sizes = [8, 128], strides = [1, 1]} : vector<8x512xf32> to vector<8x128xf32>
    %260 = arith.negf %259 : vector<8x128xf32>
    %261 = math.exp %260 : vector<8x128xf32>
    %cst_76 = arith.constant 1.000000e+00 : f32
    %262 = vector.broadcast %cst_76 : f32 to vector<8x128xf32>
    %263 = arith.addf %262, %261 : vector<8x128xf32>
    %264 = arith.divf %262, %263 : vector<8x128xf32>
    %265 = vector.extract_strided_slice %252 {offsets = [0, 256], sizes = [8, 128], strides = [1, 1]} : vector<8x512xf32> to vector<8x128xf32>
    %266 = math.tanh %265 : vector<8x128xf32>
    %267 = vector.extract_strided_slice %252 {offsets = [0, 384], sizes = [8, 128], strides = [1, 1]} : vector<8x512xf32> to vector<8x128xf32>
    %268 = arith.negf %267 : vector<8x128xf32>
    %269 = math.exp %268 : vector<8x128xf32>
    %cst_77 = arith.constant 1.000000e+00 : f32
    %270 = vector.broadcast %cst_77 : f32 to vector<8x128xf32>
    %271 = arith.addf %270, %269 : vector<8x128xf32>
    %272 = arith.divf %270, %271 : vector<8x128xf32>
    %273 = arith.mulf %264, %241 : vector<8x128xf32>
    %274 = arith.mulf %258, %266 : vector<8x128xf32>
    %275 = arith.addf %273, %274 : vector<8x128xf32>
    %276 = math.tanh %275 : vector<8x128xf32>
    %277 = arith.mulf %272, %276 : vector<8x128xf32>
    %278 = arith.index_cast %247 : i32 to index
    %c0_78 = arith.constant 0 : index
    %279 = vector.load %arg10[%278, %c0_78] : memref<64x128xf32, #tpu.memory_space<vmem>>, vector<8x128xf32>
    tpu.vector_store %arg10[%278, %c0_78], %277 {strides = array<i32>} : memref<64x128xf32, #tpu.memory_space<vmem>>, vector<8x128xf32>,
    %c8_i32_79 = arith.constant 8 : i32
    %c0_80 = arith.constant 0 : index
    %c0_81 = arith.constant 0 : index
    %c0_82 = arith.constant 0 : index
    %280 = vector.load %arg7[%c0_80, %c0_81, %c0_82] : memref<2x8x128xf32, #tpu.memory_space<vmem>>, vector<1x8x128xf32>
    %281 = vector.shape_cast %280 : vector<1x8x128xf32> to vector<8x128xf32>
    %282 = vector.shape_cast %277 : vector<8x128xf32> to vector<1x8x128xf32>
    tpu.vector_store %arg7[%c0_80, %c0_81, %c0_82], %282 {strides = array<i32>} : memref<2x8x128xf32, #tpu.memory_space<vmem>>, vector<1x8x128xf32>,
    %c0_83 = arith.constant 0 : index
    %c0_84 = arith.constant 0 : index
    %c0_85 = arith.constant 0 : index
    %283 = vector.load %arg8[%c0_83, %c0_84, %c0_85] : memref<2x8x128xf32, #tpu.memory_space<vmem>>, vector<1x8x128xf32>
    %284 = vector.shape_cast %283 : vector<1x8x128xf32> to vector<8x128xf32>
    %285 = vector.shape_cast %275 : vector<8x128xf32> to vector<1x8x128xf32>
    tpu.vector_store %arg8[%c0_83, %c0_84, %c0_85], %285 {strides = array<i32>} : memref<2x8x128xf32, #tpu.memory_space<vmem>>, vector<1x8x128xf32>,
    %c0_86 = arith.constant 0 : index
    %c0_87 = arith.constant 0 : index
    %286 = vector.load %arg10[%c0_86, %c0_87] : memref<64x128xf32, #tpu.memory_space<vmem>>, vector<64x128xf32>
    %c0_88 = arith.constant 0 : index
    %c0_89 = arith.constant 0 : index
    %287 = vector.load %arg4[%c0_88, %c0_89] : memref<128x512xf32, #tpu.memory_space<vmem>>, vector<128x512xf32>
    %cst_90 = arith.constant dense<0.000000e+00> : vector<64x512xf32>
    %288 = tpu.matmul %286, %287, %cst_90 {dimension_numbers = #tpu.dot_dimension_numbers<[1], [0], [0], [1], [0, 0, 1, 1], [], []>} : vector<64x128xf32>, vector<128x512xf32>, vector<64x512xf32> -> vector<64x512xf32>
    %c0_91 = arith.constant 0 : index
    %c0_92 = arith.constant 0 : index
    %289 = vector.load %arg6[%c0_91, %c0_92] : memref<1x512xf32, #tpu.memory_space<vmem>>, vector<1x512xf32>
    %290 = vector.broadcast %289 : vector<1x512xf32> to vector<64x512xf32>
    %291 = arith.addf %288, %290 : vector<64x512xf32>
    %c0_93 = arith.constant 0 : index
    %c0_94 = arith.constant 0 : index
    %292 = vector.load %arg9[%c0_93, %c0_94] : memref<64x512xf32, #tpu.memory_space<vmem>>, vector<64x512xf32>
    tpu.vector_store %arg9[%c0_93, %c0_94], %291 {strides = array<i32>} : memref<64x512xf32, #tpu.memory_space<vmem>>, vector<64x512xf32>,
    %cst_95 = arith.constant 0.000000e+00 : f32
    %293 = vector.broadcast %cst_95 : f32 to vector<8x128xf32>
    %c0_i32_96 = arith.constant 0 : i32
    %c8_i32_97 = arith.constant 8 : i32
    %294 = arith.muli %c0_i32_96, %c8_i32_97 : i32
    %295 = tpu.assume_multiple %294, 8 : i32
    %296 = arith.index_cast %295 : i32 to index
    %c0_98 = arith.constant 0 : index
    %297 = vector.load %arg9[%296, %c0_98] : memref<64x512xf32, #tpu.memory_space<vmem>>, vector<8x512xf32>
    %c0_99 = arith.constant 0 : index
    %c0_100 = arith.constant 0 : index
    %298 = vector.load %arg5[%c0_99, %c0_100] : memref<128x512xf32, #tpu.memory_space<vmem>>, vector<128x512xf32>
    %cst_101 = arith.constant dense<0.000000e+00> : vector<8x512xf32>
    %299 = tpu.matmul %293, %298, %cst_101 {dimension_numbers = #tpu.dot_dimension_numbers<[1], [0], [0], [1], [0, 0, 1, 1], [], []>} : vector<8x128xf32>, vector<128x512xf32>, vector<8x512xf32> -> vector<8x512xf32>
    %300 = arith.addf %297, %299 : vector<8x512xf32>
    %301 = vector.extract_strided_slice %300 {offsets = [0, 0], sizes = [8, 128], strides = [1, 1]} : vector<8x512xf32> to vector<8x128xf32>
    %302 = arith.negf %301 : vector<8x128xf32>
    %303 = math.exp %302 : vector<8x128xf32>
    %cst_102 = arith.constant 1.000000e+00 : f32
    %304 = vector.broadcast %cst_102 : f32 to vector<8x128xf32>
    %305 = arith.addf %304, %303 : vector<8x128xf32>
    %306 = arith.divf %304, %305 : vector<8x128xf32>
    %307 = vector.extract_strided_slice %300 {offsets = [0, 128], sizes = [8, 128], strides = [1, 1]} : vector<8x512xf32> to vector<8x128xf32>
    %308 = arith.negf %307 : vector<8x128xf32>
    %309 = math.exp %308 : vector<8x128xf32>
    %cst_103 = arith.constant 1.000000e+00 : f32
    %310 = vector.broadcast %cst_103 : f32 to vector<8x128xf32>
    %311 = arith.addf %310, %309 : vector<8x128xf32>
    %312 = arith.divf %310, %311 : vector<8x128xf32>
    %313 = vector.extract_strided_slice %300 {offsets = [0, 256], sizes = [8, 128], strides = [1, 1]} : vector<8x512xf32> to vector<8x128xf32>
    %314 = math.tanh %313 : vector<8x128xf32>
    %315 = vector.extract_strided_slice %300 {offsets = [0, 384], sizes = [8, 128], strides = [1, 1]} : vector<8x512xf32> to vector<8x128xf32>
    %316 = arith.negf %315 : vector<8x128xf32>
    %317 = math.exp %316 : vector<8x128xf32>
    %cst_104 = arith.constant 1.000000e+00 : f32
    %318 = vector.broadcast %cst_104 : f32 to vector<8x128xf32>
    %319 = arith.addf %318, %317 : vector<8x128xf32>
    %320 = arith.divf %318, %319 : vector<8x128xf32>
    %321 = arith.mulf %312, %293 : vector<8x128xf32>
    %322 = arith.mulf %306, %314 : vector<8x128xf32>
    %323 = arith.addf %321, %322 : vector<8x128xf32>
    %324 = math.tanh %323 : vector<8x128xf32>
    %325 = arith.mulf %320, %324 : vector<8x128xf32>
    %c1_i32_105 = arith.constant 1 : i32
    %c8_i32_106 = arith.constant 8 : i32
    %326 = arith.muli %c1_i32_105, %c8_i32_106 : i32
    %327 = tpu.assume_multiple %326, 8 : i32
    %328 = arith.index_cast %327 : i32 to index
    %c0_107 = arith.constant 0 : index
    %329 = vector.load %arg9[%328, %c0_107] : memref<64x512xf32, #tpu.memory_space<vmem>>, vector<8x512xf32>
    %c0_108 = arith.constant 0 : index
    %c0_109 = arith.constant 0 : index
    %330 = vector.load %arg5[%c0_108, %c0_109] : memref<128x512xf32, #tpu.memory_space<vmem>>, vector<128x512xf32>
    %cst_110 = arith.constant dense<0.000000e+00> : vector<8x512xf32>
    %331 = tpu.matmul %325, %330, %cst_110 {dimension_numbers = #tpu.dot_dimension_numbers<[1], [0], [0], [1], [0, 0, 1, 1], [], []>} : vector<8x128xf32>, vector<128x512xf32>, vector<8x512xf32> -> vector<8x512xf32>
    %332 = arith.addf %329, %331 : vector<8x512xf32>
    %333 = vector.extract_strided_slice %332 {offsets = [0, 0], sizes = [8, 128], strides = [1, 1]} : vector<8x512xf32> to vector<8x128xf32>
    %334 = arith.negf %333 : vector<8x128xf32>
    %335 = math.exp %334 : vector<8x128xf32>
    %cst_111 = arith.constant 1.000000e+00 : f32
    %336 = vector.broadcast %cst_111 : f32 to vector<8x128xf32>
    %337 = arith.addf %336, %335 : vector<8x128xf32>
    %338 = arith.divf %336, %337 : vector<8x128xf32>
    %339 = vector.extract_strided_slice %332 {offsets = [0, 128], sizes = [8, 128], strides = [1, 1]} : vector<8x512xf32> to vector<8x128xf32>
    %340 = arith.negf %339 : vector<8x128xf32>
    %341 = math.exp %340 : vector<8x128xf32>
    %cst_112 = arith.constant 1.000000e+00 : f32
    %342 = vector.broadcast %cst_112 : f32 to vector<8x128xf32>
    %343 = arith.addf %342, %341 : vector<8x128xf32>
    %344 = arith.divf %342, %343 : vector<8x128xf32>
    %345 = vector.extract_strided_slice %332 {offsets = [0, 256], sizes = [8, 128], strides = [1, 1]} : vector<8x512xf32> to vector<8x128xf32>
    %346 = math.tanh %345 : vector<8x128xf32>
    %347 = vector.extract_strided_slice %332 {offsets = [0, 384], sizes = [8, 128], strides = [1, 1]} : vector<8x512xf32> to vector<8x128xf32>
    %348 = arith.negf %347 : vector<8x128xf32>
    %349 = math.exp %348 : vector<8x128xf32>
    %cst_113 = arith.constant 1.000000e+00 : f32
    %350 = vector.broadcast %cst_113 : f32 to vector<8x128xf32>
    %351 = arith.addf %350, %349 : vector<8x128xf32>
    %352 = arith.divf %350, %351 : vector<8x128xf32>
    %353 = arith.mulf %344, %323 : vector<8x128xf32>
    %354 = arith.mulf %338, %346 : vector<8x128xf32>
    %355 = arith.addf %353, %354 : vector<8x128xf32>
    %356 = math.tanh %355 : vector<8x128xf32>
    %357 = arith.mulf %352, %356 : vector<8x128xf32>
    %c2_i32_114 = arith.constant 2 : i32
    %c8_i32_115 = arith.constant 8 : i32
    %358 = arith.muli %c2_i32_114, %c8_i32_115 : i32
    %359 = tpu.assume_multiple %358, 8 : i32
    %360 = arith.index_cast %359 : i32 to index
    %c0_116 = arith.constant 0 : index
    %361 = vector.load %arg9[%360, %c0_116] : memref<64x512xf32, #tpu.memory_space<vmem>>, vector<8x512xf32>
    %c0_117 = arith.constant 0 : index
    %c0_118 = arith.constant 0 : index
    %362 = vector.load %arg5[%c0_117, %c0_118] : memref<128x512xf32, #tpu.memory_space<vmem>>, vector<128x512xf32>
    %cst_119 = arith.constant dense<0.000000e+00> : vector<8x512xf32>
    %363 = tpu.matmul %357, %362, %cst_119 {dimension_numbers = #tpu.dot_dimension_numbers<[1], [0], [0], [1], [0, 0, 1, 1], [], []>} : vector<8x128xf32>, vector<128x512xf32>, vector<8x512xf32> -> vector<8x512xf32>
    %364 = arith.addf %361, %363 : vector<8x512xf32>
    %365 = vector.extract_strided_slice %364 {offsets = [0, 0], sizes = [8, 128], strides = [1, 1]} : vector<8x512xf32> to vector<8x128xf32>
    %366 = arith.negf %365 : vector<8x128xf32>
    %367 = math.exp %366 : vector<8x128xf32>
    %cst_120 = arith.constant 1.000000e+00 : f32
    %368 = vector.broadcast %cst_120 : f32 to vector<8x128xf32>
    %369 = arith.addf %368, %367 : vector<8x128xf32>
    %370 = arith.divf %368, %369 : vector<8x128xf32>
    %371 = vector.extract_strided_slice %364 {offsets = [0, 128], sizes = [8, 128], strides = [1, 1]} : vector<8x512xf32> to vector<8x128xf32>
    %372 = arith.negf %371 : vector<8x128xf32>
    %373 = math.exp %372 : vector<8x128xf32>
    %cst_121 = arith.constant 1.000000e+00 : f32
    %374 = vector.broadcast %cst_121 : f32 to vector<8x128xf32>
    %375 = arith.addf %374, %373 : vector<8x128xf32>
    %376 = arith.divf %374, %375 : vector<8x128xf32>
    %377 = vector.extract_strided_slice %364 {offsets = [0, 256], sizes = [8, 128], strides = [1, 1]} : vector<8x512xf32> to vector<8x128xf32>
    %378 = math.tanh %377 : vector<8x128xf32>
    %379 = vector.extract_strided_slice %364 {offsets = [0, 384], sizes = [8, 128], strides = [1, 1]} : vector<8x512xf32> to vector<8x128xf32>
    %380 = arith.negf %379 : vector<8x128xf32>
    %381 = math.exp %380 : vector<8x128xf32>
    %cst_122 = arith.constant 1.000000e+00 : f32
    %382 = vector.broadcast %cst_122 : f32 to vector<8x128xf32>
    %383 = arith.addf %382, %381 : vector<8x128xf32>
    %384 = arith.divf %382, %383 : vector<8x128xf32>
    %385 = arith.mulf %376, %355 : vector<8x128xf32>
    %386 = arith.mulf %370, %378 : vector<8x128xf32>
    %387 = arith.addf %385, %386 : vector<8x128xf32>
    %388 = math.tanh %387 : vector<8x128xf32>
    %389 = arith.mulf %384, %388 : vector<8x128xf32>
    %c3_i32_123 = arith.constant 3 : i32
    %c8_i32_124 = arith.constant 8 : i32
    %390 = arith.muli %c3_i32_123, %c8_i32_124 : i32
    %391 = tpu.assume_multiple %390, 8 : i32
    %392 = arith.index_cast %391 : i32 to index
    %c0_125 = arith.constant 0 : index
    %393 = vector.load %arg9[%392, %c0_125] : memref<64x512xf32, #tpu.memory_space<vmem>>, vector<8x512xf32>
    %c0_126 = arith.constant 0 : index
    %c0_127 = arith.constant 0 : index
    %394 = vector.load %arg5[%c0_126, %c0_127] : memref<128x512xf32, #tpu.memory_space<vmem>>, vector<128x512xf32>
    %cst_128 = arith.constant dense<0.000000e+00> : vector<8x512xf32>
    %395 = tpu.matmul %389, %394, %cst_128 {dimension_numbers = #tpu.dot_dimension_numbers<[1], [0], [0], [1], [0, 0, 1, 1], [], []>} : vector<8x128xf32>, vector<128x512xf32>, vector<8x512xf32> -> vector<8x512xf32>
    %396 = arith.addf %393, %395 : vector<8x512xf32>
    %397 = vector.extract_strided_slice %396 {offsets = [0, 0], sizes = [8, 128], strides = [1, 1]} : vector<8x512xf32> to vector<8x128xf32>
    %398 = arith.negf %397 : vector<8x128xf32>
    %399 = math.exp %398 : vector<8x128xf32>
    %cst_129 = arith.constant 1.000000e+00 : f32
    %400 = vector.broadcast %cst_129 : f32 to vector<8x128xf32>
    %401 = arith.addf %400, %399 : vector<8x128xf32>
    %402 = arith.divf %400, %401 : vector<8x128xf32>
    %403 = vector.extract_strided_slice %396 {offsets = [0, 128], sizes = [8, 128], strides = [1, 1]} : vector<8x512xf32> to vector<8x128xf32>
    %404 = arith.negf %403 : vector<8x128xf32>
    %405 = math.exp %404 : vector<8x128xf32>
    %cst_130 = arith.constant 1.000000e+00 : f32
    %406 = vector.broadcast %cst_130 : f32 to vector<8x128xf32>
    %407 = arith.addf %406, %405 : vector<8x128xf32>
    %408 = arith.divf %406, %407 : vector<8x128xf32>
    %409 = vector.extract_strided_slice %396 {offsets = [0, 256], sizes = [8, 128], strides = [1, 1]} : vector<8x512xf32> to vector<8x128xf32>
    %410 = math.tanh %409 : vector<8x128xf32>
    %411 = vector.extract_strided_slice %396 {offsets = [0, 384], sizes = [8, 128], strides = [1, 1]} : vector<8x512xf32> to vector<8x128xf32>
    %412 = arith.negf %411 : vector<8x128xf32>
    %413 = math.exp %412 : vector<8x128xf32>
    %cst_131 = arith.constant 1.000000e+00 : f32
    %414 = vector.broadcast %cst_131 : f32 to vector<8x128xf32>
    %415 = arith.addf %414, %413 : vector<8x128xf32>
    %416 = arith.divf %414, %415 : vector<8x128xf32>
    %417 = arith.mulf %408, %387 : vector<8x128xf32>
    %418 = arith.mulf %402, %410 : vector<8x128xf32>
    %419 = arith.addf %417, %418 : vector<8x128xf32>
    %420 = math.tanh %419 : vector<8x128xf32>
    %421 = arith.mulf %416, %420 : vector<8x128xf32>
    %c4_i32_132 = arith.constant 4 : i32
    %c8_i32_133 = arith.constant 8 : i32
    %422 = arith.muli %c4_i32_132, %c8_i32_133 : i32
    %423 = tpu.assume_multiple %422, 8 : i32
    %424 = arith.index_cast %423 : i32 to index
    %c0_134 = arith.constant 0 : index
    %425 = vector.load %arg9[%424, %c0_134] : memref<64x512xf32, #tpu.memory_space<vmem>>, vector<8x512xf32>
    %c0_135 = arith.constant 0 : index
    %c0_136 = arith.constant 0 : index
    %426 = vector.load %arg5[%c0_135, %c0_136] : memref<128x512xf32, #tpu.memory_space<vmem>>, vector<128x512xf32>
    %cst_137 = arith.constant dense<0.000000e+00> : vector<8x512xf32>
    %427 = tpu.matmul %421, %426, %cst_137 {dimension_numbers = #tpu.dot_dimension_numbers<[1], [0], [0], [1], [0, 0, 1, 1], [], []>} : vector<8x128xf32>, vector<128x512xf32>, vector<8x512xf32> -> vector<8x512xf32>
    %428 = arith.addf %425, %427 : vector<8x512xf32>
    %429 = vector.extract_strided_slice %428 {offsets = [0, 0], sizes = [8, 128], strides = [1, 1]} : vector<8x512xf32> to vector<8x128xf32>
    %430 = arith.negf %429 : vector<8x128xf32>
    %431 = math.exp %430 : vector<8x128xf32>
    %cst_138 = arith.constant 1.000000e+00 : f32
    %432 = vector.broadcast %cst_138 : f32 to vector<8x128xf32>
    %433 = arith.addf %432, %431 : vector<8x128xf32>
    %434 = arith.divf %432, %433 : vector<8x128xf32>
    %435 = vector.extract_strided_slice %428 {offsets = [0, 128], sizes = [8, 128], strides = [1, 1]} : vector<8x512xf32> to vector<8x128xf32>
    %436 = arith.negf %435 : vector<8x128xf32>
    %437 = math.exp %436 : vector<8x128xf32>
    %cst_139 = arith.constant 1.000000e+00 : f32
    %438 = vector.broadcast %cst_139 : f32 to vector<8x128xf32>
    %439 = arith.addf %438, %437 : vector<8x128xf32>
    %440 = arith.divf %438, %439 : vector<8x128xf32>
    %441 = vector.extract_strided_slice %428 {offsets = [0, 256], sizes = [8, 128], strides = [1, 1]} : vector<8x512xf32> to vector<8x128xf32>
    %442 = math.tanh %441 : vector<8x128xf32>
    %443 = vector.extract_strided_slice %428 {offsets = [0, 384], sizes = [8, 128], strides = [1, 1]} : vector<8x512xf32> to vector<8x128xf32>
    %444 = arith.negf %443 : vector<8x128xf32>
    %445 = math.exp %444 : vector<8x128xf32>
    %cst_140 = arith.constant 1.000000e+00 : f32
    %446 = vector.broadcast %cst_140 : f32 to vector<8x128xf32>
    %447 = arith.addf %446, %445 : vector<8x128xf32>
    %448 = arith.divf %446, %447 : vector<8x128xf32>
    %449 = arith.mulf %440, %419 : vector<8x128xf32>
    %450 = arith.mulf %434, %442 : vector<8x128xf32>
    %451 = arith.addf %449, %450 : vector<8x128xf32>
    %452 = math.tanh %451 : vector<8x128xf32>
    %453 = arith.mulf %448, %452 : vector<8x128xf32>
    %c5_i32_141 = arith.constant 5 : i32
    %c8_i32_142 = arith.constant 8 : i32
    %454 = arith.muli %c5_i32_141, %c8_i32_142 : i32
    %455 = tpu.assume_multiple %454, 8 : i32
    %456 = arith.index_cast %455 : i32 to index
    %c0_143 = arith.constant 0 : index
    %457 = vector.load %arg9[%456, %c0_143] : memref<64x512xf32, #tpu.memory_space<vmem>>, vector<8x512xf32>
    %c0_144 = arith.constant 0 : index
    %c0_145 = arith.constant 0 : index
    %458 = vector.load %arg5[%c0_144, %c0_145] : memref<128x512xf32, #tpu.memory_space<vmem>>, vector<128x512xf32>
    %cst_146 = arith.constant dense<0.000000e+00> : vector<8x512xf32>
    %459 = tpu.matmul %453, %458, %cst_146 {dimension_numbers = #tpu.dot_dimension_numbers<[1], [0], [0], [1], [0, 0, 1, 1], [], []>} : vector<8x128xf32>, vector<128x512xf32>, vector<8x512xf32> -> vector<8x512xf32>
    %460 = arith.addf %457, %459 : vector<8x512xf32>
    %461 = vector.extract_strided_slice %460 {offsets = [0, 0], sizes = [8, 128], strides = [1, 1]} : vector<8x512xf32> to vector<8x128xf32>
    %462 = arith.negf %461 : vector<8x128xf32>
    %463 = math.exp %462 : vector<8x128xf32>
    %cst_147 = arith.constant 1.000000e+00 : f32
    %464 = vector.broadcast %cst_147 : f32 to vector<8x128xf32>
    %465 = arith.addf %464, %463 : vector<8x128xf32>
    %466 = arith.divf %464, %465 : vector<8x128xf32>
    %467 = vector.extract_strided_slice %460 {offsets = [0, 128], sizes = [8, 128], strides = [1, 1]} : vector<8x512xf32> to vector<8x128xf32>
    %468 = arith.negf %467 : vector<8x128xf32>
    %469 = math.exp %468 : vector<8x128xf32>
    %cst_148 = arith.constant 1.000000e+00 : f32
    %470 = vector.broadcast %cst_148 : f32 to vector<8x128xf32>
    %471 = arith.addf %470, %469 : vector<8x128xf32>
    %472 = arith.divf %470, %471 : vector<8x128xf32>
    %473 = vector.extract_strided_slice %460 {offsets = [0, 256], sizes = [8, 128], strides = [1, 1]} : vector<8x512xf32> to vector<8x128xf32>
    %474 = math.tanh %473 : vector<8x128xf32>
    %475 = vector.extract_strided_slice %460 {offsets = [0, 384], sizes = [8, 128], strides = [1, 1]} : vector<8x512xf32> to vector<8x128xf32>
    %476 = arith.negf %475 : vector<8x128xf32>
    %477 = math.exp %476 : vector<8x128xf32>
    %cst_149 = arith.constant 1.000000e+00 : f32
    %478 = vector.broadcast %cst_149 : f32 to vector<8x128xf32>
    %479 = arith.addf %478, %477 : vector<8x128xf32>
    %480 = arith.divf %478, %479 : vector<8x128xf32>
    %481 = arith.mulf %472, %451 : vector<8x128xf32>
    %482 = arith.mulf %466, %474 : vector<8x128xf32>
    %483 = arith.addf %481, %482 : vector<8x128xf32>
    %484 = math.tanh %483 : vector<8x128xf32>
    %485 = arith.mulf %480, %484 : vector<8x128xf32>
    %c6_i32_150 = arith.constant 6 : i32
    %c8_i32_151 = arith.constant 8 : i32
    %486 = arith.muli %c6_i32_150, %c8_i32_151 : i32
    %487 = tpu.assume_multiple %486, 8 : i32
    %488 = arith.index_cast %487 : i32 to index
    %c0_152 = arith.constant 0 : index
    %489 = vector.load %arg9[%488, %c0_152] : memref<64x512xf32, #tpu.memory_space<vmem>>, vector<8x512xf32>
    %c0_153 = arith.constant 0 : index
    %c0_154 = arith.constant 0 : index
    %490 = vector.load %arg5[%c0_153, %c0_154] : memref<128x512xf32, #tpu.memory_space<vmem>>, vector<128x512xf32>
    %cst_155 = arith.constant dense<0.000000e+00> : vector<8x512xf32>
    %491 = tpu.matmul %485, %490, %cst_155 {dimension_numbers = #tpu.dot_dimension_numbers<[1], [0], [0], [1], [0, 0, 1, 1], [], []>} : vector<8x128xf32>, vector<128x512xf32>, vector<8x512xf32> -> vector<8x512xf32>
    %492 = arith.addf %489, %491 : vector<8x512xf32>
    %493 = vector.extract_strided_slice %492 {offsets = [0, 0], sizes = [8, 128], strides = [1, 1]} : vector<8x512xf32> to vector<8x128xf32>
    %494 = arith.negf %493 : vector<8x128xf32>
    %495 = math.exp %494 : vector<8x128xf32>
    %cst_156 = arith.constant 1.000000e+00 : f32
    %496 = vector.broadcast %cst_156 : f32 to vector<8x128xf32>
    %497 = arith.addf %496, %495 : vector<8x128xf32>
    %498 = arith.divf %496, %497 : vector<8x128xf32>
    %499 = vector.extract_strided_slice %492 {offsets = [0, 128], sizes = [8, 128], strides = [1, 1]} : vector<8x512xf32> to vector<8x128xf32>
    %500 = arith.negf %499 : vector<8x128xf32>
    %501 = math.exp %500 : vector<8x128xf32>
    %cst_157 = arith.constant 1.000000e+00 : f32
    %502 = vector.broadcast %cst_157 : f32 to vector<8x128xf32>
    %503 = arith.addf %502, %501 : vector<8x128xf32>
    %504 = arith.divf %502, %503 : vector<8x128xf32>
    %505 = vector.extract_strided_slice %492 {offsets = [0, 256], sizes = [8, 128], strides = [1, 1]} : vector<8x512xf32> to vector<8x128xf32>
    %506 = math.tanh %505 : vector<8x128xf32>
    %507 = vector.extract_strided_slice %492 {offsets = [0, 384], sizes = [8, 128], strides = [1, 1]} : vector<8x512xf32> to vector<8x128xf32>
    %508 = arith.negf %507 : vector<8x128xf32>
    %509 = math.exp %508 : vector<8x128xf32>
    %cst_158 = arith.constant 1.000000e+00 : f32
    %510 = vector.broadcast %cst_158 : f32 to vector<8x128xf32>
    %511 = arith.addf %510, %509 : vector<8x128xf32>
    %512 = arith.divf %510, %511 : vector<8x128xf32>
    %513 = arith.mulf %504, %483 : vector<8x128xf32>
    %514 = arith.mulf %498, %506 : vector<8x128xf32>
    %515 = arith.addf %513, %514 : vector<8x128xf32>
    %516 = math.tanh %515 : vector<8x128xf32>
    %517 = arith.mulf %512, %516 : vector<8x128xf32>
    %c7_i32_159 = arith.constant 7 : i32
    %c8_i32_160 = arith.constant 8 : i32
    %518 = arith.muli %c7_i32_159, %c8_i32_160 : i32
    %519 = tpu.assume_multiple %518, 8 : i32
    %520 = arith.index_cast %519 : i32 to index
    %c0_161 = arith.constant 0 : index
    %521 = vector.load %arg9[%520, %c0_161] : memref<64x512xf32, #tpu.memory_space<vmem>>, vector<8x512xf32>
    %c0_162 = arith.constant 0 : index
    %c0_163 = arith.constant 0 : index
    %522 = vector.load %arg5[%c0_162, %c0_163] : memref<128x512xf32, #tpu.memory_space<vmem>>, vector<128x512xf32>
    %cst_164 = arith.constant dense<0.000000e+00> : vector<8x512xf32>
    %523 = tpu.matmul %517, %522, %cst_164 {dimension_numbers = #tpu.dot_dimension_numbers<[1], [0], [0], [1], [0, 0, 1, 1], [], []>} : vector<8x128xf32>, vector<128x512xf32>, vector<8x512xf32> -> vector<8x512xf32>
    %524 = arith.addf %521, %523 : vector<8x512xf32>
    %525 = vector.extract_strided_slice %524 {offsets = [0, 0], sizes = [8, 128], strides = [1, 1]} : vector<8x512xf32> to vector<8x128xf32>
    %526 = arith.negf %525 : vector<8x128xf32>
    %527 = math.exp %526 : vector<8x128xf32>
    %cst_165 = arith.constant 1.000000e+00 : f32
    %528 = vector.broadcast %cst_165 : f32 to vector<8x128xf32>
    %529 = arith.addf %528, %527 : vector<8x128xf32>
    %530 = arith.divf %528, %529 : vector<8x128xf32>
    %531 = vector.extract_strided_slice %524 {offsets = [0, 128], sizes = [8, 128], strides = [1, 1]} : vector<8x512xf32> to vector<8x128xf32>
    %532 = arith.negf %531 : vector<8x128xf32>
    %533 = math.exp %532 : vector<8x128xf32>
    %cst_166 = arith.constant 1.000000e+00 : f32
    %534 = vector.broadcast %cst_166 : f32 to vector<8x128xf32>
    %535 = arith.addf %534, %533 : vector<8x128xf32>
    %536 = arith.divf %534, %535 : vector<8x128xf32>
    %537 = vector.extract_strided_slice %524 {offsets = [0, 256], sizes = [8, 128], strides = [1, 1]} : vector<8x512xf32> to vector<8x128xf32>
    %538 = math.tanh %537 : vector<8x128xf32>
    %539 = vector.extract_strided_slice %524 {offsets = [0, 384], sizes = [8, 128], strides = [1, 1]} : vector<8x512xf32> to vector<8x128xf32>
    %540 = arith.negf %539 : vector<8x128xf32>
    %541 = math.exp %540 : vector<8x128xf32>
    %cst_167 = arith.constant 1.000000e+00 : f32
    %542 = vector.broadcast %cst_167 : f32 to vector<8x128xf32>
    %543 = arith.addf %542, %541 : vector<8x128xf32>
    %544 = arith.divf %542, %543 : vector<8x128xf32>
    %545 = arith.mulf %536, %515 : vector<8x128xf32>
    %546 = arith.mulf %530, %538 : vector<8x128xf32>
    %547 = arith.addf %545, %546 : vector<8x128xf32>
    %548 = math.tanh %547 : vector<8x128xf32>
    %549 = arith.mulf %544, %548 : vector<8x128xf32>
    %c8_i32_168 = arith.constant 8 : i32
    %c1 = arith.constant 1 : index
    %c0_169 = arith.constant 0 : index
    %c0_170 = arith.constant 0 : index
    %550 = vector.load %arg7[%c1, %c0_169, %c0_170] : memref<2x8x128xf32, #tpu.memory_space<vmem>>, vector<1x8x128xf32>
    %551 = vector.shape_cast %550 : vector<1x8x128xf32> to vector<8x128xf32>
    %552 = vector.shape_cast %549 : vector<8x128xf32> to vector<1x8x128xf32>
    tpu.vector_store %arg7[%c1, %c0_169, %c0_170], %552 {strides = array<i32>} : memref<2x8x128xf32, #tpu.memory_space<vmem>>, vector<1x8x128xf32>,
    %c1_171 = arith.constant 1 : index
    %c0_172 = arith.constant 0 : index
    %c0_173 = arith.constant 0 : index
    %553 = vector.load %arg8[%c1_171, %c0_172, %c0_173] : memref<2x8x128xf32, #tpu.memory_space<vmem>>, vector<1x8x128xf32>
    %554 = vector.shape_cast %553 : vector<1x8x128xf32> to vector<8x128xf32>
    %555 = vector.shape_cast %547 : vector<8x128xf32> to vector<1x8x128xf32>
    tpu.vector_store %arg8[%c1_171, %c0_172, %c0_173], %555 {strides = array<i32>} : memref<2x8x128xf32, #tpu.memory_space<vmem>>, vector<1x8x128xf32>,
    return
  }
}

</mosaic_0001>

<llo_original>
// kernel: encoder_forward.1
$region0: #{encoder_forward.1}
  #allocation0 [shape = 'u32[]', space=smem, size = 0x4, offset = 0x4, fixed_abs, tag = 'smem constant byte address 0x4 - core index']
  #allocation1 [shape = 'u32[144,128]{1,0:T(1,128)}', space=vmem, size = 0x12000, scoped, tag = 'internal scratch']
  #allocation2 [shape = 'f32[64,512]{1,0:T(8,128)}', space=vmem, size = 0x20000, scoped, tag = 'scratch operand']
  #allocation3 [shape = 'f32[64,128]{1,0:T(8,128)}', space=vmem, size = 0x8000, scoped, tag = 'scratch operand']
  %s0 = inlined_call_operand.vmem [shape: f32[64,128], index: 0, kind: input, shape index: {}]
  %s1 = inlined_call_operand.vmem [shape: f32[128,512], index: 1, kind: input, shape index: {}]
  %s2 = inlined_call_operand.vmem [shape: f32[128,512], index: 2, kind: input, shape index: {}]
  %s3 = inlined_call_operand.vmem [shape: f32[1,512], index: 3, kind: input, shape index: {}]
  %s4 = inlined_call_operand.vmem [shape: f32[128,512], index: 4, kind: input, shape index: {}]
  %s5 = inlined_call_operand.vmem [shape: f32[128,512], index: 5, kind: input, shape index: {}]
  %s6 = inlined_call_operand.vmem [shape: f32[1,512], index: 6, kind: input, shape index: {}]
  %s7 = inlined_call_operand.vmem [shape: f32[2,8,128], index: 7, kind: output, shape index: {0}]
  %s8 = inlined_call_operand.vmem [shape: f32[2,8,128], index: 8, kind: output, shape index: {1}]
  %9 = xla_tuple %s7, %s8
  %s10 = sld [smem:[#allocation0]]
  $region46: #{encoder_forward.1} parent=0
    _
  %s12 = ssub.s32 1, %s10
  %s13 = scalar_select 0, %s12, %s10
  // Predicated region
  $region2: #{encoder_forward.1} parent=0 // pred_check
    _
  $region3: #{encoder_forward.1} parent=0 // pred_check_branch
    %15 = sbr.rel (0) target = $region5
  $region4: #{encoder_forward.1} parent=0 // pred_region
    _
  $region5: #{encoder_forward.1} parent=0 // pred_fallthru
    _
  // Predicated region
  $region6: #{encoder_forward.1} parent=0 // pred_check
    _
  $region7: #{encoder_forward.1} parent=0 // pred_check_branch
    %17 = sbr.rel (0) target = $region9
  $region8: #{encoder_forward.1} parent=0 // pred_region
    _
  $region9: #{encoder_forward.1} parent=0 // pred_fallthru
    _
  // Predicated region
  $region10: #{encoder_forward.1} parent=0 // pred_check
    _
  $region11: #{encoder_forward.1} parent=0 // pred_check_branch
    %19 = sbr.rel (0) target = $region13
  $region12: #{encoder_forward.1} parent=0 // pred_region
    _
  $region13: #{encoder_forward.1} parent=0 // pred_fallthru
    _
  // Predicated region
  $region14: #{encoder_forward.1} parent=0 // pred_check
    _
  $region15: #{encoder_forward.1} parent=0 // pred_check_branch
    %21 = sbr.rel (0) target = $region17
  $region16: #{encoder_forward.1} parent=0 // pred_region
    _
  $region17: #{encoder_forward.1} parent=0 // pred_fallthru
    _
  // Predicated region
  $region18: #{encoder_forward.1} parent=0 // pred_check
    _
  $region19: #{encoder_forward.1} parent=0 // pred_check_branch
    %23 = sbr.rel (0) target = $region21
  $region20: #{encoder_forward.1} parent=0 // pred_region
    _
  $region21: #{encoder_forward.1} parent=0 // pred_fallthru
    _
  // Predicated region
  $region22: #{encoder_forward.1} parent=0 // pred_check
    _
  $region23: #{encoder_forward.1} parent=0 // pred_check_branch
    %25 = sbr.rel (0) target = $region25
  $region24: #{encoder_forward.1} parent=0 // pred_region
    _
  $region25: #{encoder_forward.1} parent=0 // pred_fallthru
    _
  // Predicated region
  $region26: #{encoder_forward.1} parent=0 // pred_check
    _
  $region27: #{encoder_forward.1} parent=0 // pred_check_branch
    %27 = sbr.rel (0) target = $region29
  $region28: #{encoder_forward.1} parent=0 // pred_region
    _
  $region29: #{encoder_forward.1} parent=0 // pred_fallthru
    _
  %v28 = vld [vmem:[%s0] sm:$0xff]
  %v29 = vld [vmem:[%s0 + $0x8] sm:$0xff]
  %v30 = vld [vmem:[%s0 + $0x10] sm:$0xff]
  %v31 = vld [vmem:[%s0 + $0x18] sm:$0xff]
  %v32 = vld [vmem:[%s0 + $0x20] sm:$0xff]
  %v33 = vld [vmem:[%s0 + $0x28] sm:$0xff]
  %v34 = vld [vmem:[%s0 + $0x30] sm:$0xff]
  %v35 = vld [vmem:[%s0 + $0x38] sm:$0xff]
  %v36 = vld [vmem:[%s1] sm:$0xff]
  %v37 = vld [vmem:[%s1 + $0x8] sm:$0xff]
  %v38 = vld [vmem:[%s1 + $0x10] sm:$0xff]
  %v39 = vld [vmem:[%s1 + $0x18] sm:$0xff]
  %v40 = vld [vmem:[%s1 + $0x20] sm:$0xff]
  %v41 = vld [vmem:[%s1 + $0x28] sm:$0xff]
  %v42 = vld [vmem:[%s1 + $0x30] sm:$0xff]
  %v43 = vld [vmem:[%s1 + $0x38] sm:$0xff]
  %v44 = vld [vmem:[%s1 + $0x40] sm:$0xff]
  %v45 = vld [vmem:[%s1 + $0x48] sm:$0xff]
  %v46 = vld [vmem:[%s1 + $0x50] sm:$0xff]
  %v47 = vld [vmem:[%s1 + $0x58] sm:$0xff]
  %v48 = vld [vmem:[%s1 + $0x60] sm:$0xff]
  %v49 = vld [vmem:[%s1 + $0x68] sm:$0xff]
  %v50 = vld [vmem:[%s1 + $0x70] sm:$0xff]
  %v51 = vld [vmem:[%s1 + $0x78] sm:$0xff]
  %v52 = vld [vmem:[%s1 + $0x80] sm:$0xff]
  %v53 = vld [vmem:[%s1 + $0x88] sm:$0xff]
  %v54 = vld [vmem:[%s1 + $0x90] sm:$0xff]
  %v55 = vld [vmem:[%s1 + $0x98] sm:$0xff]
  %v56 = vld [vmem:[%s1 + $0xa0] sm:$0xff]
  %v57 = vld [vmem:[%s1 + $0xa8] sm:$0xff]
  %v58 = vld [vmem:[%s1 + $0xb0] sm:$0xff]
  %v59 = vld [vmem:[%s1 + $0xb8] sm:$0xff]
  %v60 = vld [vmem:[%s1 + $0xc0] sm:$0xff]
  %v61 = vld [vmem:[%s1 + $0xc8] sm:$0xff]
  %v62 = vld [vmem:[%s1 + $0xd0] sm:$0xff]
  %v63 = vld [vmem:[%s1 + $0xd8] sm:$0xff]
  %v64 = vld [vmem:[%s1 + $0xe0] sm:$0xff]
  %v65 = vld [vmem:[%s1 + $0xe8] sm:$0xff]
  %v66 = vld [vmem:[%s1 + $0xf0] sm:$0xff]
  %v67 = vld [vmem:[%s1 + $0xf8] sm:$0xff]
  %v68 = vld [vmem:[%s1 + $0x100] sm:$0xff]
  %v69 = vld [vmem:[%s1 + $0x108] sm:$0xff]
  %v70 = vld [vmem:[%s1 + $0x110] sm:$0xff]
  %v71 = vld [vmem:[%s1 + $0x118] sm:$0xff]
  %v72 = vld [vmem:[%s1 + $0x120] sm:$0xff]
  %v73 = vld [vmem:[%s1 + $0x128] sm:$0xff]
  %v74 = vld [vmem:[%s1 + $0x130] sm:$0xff]
  %v75 = vld [vmem:[%s1 + $0x138] sm:$0xff]
  %v76 = vld [vmem:[%s1 + $0x140] sm:$0xff]
  %v77 = vld [vmem:[%s1 + $0x148] sm:$0xff]
  %v78 = vld [vmem:[%s1 + $0x150] sm:$0xff]
  %v79 = vld [vmem:[%s1 + $0x158] sm:$0xff]
  %v80 = vld [vmem:[%s1 + $0x160] sm:$0xff]
  %v81 = vld [vmem:[%s1 + $0x168] sm:$0xff]
  %v82 = vld [vmem:[%s1 + $0x170] sm:$0xff]
  %v83 = vld [vmem:[%s1 + $0x178] sm:$0xff]
  %v84 = vld [vmem:[%s1 + $0x180] sm:$0xff]
  %v85 = vld [vmem:[%s1 + $0x188] sm:$0xff]
  %v86 = vld [vmem:[%s1 + $0x190] sm:$0xff]
  %v87 = vld [vmem:[%s1 + $0x198] sm:$0xff]
  %v88 = vld [vmem:[%s1 + $0x1a0] sm:$0xff]
  %v89 = vld [vmem:[%s1 + $0x1a8] sm:$0xff]
  %v90 = vld [vmem:[%s1 + $0x1b0] sm:$0xff]
  %v91 = vld [vmem:[%s1 + $0x1b8] sm:$0xff]
  %v92 = vld [vmem:[%s1 + $0x1c0] sm:$0xff]
  %v93 = vld [vmem:[%s1 + $0x1c8] sm:$0xff]
  %v94 = vld [vmem:[%s1 + $0x1d0] sm:$0xff]
  %v95 = vld [vmem:[%s1 + $0x1d8] sm:$0xff]
  %v96 = vld [vmem:[%s1 + $0x1e0] sm:$0xff]
  %v97 = vld [vmem:[%s1 + $0x1e8] sm:$0xff]
  %v98 = vld [vmem:[%s1 + $0x1f0] sm:$0xff]
  %v99 = vld [vmem:[%s1 + $0x1f8] sm:$0xff]
  %v100 = vld [vmem:[%s3] sm:$0xf]
  %v102 = vlaneseq
  %v103 = vshrl.u32 %v102, 7
  %v104 = vsub.s32 0, %v103
  %v105 = vrot.slane %v100, %v104
  %v106 = vlaneseq
  %v107 = vshrl.u32 %v106, 7
  %v108 = vsub.s32 1, %v107
  %v109 = vrot.slane %v100, %v108
  %v110 = vlaneseq
  %v111 = vshrl.u32 %v110, 7
  %v112 = vsub.s32 2, %v111
  %v113 = vrot.slane %v100, %v112
  %v114 = vlaneseq
  %v115 = vshrl.u32 %v114, 7
  %v116 = vsub.s32 3, %v115
  %v117 = vrot.slane %v100, %v116
  %122 = vmatprep.subr.mxu0 %v97
  %123 = vmatpush1.msra.mxu0 %v96
  %124 = vmatprep.subr.mxu0 %v93
  %125 = vmatpush1.msra.mxu0 %v92
  %126 = vmatprep.subr.mxu0 %v89
  %127 = vmatpush1.msra.mxu0 %v88
  %128 = vmatprep.subr.mxu0 %v85
  %129 = vmatpush1.msra.mxu0 %v84
  %130 = vmatprep.subr.mxu0 %v81
  %131 = vmatpush1.msra.mxu0 %v80
  %132 = vmatprep.subr.mxu0 %v77
  %133 = vmatpush1.msra.mxu0 %v76
  %134 = vmatprep.subr.mxu0 %v73
  %135 = vmatpush1.msra.mxu0 %v72
  %136 = vmatprep.subr.mxu0 %v69
  %137 = vmatpush1.msra.mxu0 %v68
  %138 = vmatprep.subr.mxu0 %v65
  %139 = vmatpush1.msra.mxu0 %v64
  %140 = vmatprep.subr.mxu0 %v61
  %141 = vmatpush1.msra.mxu0 %v60
  %142 = vmatprep.subr.mxu0 %v57
  %143 = vmatpush1.msra.mxu0 %v56
  %144 = vmatprep.subr.mxu0 %v53
  %145 = vmatpush1.msra.mxu0 %v52
  %146 = vmatprep.subr.mxu0 %v49
  %147 = vmatpush1.msra.mxu0 %v48
  %148 = vmatprep.subr.mxu0 %v45
  %149 = vmatpush1.msra.mxu0 %v44
  %150 = vmatprep.subr.mxu0 %v41
  %151 = vmatpush1.msra.mxu0 %v40
  %152 = vmatprep.subr.mxu0 %v37
  %153 = vmatpush1.msra.mxu0 %v36
  %154 = vmatprep.subr.mxu0 0.0
  %155 = vmatpush2.msra.mxu0 0.0
  %156 = vmatprep.subr.mxu0 0.0
  %157 = vmatpush2.msra.mxu0 0.0
  %158 = vmatprep.subr.mxu0 0.0
  %159 = vmatpush2.msra.mxu0 0.0
  %160 = vmatprep.subr.mxu0 0.0
  %161 = vmatpush2.msra.mxu0 0.0
  %162 = vmatprep.subr.mxu0 0.0
  %163 = vmatpush2.msra.mxu0 0.0
  %164 = vmatprep.subr.mxu0 0.0
  %165 = vmatpush2.msra.mxu0 0.0
  %166 = vmatprep.subr.mxu0 0.0
  %167 = vmatpush2.msra.mxu0 0.0
  %168 = vmatprep.subr.mxu0 0.0
  %169 = vmatpush2.msra.mxu0 0.0
  %170 = vmatprep.subr.mxu0 0.0
  %171 = vmatpush2.msra.mxu0 0.0
  %172 = vmatprep.subr.mxu0 0.0
  %173 = vmatpush2.msra.mxu0 0.0
  %174 = vmatprep.subr.mxu0 0.0
  %175 = vmatpush2.msra.mxu0 0.0
  %176 = vmatprep.subr.mxu0 0.0
  %177 = vmatpush2.msra.mxu0 0.0
  %178 = vmatprep.subr.mxu0 0.0
  %179 = vmatpush2.msra.mxu0 0.0
  %180 = vmatprep.subr.mxu0 0.0
  %181 = vmatpush2.msra.mxu0 0.0
  %182 = vmatprep.subr.mxu0 0.0
  %183 = vmatpush2.msra.mxu0 0.0
  %184 = vmatprep.subr.mxu0 0.0
  %185 = vmatpush2.msra.mxu0 0.0
  %186 = vmatprep.mubr.f32.mxu0 0.0
  %187 = vmatmul.mubr.f32.gmra.mxu0 %v28
  %v188 = vpop.f32.mrf.mxu0
  %v189 = vadd.f32 %v105, %v188
  %v190 = vpop.f32.mrf.mxu0
  %v191 = vadd.f32 %v109, %v190
  %192 = vmatprep.mubr.f32.mxu0 0.0
  %193 = vmatmul.mubr.f32.gmra.mxu0 %v29
  %v194 = vpop.f32.mrf.mxu0
  %v195 = vadd.f32 %v105, %v194
  %v196 = vpop.f32.mrf.mxu0
  %v197 = vadd.f32 %v109, %v196
  %198 = vmatprep.mubr.f32.mxu0 0.0
  %199 = vmatmul.mubr.f32.gmra.mxu0 %v30
  %v200 = vpop.f32.mrf.mxu0
  %v201 = vadd.f32 %v105, %v200
  %v202 = vpop.f32.mrf.mxu0
  %v203 = vadd.f32 %v109, %v202
  %204 = vmatprep.mubr.f32.mxu0 0.0
  %205 = vmatmul.mubr.f32.gmra.mxu0 %v31
  %v206 = vpop.f32.mrf.mxu0
  %v207 = vadd.f32 %v105, %v206
  %v208 = vpop.f32.mrf.mxu0
  %v209 = vadd.f32 %v109, %v208
  %210 = vmatprep.mubr.f32.mxu0 0.0
  %211 = vmatmul.mubr.f32.gmra.mxu0 %v32
  %v212 = vpop.f32.mrf.mxu0
  %v213 = vadd.f32 %v105, %v212
  %v214 = vpop.f32.mrf.mxu0
  %v215 = vadd.f32 %v109, %v214
  %216 = vmatprep.mubr.f32.mxu0 0.0
  %217 = vmatmul.mubr.f32.gmra.mxu0 %v33
  %v218 = vpop.f32.mrf.mxu0
  %v219 = vadd.f32 %v105, %v218
  %v220 = vpop.f32.mrf.mxu0
  %v221 = vadd.f32 %v109, %v220
  %222 = vmatprep.mubr.f32.mxu0 0.0
  %223 = vmatmul.mubr.f32.gmra.mxu0 %v34
  %v224 = vpop.f32.mrf.mxu0
  %v225 = vadd.f32 %v105, %v224
  %v226 = vpop.f32.mrf.mxu0
  %v227 = vadd.f32 %v109, %v226
  %228 = vmatprep.mubr.f32.mxu0 0.0
  %229 = vmatmul.mubr.f32.gmra.mxu0 %v35
  %v230 = vpop.f32.mrf.mxu0
  %v231 = vadd.f32 %v105, %v230
  %v232 = vpop.f32.mrf.mxu0
  %v233 = vadd.f32 %v109, %v232
  %234 = vdwg.mxu0
  %235 = vmatprep.subr.mxu0 %v99
  %236 = vmatpush1.msra.mxu0 %v98
  %237 = vmatprep.subr.mxu0 %v95
  %238 = vmatpush1.msra.mxu0 %v94
  %239 = vmatprep.subr.mxu0 %v91
  %240 = vmatpush1.msra.mxu0 %v90
  %241 = vmatprep.subr.mxu0 %v87
  %242 = vmatpush1.msra.mxu0 %v86
  %243 = vmatprep.subr.mxu0 %v83
  %244 = vmatpush1.msra.mxu0 %v82
  %245 = vmatprep.subr.mxu0 %v79
  %246 = vmatpush1.msra.mxu0 %v78
  %247 = vmatprep.subr.mxu0 %v75
  %248 = vmatpush1.msra.mxu0 %v74
  %249 = vmatprep.subr.mxu0 %v71
  %250 = vmatpush1.msra.mxu0 %v70
  %251 = vmatprep.subr.mxu0 %v67
  %252 = vmatpush1.msra.mxu0 %v66
  %253 = vmatprep.subr.mxu0 %v63
  %254 = vmatpush1.msra.mxu0 %v62
  %255 = vmatprep.subr.mxu0 %v59
  %256 = vmatpush1.msra.mxu0 %v58
  %257 = vmatprep.subr.mxu0 %v55
  %258 = vmatpush1.msra.mxu0 %v54
  %259 = vmatprep.subr.mxu0 %v51
  %260 = vmatpush1.msra.mxu0 %v50
  %261 = vmatprep.subr.mxu0 %v47
  %262 = vmatpush1.msra.mxu0 %v46
  %263 = vmatprep.subr.mxu0 %v43
  %264 = vmatpush1.msra.mxu0 %v42
  %265 = vmatprep.subr.mxu0 %v39
  %266 = vmatpush1.msra.mxu0 %v38
  %267 = vmatprep.subr.mxu0 0.0
  %268 = vmatpush2.msra.mxu0 0.0
  %269 = vmatprep.subr.mxu0 0.0
  %270 = vmatpush2.msra.mxu0 0.0
  %271 = vmatprep.subr.mxu0 0.0
  %272 = vmatpush2.msra.mxu0 0.0
  %273 = vmatprep.subr.mxu0 0.0
  %274 = vmatpush2.msra.mxu0 0.0
  %275 = vmatprep.subr.mxu0 0.0
  %276 = vmatpush2.msra.mxu0 0.0
  %277 = vmatprep.subr.mxu0 0.0
  %278 = vmatpush2.msra.mxu0 0.0
  %279 = vmatprep.subr.mxu0 0.0
  %280 = vmatpush2.msra.mxu0 0.0
  %281 = vmatprep.subr.mxu0 0.0
  %282 = vmatpush2.msra.mxu0 0.0
  %283 = vmatprep.subr.mxu0 0.0
  %284 = vmatpush2.msra.mxu0 0.0
  %285 = vmatprep.subr.mxu0 0.0
  %286 = vmatpush2.msra.mxu0 0.0
  %287 = vmatprep.subr.mxu0 0.0
  %288 = vmatpush2.msra.mxu0 0.0
  %289 = vmatprep.subr.mxu0 0.0
  %290 = vmatpush2.msra.mxu0 0.0
  %291 = vmatprep.subr.mxu0 0.0
  %292 = vmatpush2.msra.mxu0 0.0
  %293 = vmatprep.subr.mxu0 0.0
  %294 = vmatpush2.msra.mxu0 0.0
  %295 = vmatprep.subr.mxu0 0.0
  %296 = vmatpush2.msra.mxu0 0.0
  %297 = vmatprep.subr.mxu0 0.0
  %298 = vmatpush2.msra.mxu0 0.0
  %299 = vmatprep.mubr.f32.mxu0 0.0
  %300 = vmatmul.mubr.f32.gmra.mxu0 %v28
  %v301 = vpop.f32.mrf.mxu0
  %v302 = vadd.f32 %v113, %v301
  %v303 = vpop.f32.mrf.mxu0
  %v304 = vadd.f32 %v117, %v303
  %305 = vmatprep.mubr.f32.mxu0 0.0
  %306 = vmatmul.mubr.f32.gmra.mxu0 %v29
  %v307 = vpop.f32.mrf.mxu0
  %v308 = vadd.f32 %v113, %v307
  %v309 = vpop.f32.mrf.mxu0
  %v310 = vadd.f32 %v117, %v309
  %311 = vmatprep.mubr.f32.mxu0 0.0
  %312 = vmatmul.mubr.f32.gmra.mxu0 %v30
  %v313 = vpop.f32.mrf.mxu0
  %v314 = vadd.f32 %v113, %v313
  %v315 = vpop.f32.mrf.mxu0
  %v316 = vadd.f32 %v117, %v315
  %317 = vmatprep.mubr.f32.mxu0 0.0
  %318 = vmatmul.mubr.f32.gmra.mxu0 %v31
  %v319 = vpop.f32.mrf.mxu0
  %v320 = vadd.f32 %v113, %v319
  %v321 = vpop.f32.mrf.mxu0
  %v322 = vadd.f32 %v117, %v321
  %323 = vmatprep.mubr.f32.mxu0 0.0
  %324 = vmatmul.mubr.f32.gmra.mxu0 %v32
  %v325 = vpop.f32.mrf.mxu0
  %v326 = vadd.f32 %v113, %v325
  %v327 = vpop.f32.mrf.mxu0
  %v328 = vadd.f32 %v117, %v327
  %329 = vmatprep.mubr.f32.mxu0 0.0
  %330 = vmatmul.mubr.f32.gmra.mxu0 %v33
  %v331 = vpop.f32.mrf.mxu0
  %v332 = vadd.f32 %v113, %v331
  %v333 = vpop.f32.mrf.mxu0
  %v334 = vadd.f32 %v117, %v333
  %335 = vmatprep.mubr.f32.mxu0 0.0
  %336 = vmatmul.mubr.f32.gmra.mxu0 %v34
  %v337 = vpop.f32.mrf.mxu0
  %v338 = vadd.f32 %v113, %v337
  %v339 = vpop.f32.mrf.mxu0
  %v340 = vadd.f32 %v117, %v339
  %341 = vmatprep.mubr.f32.mxu0 0.0
  %342 = vmatmul.mubr.f32.gmra.mxu0 %v35
  %v343 = vpop.f32.mrf.mxu0
  %v344 = vadd.f32 %v113, %v343
  %v345 = vpop.f32.mrf.mxu0
  %v346 = vadd.f32 %v117, %v345
  %347 = vdwg.mxu0
  %348 = vst [vmem:[#allocation2] sm:$0xff] %v189
  %349 = vst [vmem:[#allocation2 + $0x8] sm:$0xff] %v191
  %350 = vst [vmem:[#allocation2 + $0x10] sm:$0xff] %v302
  %351 = vst [vmem:[#allocation2 + $0x18] sm:$0xff] %v304
  %352 = vst [vmem:[#allocation2 + $0x20] sm:$0xff] %v195
  %353 = vst [vmem:[#allocation2 + $0x28] sm:$0xff] %v197
  %354 = vst [vmem:[#allocation2 + $0x30] sm:$0xff] %v308
  %355 = vst [vmem:[#allocation2 + $0x38] sm:$0xff] %v310
  %356 = vst [vmem:[#allocation2 + $0x40] sm:$0xff] %v201
  %357 = vst [vmem:[#allocation2 + $0x48] sm:$0xff] %v203
  %358 = vst [vmem:[#allocation2 + $0x50] sm:$0xff] %v314
  %359 = vst [vmem:[#allocation2 + $0x58] sm:$0xff] %v316
  %360 = vst [vmem:[#allocation2 + $0x60] sm:$0xff] %v207
  %361 = vst [vmem:[#allocation2 + $0x68] sm:$0xff] %v209
  %362 = vst [vmem:[#allocation2 + $0x70] sm:$0xff] %v320
  %363 = vst [vmem:[#allocation2 + $0x78] sm:$0xff] %v322
  %364 = vst [vmem:[#allocation2 + $0x80] sm:$0xff] %v213
  %365 = vst [vmem:[#allocation2 + $0x88] sm:$0xff] %v215
  %366 = vst [vmem:[#allocation2 + $0x90] sm:$0xff] %v326
  %367 = vst [vmem:[#allocation2 + $0x98] sm:$0xff] %v328
  %368 = vst [vmem:[#allocation2 + $0xa0] sm:$0xff] %v219
  %369 = vst [vmem:[#allocation2 + $0xa8] sm:$0xff] %v221
  %370 = vst [vmem:[#allocation2 + $0xb0] sm:$0xff] %v332
  %371 = vst [vmem:[#allocation2 + $0xb8] sm:$0xff] %v334
  %372 = vst [vmem:[#allocation2 + $0xc0] sm:$0xff] %v225
  %373 = vst [vmem:[#allocation2 + $0xc8] sm:$0xff] %v227
  %374 = vst [vmem:[#allocation2 + $0xd0] sm:$0xff] %v338
  %375 = vst [vmem:[#allocation2 + $0xd8] sm:$0xff] %v340
  %376 = vst [vmem:[#allocation2 + $0xe0] sm:$0xff] %v231
  %377 = vst [vmem:[#allocation2 + $0xe8] sm:$0xff] %v233
  %378 = vst [vmem:[#allocation2 + $0xf0] sm:$0xff] %v344
  %379 = vst [vmem:[#allocation2 + $0xf8] sm:$0xff] %v346
  %s380 = smul.u32 0, 4
  %s381 = smul.addr %s380, 8
  %s382 = scalar_lea.vmem [#allocation2], %s381
  %v383 = vld [vmem:[%s382] sm:$0xff]
  %v384 = vld [vmem:[%s382 + $0x8] sm:$0xff]
  %v385 = vld [vmem:[%s382 + $0x10] sm:$0xff]
  %v386 = vld [vmem:[%s382 + $0x18] sm:$0xff]
  %v387 = vld [vmem:[%s2] sm:$0xff]
  %v388 = vld [vmem:[%s2 + $0x8] sm:$0xff]
  %v389 = vld [vmem:[%s2 + $0x10] sm:$0xff]
  %v390 = vld [vmem:[%s2 + $0x18] sm:$0xff]
  %v391 = vld [vmem:[%s2 + $0x20] sm:$0xff]
  %v392 = vld [vmem:[%s2 + $0x28] sm:$0xff]
  %v393 = vld [vmem:[%s2 + $0x30] sm:$0xff]
  %v394 = vld [vmem:[%s2 + $0x38] sm:$0xff]
  %v395 = vld [vmem:[%s2 + $0x40] sm:$0xff]
  %v396 = vld [vmem:[%s2 + $0x48] sm:$0xff]
  %v397 = vld [vmem:[%s2 + $0x50] sm:$0xff]
  %v398 = vld [vmem:[%s2 + $0x58] sm:$0xff]
  %v399 = vld [vmem:[%s2 + $0x60] sm:$0xff]
  %v400 = vld [vmem:[%s2 + $0x68] sm:$0xff]
  %v401 = vld [vmem:[%s2 + $0x70] sm:$0xff]
  %v402 = vld [vmem:[%s2 + $0x78] sm:$0xff]
  %v403 = vld [vmem:[%s2 + $0x80] sm:$0xff]
  %v404 = vld [vmem:[%s2 + $0x88] sm:$0xff]
  %v405 = vld [vmem:[%s2 + $0x90] sm:$0xff]
  %v406 = vld [vmem:[%s2 + $0x98] sm:$0xff]
  %v407 = vld [vmem:[%s2 + $0xa0] sm:$0xff]
  %v408 = vld [vmem:[%s2 + $0xa8] sm:$0xff]
  %v409 = vld [vmem:[%s2 + $0xb0] sm:$0xff]
  %v410 = vld [vmem:[%s2 + $0xb8] sm:$0xff]
  %v411 = vld [vmem:[%s2 + $0xc0] sm:$0xff]
  %v412 = vld [vmem:[%s2 + $0xc8] sm:$0xff]
  %v413 = vld [vmem:[%s2 + $0xd0] sm:$0xff]
  %v414 = vld [vmem:[%s2 + $0xd8] sm:$0xff]
  %v415 = vld [vmem:[%s2 + $0xe0] sm:$0xff]
  %v416 = vld [vmem:[%s2 + $0xe8] sm:$0xff]
  %v417 = vld [vmem:[%s2 + $0xf0] sm:$0xff]
  %v418 = vld [vmem:[%s2 + $0xf8] sm:$0xff]
  %v419 = vld [vmem:[%s2 + $0x100] sm:$0xff]
  %v420 = vld [vmem:[%s2 + $0x108] sm:$0xff]
  %v421 = vld [vmem:[%s2 + $0x110] sm:$0xff]
  %v422 = vld [vmem:[%s2 + $0x118] sm:$0xff]
  %v423 = vld [vmem:[%s2 + $0x120] sm:$0xff]
  %v424 = vld [vmem:[%s2 + $0x128] sm:$0xff]
  %v425 = vld [vmem:[%s2 + $0x130] sm:$0xff]
  %v426 = vld [vmem:[%s2 + $0x138] sm:$0xff]
  %v427 = vld [vmem:[%s2 + $0x140] sm:$0xff]
  %v428 = vld [vmem:[%s2 + $0x148] sm:$0xff]
  %v429 = vld [vmem:[%s2 + $0x150] sm:$0xff]
  %v430 = vld [vmem:[%s2 + $0x158] sm:$0xff]
  %v431 = vld [vmem:[%s2 + $0x160] sm:$0xff]
  %v432 = vld [vmem:[%s2 + $0x168] sm:$0xff]
  %v433 = vld [vmem:[%s2 + $0x170] sm:$0xff]
  %v434 = vld [vmem:[%s2 + $0x178] sm:$0xff]
  %v435 = vld [vmem:[%s2 + $0x180] sm:$0xff]
  %v436 = vld [vmem:[%s2 + $0x188] sm:$0xff]
  %v437 = vld [vmem:[%s2 + $0x190] sm:$0xff]
  %v438 = vld [vmem:[%s2 + $0x198] sm:$0xff]
  %v439 = vld [vmem:[%s2 + $0x1a0] sm:$0xff]
  %v440 = vld [vmem:[%s2 + $0x1a8] sm:$0xff]
  %v441 = vld [vmem:[%s2 + $0x1b0] sm:$0xff]
  %v442 = vld [vmem:[%s2 + $0x1b8] sm:$0xff]
  %v443 = vld [vmem:[%s2 + $0x1c0] sm:$0xff]
  %v444 = vld [vmem:[%s2 + $0x1c8] sm:$0xff]
  %v445 = vld [vmem:[%s2 + $0x1d0] sm:$0xff]
  %v446 = vld [vmem:[%s2 + $0x1d8] sm:$0xff]
  %v447 = vld [vmem:[%s2 + $0x1e0] sm:$0xff]
  %v448 = vld [vmem:[%s2 + $0x1e8] sm:$0xff]
  %v449 = vld [vmem:[%s2 + $0x1f0] sm:$0xff]
  %v450 = vld [vmem:[%s2 + $0x1f8] sm:$0xff]
  %451 = vmatprep.subr.mxu0 %v448
  %452 = vmatpush1.msra.mxu0 %v447
  %453 = vmatprep.subr.mxu0 %v444
  %454 = vmatpush1.msra.mxu0 %v443
  %455 = vmatprep.subr.mxu0 %v440
  %456 = vmatpush1.msra.mxu0 %v439
  %457 = vmatprep.subr.mxu0 %v436
  %458 = vmatpush1.msra.mxu0 %v435
  %459 = vmatprep.subr.mxu0 %v432
  %460 = vmatpush1.msra.mxu0 %v431
  %461 = vmatprep.subr.mxu0 %v428
  %462 = vmatpush1.msra.mxu0 %v427
  %463 = vmatprep.subr.mxu0 %v424
  %464 = vmatpush1.msra.mxu0 %v423
  %465 = vmatprep.subr.mxu0 %v420
  %466 = vmatpush1.msra.mxu0 %v419
  %467 = vmatprep.subr.mxu0 %v416
  %468 = vmatpush1.msra.mxu0 %v415
  %469 = vmatprep.subr.mxu0 %v412
  %470 = vmatpush1.msra.mxu0 %v411
  %471 = vmatprep.subr.mxu0 %v408
  %472 = vmatpush1.msra.mxu0 %v407
  %473 = vmatprep.subr.mxu0 %v404
  %474 = vmatpush1.msra.mxu0 %v403
  %475 = vmatprep.subr.mxu0 %v400
  %476 = vmatpush1.msra.mxu0 %v399
  %477 = vmatprep.subr.mxu0 %v396
  %478 = vmatpush1.msra.mxu0 %v395
  %479 = vmatprep.subr.mxu0 %v392
  %480 = vmatpush1.msra.mxu0 %v391
  %481 = vmatprep.subr.mxu0 %v388
  %482 = vmatpush1.msra.mxu0 %v387
  %483 = vmatprep.subr.mxu0 0.0
  %484 = vmatpush2.msra.mxu0 0.0
  %485 = vmatprep.subr.mxu0 0.0
  %486 = vmatpush2.msra.mxu0 0.0
  %487 = vmatprep.subr.mxu0 0.0
  %488 = vmatpush2.msra.mxu0 0.0
  %489 = vmatprep.subr.mxu0 0.0
  %490 = vmatpush2.msra.mxu0 0.0
  %491 = vmatprep.subr.mxu0 0.0
  %492 = vmatpush2.msra.mxu0 0.0
  %493 = vmatprep.subr.mxu0 0.0
  %494 = vmatpush2.msra.mxu0 0.0
  %495 = vmatprep.subr.mxu0 0.0
  %496 = vmatpush2.msra.mxu0 0.0
  %497 = vmatprep.subr.mxu0 0.0
  %498 = vmatpush2.msra.mxu0 0.0
  %499 = vmatprep.subr.mxu0 0.0
  %500 = vmatpush2.msra.mxu0 0.0
  %501 = vmatprep.subr.mxu0 0.0
  %502 = vmatpush2.msra.mxu0 0.0
  %503 = vmatprep.subr.mxu0 0.0
  %504 = vmatpush2.msra.mxu0 0.0
  %505 = vmatprep.subr.mxu0 0.0
  %506 = vmatpush2.msra.mxu0 0.0
  %507 = vmatprep.subr.mxu0 0.0
  %508 = vmatpush2.msra.mxu0 0.0
  %509 = vmatprep.subr.mxu0 0.0
  %510 = vmatpush2.msra.mxu0 0.0
  %511 = vmatprep.subr.mxu0 0.0
  %512 = vmatpush2.msra.mxu0 0.0
  %513 = vmatprep.subr.mxu0 0.0
  %514 = vmatpush2.msra.mxu0 0.0
  %515 = vmatprep.mubr.f32.mxu0 0.0
  %516 = vmatmul.mubr.f32.gmra.mxu0 0.0
  %v517 = vpop.f32.mrf.mxu0
  %v518 = vadd.f32 0.0, %v517
  %v519 = vpop.f32.mrf.mxu0
  %v520 = vadd.f32 0.0, %v519
  %521 = vdwg.mxu0
  %522 = vmatprep.subr.mxu0 %v450
  %523 = vmatpush1.msra.mxu0 %v449
  %524 = vmatprep.subr.mxu0 %v446
  %525 = vmatpush1.msra.mxu0 %v445
  %526 = vmatprep.subr.mxu0 %v442
  %527 = vmatpush1.msra.mxu0 %v441
  %528 = vmatprep.subr.mxu0 %v438
  %529 = vmatpush1.msra.mxu0 %v437
  %530 = vmatprep.subr.mxu0 %v434
  %531 = vmatpush1.msra.mxu0 %v433
  %532 = vmatprep.subr.mxu0 %v430
  %533 = vmatpush1.msra.mxu0 %v429
  %534 = vmatprep.subr.mxu0 %v426
  %535 = vmatpush1.msra.mxu0 %v425
  %536 = vmatprep.subr.mxu0 %v422
  %537 = vmatpush1.msra.mxu0 %v421
  %538 = vmatprep.subr.mxu0 %v418
  %539 = vmatpush1.msra.mxu0 %v417
  %540 = vmatprep.subr.mxu0 %v414
  %541 = vmatpush1.msra.mxu0 %v413
  %542 = vmatprep.subr.mxu0 %v410
  %543 = vmatpush1.msra.mxu0 %v409
  %544 = vmatprep.subr.mxu0 %v406
  %545 = vmatpush1.msra.mxu0 %v405
  %546 = vmatprep.subr.mxu0 %v402
  %547 = vmatpush1.msra.mxu0 %v401
  %548 = vmatprep.subr.mxu0 %v398
  %549 = vmatpush1.msra.mxu0 %v397
  %550 = vmatprep.subr.mxu0 %v394
  %551 = vmatpush1.msra.mxu0 %v393
  %552 = vmatprep.subr.mxu0 %v390
  %553 = vmatpush1.msra.mxu0 %v389
  %554 = vmatprep.subr.mxu0 0.0
  %555 = vmatpush2.msra.mxu0 0.0
  %556 = vmatprep.subr.mxu0 0.0
  %557 = vmatpush2.msra.mxu0 0.0
  %558 = vmatprep.subr.mxu0 0.0
  %559 = vmatpush2.msra.mxu0 0.0
  %560 = vmatprep.subr.mxu0 0.0
  %561 = vmatpush2.msra.mxu0 0.0
  %562 = vmatprep.subr.mxu0 0.0
  %563 = vmatpush2.msra.mxu0 0.0
  %564 = vmatprep.subr.mxu0 0.0
  %565 = vmatpush2.msra.mxu0 0.0
  %566 = vmatprep.subr.mxu0 0.0
  %567 = vmatpush2.msra.mxu0 0.0
  %568 = vmatprep.subr.mxu0 0.0
  %569 = vmatpush2.msra.mxu0 0.0
  %570 = vmatprep.subr.mxu0 0.0
  %571 = vmatpush2.msra.mxu0 0.0
  %572 = vmatprep.subr.mxu0 0.0
  %573 = vmatpush2.msra.mxu0 0.0
  %574 = vmatprep.subr.mxu0 0.0
  %575 = vmatpush2.msra.mxu0 0.0
  %576 = vmatprep.subr.mxu0 0.0
  %577 = vmatpush2.msra.mxu0 0.0
  %578 = vmatprep.subr.mxu0 0.0
  %579 = vmatpush2.msra.mxu0 0.0
  %580 = vmatprep.subr.mxu0 0.0
  %581 = vmatpush2.msra.mxu0 0.0
  %582 = vmatprep.subr.mxu0 0.0
  %583 = vmatpush2.msra.mxu0 0.0
  %584 = vmatprep.subr.mxu0 0.0
  %585 = vmatpush2.msra.mxu0 0.0
  %586 = vmatprep.mubr.f32.mxu0 0.0
  %587 = vmatmul.mubr.f32.gmra.mxu0 0.0
  %v588 = vpop.f32.mrf.mxu0
  %v589 = vadd.f32 0.0, %v588
  %v590 = vpop.f32.mrf.mxu0
  %v591 = vadd.f32 0.0, %v590
  %592 = vdwg.mxu0
  %v593 = vadd.f32 %v383, %v518
  %v594 = vadd.f32 %v384, %v520
  %v595 = vadd.f32 %v385, %v589
  %v596 = vadd.f32 %v386, %v591
  %v597 = vxor.u32 %v593, 2147483648
  %v598 = vmul.f32 %v597, 1.442695
  %v599 = vpow.pop %v598
  %v600 = vadd.f32 %v599, 1.0
  %v601 = vrcp.pop %v600
  %v602 = vmul.f32 1.0, %v601
  %v603 = vxor.u32 %v594, 2147483648
  %v604 = vmul.f32 %v603, 1.442695
  %v605 = vpow.pop %v604
  %v606 = vadd.f32 %v605, 1.0
  %v607 = vrcp.pop %v606
  %v608 = vmul.f32 1.0, %v607
  %v609 = vtanh.pop %v595
  %v610 = vxor.u32 %v596, 2147483648
  %v611 = vmul.f32 %v610, 1.442695
  %v612 = vpow.pop %v611
  %v613 = vadd.f32 %v612, 1.0
  %v614 = vrcp.pop %v613
  %v615 = vmul.f32 1.0, %v614
  %v616 = vmul.f32 %v608, 0.0
  %v617 = vmul.f32 %v602, %v609
  %v618 = vadd.f32 %v616, %v617
  %v619 = vtanh.pop %v618
  %v620 = vmul.f32 %v615, %v619
  %621 = vst [vmem:[#allocation3] sm:$0xff] %v620
  %s622 = smul.u32 1, 4
  %s623 = smul.addr %s622, 8
  %s624 = scalar_lea.vmem [#allocation2], %s623
  %v625 = vld [vmem:[%s624] sm:$0xff]
  %v626 = vld [vmem:[%s624 + $0x8] sm:$0xff]
  %v627 = vld [vmem:[%s624 + $0x10] sm:$0xff]
  %v628 = vld [vmem:[%s624 + $0x18] sm:$0xff]
  %v629 = vld [vmem:[%s2] sm:$0xff]
  %v630 = vld [vmem:[%s2 + $0x8] sm:$0xff]
  %v631 = vld [vmem:[%s2 + $0x10] sm:$0xff]
  %v632 = vld [vmem:[%s2 + $0x18] sm:$0xff]
  %v633 = vld [vmem:[%s2 + $0x20] sm:$0xff]
  %v634 = vld [vmem:[%s2 + $0x28] sm:$0xff]
  %v635 = vld [vmem:[%s2 + $0x30] sm:$0xff]
  %v636 = vld [vmem:[%s2 + $0x38] sm:$0xff]
  %v637 = vld [vmem:[%s2 + $0x40] sm:$0xff]
  %v638 = vld [vmem:[%s2 + $0x48] sm:$0xff]
  %v639 = vld [vmem:[%s2 + $0x50] sm:$0xff]
  %v640 = vld [vmem:[%s2 + $0x58] sm:$0xff]
  %v641 = vld [vmem:[%s2 + $0x60] sm:$0xff]
  %v642 = vld [vmem:[%s2 + $0x68] sm:$0xff]
  %v643 = vld [vmem:[%s2 + $0x70] sm:$0xff]
  %v644 = vld [vmem:[%s2 + $0x78] sm:$0xff]
  %v645 = vld [vmem:[%s2 + $0x80] sm:$0xff]
  %v646 = vld [vmem:[%s2 + $0x88] sm:$0xff]
  %v647 = vld [vmem:[%s2 + $0x90] sm:$0xff]
  %v648 = vld [vmem:[%s2 + $0x98] sm:$0xff]
  %v649 = vld [vmem:[%s2 + $0xa0] sm:$0xff]
  %v650 = vld [vmem:[%s2 + $0xa8] sm:$0xff]
  %v651 = vld [vmem:[%s2 + $0xb0] sm:$0xff]
  %v652 = vld [vmem:[%s2 + $0xb8] sm:$0xff]
  %v653 = vld [vmem:[%s2 + $0xc0] sm:$0xff]
  %v654 = vld [vmem:[%s2 + $0xc8] sm:$0xff]
  %v655 = vld [vmem:[%s2 + $0xd0] sm:$0xff]
  %v656 = vld [vmem:[%s2 + $0xd8] sm:$0xff]
  %v657 = vld [vmem:[%s2 + $0xe0] sm:$0xff]
  %v658 = vld [vmem:[%s2 + $0xe8] sm:$0xff]
  %v659 = vld [vmem:[%s2 + $0xf0] sm:$0xff]
  %v660 = vld [vmem:[%s2 + $0xf8] sm:$0xff]
  %v661 = vld [vmem:[%s2 + $0x100] sm:$0xff]
  %v662 = vld [vmem:[%s2 + $0x108] sm:$0xff]
  %v663 = vld [vmem:[%s2 + $0x110] sm:$0xff]
  %v664 = vld [vmem:[%s2 + $0x118] sm:$0xff]
  %v665 = vld [vmem:[%s2 + $0x120] sm:$0xff]
  %v666 = vld [vmem:[%s2 + $0x128] sm:$0xff]
  %v667 = vld [vmem:[%s2 + $0x130] sm:$0xff]
  %v668 = vld [vmem:[%s2 + $0x138] sm:$0xff]
  %v669 = vld [vmem:[%s2 + $0x140] sm:$0xff]
  %v670 = vld [vmem:[%s2 + $0x148] sm:$0xff]
  %v671 = vld [vmem:[%s2 + $0x150] sm:$0xff]
  %v672 = vld [vmem:[%s2 + $0x158] sm:$0xff]
  %v673 = vld [vmem:[%s2 + $0x160] sm:$0xff]
  %v674 = vld [vmem:[%s2 + $0x168] sm:$0xff]
  %v675 = vld [vmem:[%s2 + $0x170] sm:$0xff]
  %v676 = vld [vmem:[%s2 + $0x178] sm:$0xff]
  %v677 = vld [vmem:[%s2 + $0x180] sm:$0xff]
  %v678 = vld [vmem:[%s2 + $0x188] sm:$0xff]
  %v679 = vld [vmem:[%s2 + $0x190] sm:$0xff]
  %v680 = vld [vmem:[%s2 + $0x198] sm:$0xff]
  %v681 = vld [vmem:[%s2 + $0x1a0] sm:$0xff]
  %v682 = vld [vmem:[%s2 + $0x1a8] sm:$0xff]
  %v683 = vld [vmem:[%s2 + $0x1b0] sm:$0xff]
  %v684 = vld [vmem:[%s2 + $0x1b8] sm:$0xff]
  %v685 = vld [vmem:[%s2 + $0x1c0] sm:$0xff]
  %v686 = vld [vmem:[%s2 + $0x1c8] sm:$0xff]
  %v687 = vld [vmem:[%s2 + $0x1d0] sm:$0xff]
  %v688 = vld [vmem:[%s2 + $0x1d8] sm:$0xff]
  %v689 = vld [vmem:[%s2 + $0x1e0] sm:$0xff]
  %v690 = vld [vmem:[%s2 + $0x1e8] sm:$0xff]
  %v691 = vld [vmem:[%s2 + $0x1f0] sm:$0xff]
  %v692 = vld [vmem:[%s2 + $0x1f8] sm:$0xff]
  %693 = vmatprep.subr.mxu0 %v690
  %694 = vmatpush1.msra.mxu0 %v689
  %695 = vmatprep.subr.mxu0 %v686
  %696 = vmatpush1.msra.mxu0 %v685
  %697 = vmatprep.subr.mxu0 %v682
  %698 = vmatpush1.msra.mxu0 %v681
  %699 = vmatprep.subr.mxu0 %v678
  %700 = vmatpush1.msra.mxu0 %v677
  %701 = vmatprep.subr.mxu0 %v674
  %702 = vmatpush1.msra.mxu0 %v673
  %703 = vmatprep.subr.mxu0 %v670
  %704 = vmatpush1.msra.mxu0 %v669
  %705 = vmatprep.subr.mxu0 %v666
  %706 = vmatpush1.msra.mxu0 %v665
  %707 = vmatprep.subr.mxu0 %v662
  %708 = vmatpush1.msra.mxu0 %v661
  %709 = vmatprep.subr.mxu0 %v658
  %710 = vmatpush1.msra.mxu0 %v657
  %711 = vmatprep.subr.mxu0 %v654
  %712 = vmatpush1.msra.mxu0 %v653
  %713 = vmatprep.subr.mxu0 %v650
  %714 = vmatpush1.msra.mxu0 %v649
  %715 = vmatprep.subr.mxu0 %v646
  %716 = vmatpush1.msra.mxu0 %v645
  %717 = vmatprep.subr.mxu0 %v642
  %718 = vmatpush1.msra.mxu0 %v641
  %719 = vmatprep.subr.mxu0 %v638
  %720 = vmatpush1.msra.mxu0 %v637
  %721 = vmatprep.subr.mxu0 %v634
  %722 = vmatpush1.msra.mxu0 %v633
  %723 = vmatprep.subr.mxu0 %v630
  %724 = vmatpush1.msra.mxu0 %v629
  %725 = vmatprep.subr.mxu0 0.0
  %726 = vmatpush2.msra.mxu0 0.0
  %727 = vmatprep.subr.mxu0 0.0
  %728 = vmatpush2.msra.mxu0 0.0
  %729 = vmatprep.subr.mxu0 0.0
  %730 = vmatpush2.msra.mxu0 0.0
  %731 = vmatprep.subr.mxu0 0.0
  %732 = vmatpush2.msra.mxu0 0.0
  %733 = vmatprep.subr.mxu0 0.0
  %734 = vmatpush2.msra.mxu0 0.0
  %735 = vmatprep.subr.mxu0 0.0
  %736 = vmatpush2.msra.mxu0 0.0
  %737 = vmatprep.subr.mxu0 0.0
  %738 = vmatpush2.msra.mxu0 0.0
  %739 = vmatprep.subr.mxu0 0.0
  %740 = vmatpush2.msra.mxu0 0.0
  %741 = vmatprep.subr.mxu0 0.0
  %742 = vmatpush2.msra.mxu0 0.0
  %743 = vmatprep.subr.mxu0 0.0
  %744 = vmatpush2.msra.mxu0 0.0
  %745 = vmatprep.subr.mxu0 0.0
  %746 = vmatpush2.msra.mxu0 0.0
  %747 = vmatprep.subr.mxu0 0.0
  %748 = vmatpush2.msra.mxu0 0.0
  %749 = vmatprep.subr.mxu0 0.0
  %750 = vmatpush2.msra.mxu0 0.0
  %751 = vmatprep.subr.mxu0 0.0
  %752 = vmatpush2.msra.mxu0 0.0
  %753 = vmatprep.subr.mxu0 0.0
  %754 = vmatpush2.msra.mxu0 0.0
  %755 = vmatprep.subr.mxu0 0.0
  %756 = vmatpush2.msra.mxu0 0.0
  %757 = vmatprep.mubr.f32.mxu0 0.0
  %758 = vmatmul.mubr.f32.gmra.mxu0 %v620
  %v759 = vpop.f32.mrf.mxu0
  %v760 = vadd.f32 0.0, %v759
  %v761 = vpop.f32.mrf.mxu0
  %v762 = vadd.f32 0.0, %v761
  %763 = vdwg.mxu0
  %764 = vmatprep.subr.mxu0 %v692
  %765 = vmatpush1.msra.mxu0 %v691
  %766 = vmatprep.subr.mxu0 %v688
  %767 = vmatpush1.msra.mxu0 %v687
  %768 = vmatprep.subr.mxu0 %v684
  %769 = vmatpush1.msra.mxu0 %v683
  %770 = vmatprep.subr.mxu0 %v680
  %771 = vmatpush1.msra.mxu0 %v679
  %772 = vmatprep.subr.mxu0 %v676
  %773 = vmatpush1.msra.mxu0 %v675
  %774 = vmatprep.subr.mxu0 %v672
  %775 = vmatpush1.msra.mxu0 %v671
  %776 = vmatprep.subr.mxu0 %v668
  %777 = vmatpush1.msra.mxu0 %v667
  %778 = vmatprep.subr.mxu0 %v664
  %779 = vmatpush1.msra.mxu0 %v663
  %780 = vmatprep.subr.mxu0 %v660
  %781 = vmatpush1.msra.mxu0 %v659
  %782 = vmatprep.subr.mxu0 %v656
  %783 = vmatpush1.msra.mxu0 %v655
  %784 = vmatprep.subr.mxu0 %v652
  %785 = vmatpush1.msra.mxu0 %v651
  %786 = vmatprep.subr.mxu0 %v648
  %787 = vmatpush1.msra.mxu0 %v647
  %788 = vmatprep.subr.mxu0 %v644
  %789 = vmatpush1.msra.mxu0 %v643
  %790 = vmatprep.subr.mxu0 %v640
  %791 = vmatpush1.msra.mxu0 %v639
  %792 = vmatprep.subr.mxu0 %v636
  %793 = vmatpush1.msra.mxu0 %v635
  %794 = vmatprep.subr.mxu0 %v632
  %795 = vmatpush1.msra.mxu0 %v631
  %796 = vmatprep.subr.mxu0 0.0
  %797 = vmatpush2.msra.mxu0 0.0
  %798 = vmatprep.subr.mxu0 0.0
  %799 = vmatpush2.msra.mxu0 0.0
  %800 = vmatprep.subr.mxu0 0.0
  %801 = vmatpush2.msra.mxu0 0.0
  %802 = vmatprep.subr.mxu0 0.0
  %803 = vmatpush2.msra.mxu0 0.0
  %804 = vmatprep.subr.mxu0 0.0
  %805 = vmatpush2.msra.mxu0 0.0
  %806 = vmatprep.subr.mxu0 0.0
  %807 = vmatpush2.msra.mxu0 0.0
  %808 = vmatprep.subr.mxu0 0.0
  %809 = vmatpush2.msra.mxu0 0.0
  %810 = vmatprep.subr.mxu0 0.0
  %811 = vmatpush2.msra.mxu0 0.0
  %812 = vmatprep.subr.mxu0 0.0
  %813 = vmatpush2.msra.mxu0 0.0
  %814 = vmatprep.subr.mxu0 0.0
  %815 = vmatpush2.msra.mxu0 0.0
  %816 = vmatprep.subr.mxu0 0.0
  %817 = vmatpush2.msra.mxu0 0.0
  %818 = vmatprep.subr.mxu0 0.0
  %819 = vmatpush2.msra.mxu0 0.0
  %820 = vmatprep.subr.mxu0 0.0
  %821 = vmatpush2.msra.mxu0 0.0
  %822 = vmatprep.subr.mxu0 0.0
  %823 = vmatpush2.msra.mxu0 0.0
  %824 = vmatprep.subr.mxu0 0.0
  %825 = vmatpush2.msra.mxu0 0.0
  %826 = vmatprep.subr.mxu0 0.0
  %827 = vmatpush2.msra.mxu0 0.0
  %828 = vmatprep.mubr.f32.mxu0 0.0
  %829 = vmatmul.mubr.f32.gmra.mxu0 %v620
  %v830 = vpop.f32.mrf.mxu0
  %v831 = vadd.f32 0.0, %v830
  %v832 = vpop.f32.mrf.mxu0
  %v833 = vadd.f32 0.0, %v832
  %834 = vdwg.mxu0
  %v835 = vadd.f32 %v625, %v760
  %v836 = vadd.f32 %v626, %v762
  %v837 = vadd.f32 %v627, %v831
  %v838 = vadd.f32 %v628, %v833
  %v839 = vxor.u32 %v835, 2147483648
  %v840 = vmul.f32 %v839, 1.442695
  %v841 = vpow.pop %v840
  %v842 = vadd.f32 %v841, 1.0
  %v843 = vrcp.pop %v842
  %v844 = vmul.f32 1.0, %v843
  %v845 = vxor.u32 %v836, 2147483648
  %v846 = vmul.f32 %v845, 1.442695
  %v847 = vpow.pop %v846
  %v848 = vadd.f32 %v847, 1.0
  %v849 = vrcp.pop %v848
  %v850 = vmul.f32 1.0, %v849
  %v851 = vtanh.pop %v837
  %v852 = vxor.u32 %v838, 2147483648
  %v853 = vmul.f32 %v852, 1.442695
  %v854 = vpow.pop %v853
  %v855 = vadd.f32 %v854, 1.0
  %v856 = vrcp.pop %v855
  %v857 = vmul.f32 1.0, %v856
  %v858 = vmul.f32 %v850, %v618
  %v859 = vmul.f32 %v844, %v851
  %v860 = vadd.f32 %v858, %v859
  %v861 = vtanh.pop %v860
  %v862 = vmul.f32 %v857, %v861
  %s863 = scalar_lea.vmem [#allocation3], 8
  %864 = vst [vmem:[%s863] sm:$0xff] %v862
  %s865 = smul.u32 2, 4
  %s866 = smul.addr %s865, 8
  %s867 = scalar_lea.vmem [#allocation2], %s866
  %v868 = vld [vmem:[%s867] sm:$0xff]
  %v869 = vld [vmem:[%s867 + $0x8] sm:$0xff]
  %v870 = vld [vmem:[%s867 + $0x10] sm:$0xff]
  %v871 = vld [vmem:[%s867 + $0x18] sm:$0xff]
  %v872 = vld [vmem:[%s2] sm:$0xff]
  %v873 = vld [vmem:[%s2 + $0x8] sm:$0xff]
  %v874 = vld [vmem:[%s2 + $0x10] sm:$0xff]
  %v875 = vld [vmem:[%s2 + $0x18] sm:$0xff]
  %v876 = vld [vmem:[%s2 + $0x20] sm:$0xff]
  %v877 = vld [vmem:[%s2 + $0x28] sm:$0xff]
  %v878 = vld [vmem:[%s2 + $0x30] sm:$0xff]
  %v879 = vld [vmem:[%s2 + $0x38] sm:$0xff]
  %v880 = vld [vmem:[%s2 + $0x40] sm:$0xff]
  %v881 = vld [vmem:[%s2 + $0x48] sm:$0xff]
  %v882 = vld [vmem:[%s2 + $0x50] sm:$0xff]
  %v883 = vld [vmem:[%s2 + $0x58] sm:$0xff]
  %v884 = vld [vmem:[%s2 + $0x60] sm:$0xff]
  %v885 = vld [vmem:[%s2 + $0x68] sm:$0xff]
  %v886 = vld [vmem:[%s2 + $0x70] sm:$0xff]
  %v887 = vld [vmem:[%s2 + $0x78] sm:$0xff]
  %v888 = vld [vmem:[%s2 + $0x80] sm:$0xff]
  %v889 = vld [vmem:[%s2 + $0x88] sm:$0xff]
  %v890 = vld [vmem:[%s2 + $0x90] sm:$0xff]
  %v891 = vld [vmem:[%s2 + $0x98] sm:$0xff]
  %v892 = vld [vmem:[%s2 + $0xa0] sm:$0xff]
  %v893 = vld [vmem:[%s2 + $0xa8] sm:$0xff]
  %v894 = vld [vmem:[%s2 + $0xb0] sm:$0xff]
  %v895 = vld [vmem:[%s2 + $0xb8] sm:$0xff]
  %v896 = vld [vmem:[%s2 + $0xc0] sm:$0xff]
  %v897 = vld [vmem:[%s2 + $0xc8] sm:$0xff]
  %v898 = vld [vmem:[%s2 + $0xd0] sm:$0xff]
  %v899 = vld [vmem:[%s2 + $0xd8] sm:$0xff]
  %v900 = vld [vmem:[%s2 + $0xe0] sm:$0xff]
  %v901 = vld [vmem:[%s2 + $0xe8] sm:$0xff]
  %v902 = vld [vmem:[%s2 + $0xf0] sm:$0xff]
  %v903 = vld [vmem:[%s2 + $0xf8] sm:$0xff]
  %v904 = vld [vmem:[%s2 + $0x100] sm:$0xff]
  %v905 = vld [vmem:[%s2 + $0x108] sm:$0xff]
  %v906 = vld [vmem:[%s2 + $0x110] sm:$0xff]
  %v907 = vld [vmem:[%s2 + $0x118] sm:$0xff]
  %v908 = vld [vmem:[%s2 + $0x120] sm:$0xff]
  %v909 = vld [vmem:[%s2 + $0x128] sm:$0xff]
  %v910 = vld [vmem:[%s2 + $0x130] sm:$0xff]
  %v911 = vld [vmem:[%s2 + $0x138] sm:$0xff]
  %v912 = vld [vmem:[%s2 + $0x140] sm:$0xff]
  %v913 = vld [vmem:[%s2 + $0x148] sm:$0xff]
  %v914 = vld [vmem:[%s2 + $0x150] sm:$0xff]
  %v915 = vld [vmem:[%s2 + $0x158] sm:$0xff]
  %v916 = vld [vmem:[%s2 + $0x160] sm:$0xff]
  %v917 = vld [vmem:[%s2 + $0x168] sm:$0xff]
  %v918 = vld [vmem:[%s2 + $0x170] sm:$0xff]
  %v919 = vld [vmem:[%s2 + $0x178] sm:$0xff]
  %v920 = vld [vmem:[%s2 + $0x180] sm:$0xff]
  %v921 = vld [vmem:[%s2 + $0x188] sm:$0xff]
  %v922 = vld [vmem:[%s2 + $0x190] sm:$0xff]
  %v923 = vld [vmem:[%s2 + $0x198] sm:$0xff]
  %v924 = vld [vmem:[%s2 + $0x1a0] sm:$0xff]
  %v925 = vld [vmem:[%s2 + $0x1a8] sm:$0xff]
  %v926 = vld [vmem:[%s2 + $0x1b0] sm:$0xff]
  %v927 = vld [vmem:[%s2 + $0x1b8] sm:$0xff]
  %v928 = vld [vmem:[%s2 + $0x1c0] sm:$0xff]
  %v929 = vld [vmem:[%s2 + $0x1c8] sm:$0xff]
  %v930 = vld [vmem:[%s2 + $0x1d0] sm:$0xff]
  %v931 = vld [vmem:[%s2 + $0x1d8] sm:$0xff]
  %v932 = vld [vmem:[%s2 + $0x1e0] sm:$0xff]
  %v933 = vld [vmem:[%s2 + $0x1e8] sm:$0xff]
  %v934 = vld [vmem:[%s2 + $0x1f0] sm:$0xff]
  %v935 = vld [vmem:[%s2 + $0x1f8] sm:$0xff]
  %936 = vmatprep.subr.mxu0 %v933
  %937 = vmatpush1.msra.mxu0 %v932
  %938 = vmatprep.subr.mxu0 %v929
  %939 = vmatpush1.msra.mxu0 %v928
  %940 = vmatprep.subr.mxu0 %v925
  %941 = vmatpush1.msra.mxu0 %v924
  %942 = vmatprep.subr.mxu0 %v921
  %943 = vmatpush1.msra.mxu0 %v920
  %944 = vmatprep.subr.mxu0 %v917
  %945 = vmatpush1.msra.mxu0 %v916
  %946 = vmatprep.subr.mxu0 %v913
  %947 = vmatpush1.msra.mxu0 %v912
  %948 = vmatprep.subr.mxu0 %v909
  %949 = vmatpush1.msra.mxu0 %v908
  %950 = vmatprep.subr.mxu0 %v905
  %951 = vmatpush1.msra.mxu0 %v904
  %952 = vmatprep.subr.mxu0 %v901
  %953 = vmatpush1.msra.mxu0 %v900
  %954 = vmatprep.subr.mxu0 %v897
  %955 = vmatpush1.msra.mxu0 %v896
  %956 = vmatprep.subr.mxu0 %v893
  %957 = vmatpush1.msra.mxu0 %v892
  %958 = vmatprep.subr.mxu0 %v889
  %959 = vmatpush1.msra.mxu0 %v888
  %960 = vmatprep.subr.mxu0 %v885
  %961 = vmatpush1.msra.mxu0 %v884
  %962 = vmatprep.subr.mxu0 %v881
  %963 = vmatpush1.msra.mxu0 %v880
  %964 = vmatprep.subr.mxu0 %v877
  %965 = vmatpush1.msra.mxu0 %v876
  %966 = vmatprep.subr.mxu0 %v873
  %967 = vmatpush1.msra.mxu0 %v872
  %968 = vmatprep.subr.mxu0 0.0
  %969 = vmatpush2.msra.mxu0 0.0
  %970 = vmatprep.subr.mxu0 0.0
  %971 = vmatpush2.msra.mxu0 0.0
  %972 = vmatprep.subr.mxu0 0.0
  %973 = vmatpush2.msra.mxu0 0.0
  %974 = vmatprep.subr.mxu0 0.0
  %975 = vmatpush2.msra.mxu0 0.0
  %976 = vmatprep.subr.mxu0 0.0
  %977 = vmatpush2.msra.mxu0 0.0
  %978 = vmatprep.subr.mxu0 0.0
  %979 = vmatpush2.msra.mxu0 0.0
  %980 = vmatprep.subr.mxu0 0.0
  %981 = vmatpush2.msra.mxu0 0.0
  %982 = vmatprep.subr.mxu0 0.0
  %983 = vmatpush2.msra.mxu0 0.0
  %984 = vmatprep.subr.mxu0 0.0
  %985 = vmatpush2.msra.mxu0 0.0
  %986 = vmatprep.subr.mxu0 0.0
  %987 = vmatpush2.msra.mxu0 0.0
  %988 = vmatprep.subr.mxu0 0.0
  %989 = vmatpush2.msra.mxu0 0.0
  %990 = vmatprep.subr.mxu0 0.0
  %991 = vmatpush2.msra.mxu0 0.0
  %992 = vmatprep.subr.mxu0 0.0
  %993 = vmatpush2.msra.mxu0 0.0
  %994 = vmatprep.subr.mxu0 0.0
  %995 = vmatpush2.msra.mxu0 0.0
  %996 = vmatprep.subr.mxu0 0.0
  %997 = vmatpush2.msra.mxu0 0.0
  %998 = vmatprep.subr.mxu0 0.0
  %999 = vmatpush2.msra.mxu0 0.0
  %1000 = vmatprep.mubr.f32.mxu0 0.0
  %1001 = vmatmul.mubr.f32.gmra.mxu0 %v862
  %v1002 = vpop.f32.mrf.mxu0
  %v1003 = vadd.f32 0.0, %v1002
  %v1004 = vpop.f32.mrf.mxu0
  %v1005 = vadd.f32 0.0, %v1004
  %1006 = vdwg.mxu0
  %1007 = vmatprep.subr.mxu0 %v935
  %1008 = vmatpush1.msra.mxu0 %v934
  %1009 = vmatprep.subr.mxu0 %v931
  %1010 = vmatpush1.msra.mxu0 %v930
  %1011 = vmatprep.subr.mxu0 %v927
  %1012 = vmatpush1.msra.mxu0 %v926
  %1013 = vmatprep.subr.mxu0 %v923
  %1014 = vmatpush1.msra.mxu0 %v922
  %1015 = vmatprep.subr.mxu0 %v919
  %1016 = vmatpush1.msra.mxu0 %v918
  %1017 = vmatprep.subr.mxu0 %v915
  %1018 = vmatpush1.msra.mxu0 %v914
  %1019 = vmatprep.subr.mxu0 %v911
  %1020 = vmatpush1.msra.mxu0 %v910
  %1021 = vmatprep.subr.mxu0 %v907
  %1022 = vmatpush1.msra.mxu0 %v906
  %1023 = vmatprep.subr.mxu0 %v903
  %1024 = vmatpush1.msra.mxu0 %v902
  %1025 = vmatprep.subr.mxu0 %v899
  %1026 = vmatpush1.msra.mxu0 %v898
  %1027 = vmatprep.subr.mxu0 %v895
  %1028 = vmatpush1.msra.mxu0 %v894
  %1029 = vmatprep.subr.mxu0 %v891
  %1030 = vmatpush1.msra.mxu0 %v890
  %1031 = vmatprep.subr.mxu0 %v887
  %1032 = vmatpush1.msra.mxu0 %v886
  %1033 = vmatprep.subr.mxu0 %v883
  %1034 = vmatpush1.msra.mxu0 %v882
  %1035 = vmatprep.subr.mxu0 %v879
  %1036 = vmatpush1.msra.mxu0 %v878
  %1037 = vmatprep.subr.mxu0 %v875
  %1038 = vmatpush1.msra.mxu0 %v874
  %1039 = vmatprep.subr.mxu0 0.0
  %1040 = vmatpush2.msra.mxu0 0.0
  %1041 = vmatprep.subr.mxu0 0.0
  %1042 = vmatpush2.msra.mxu0 0.0
  %1043 = vmatprep.subr.mxu0 0.0
  %1044 = vmatpush2.msra.mxu0 0.0
  %1045 = vmatprep.subr.mxu0 0.0
  %1046 = vmatpush2.msra.mxu0 0.0
  %1047 = vmatprep.subr.mxu0 0.0
  %1048 = vmatpush2.msra.mxu0 0.0
  %1049 = vmatprep.subr.mxu0 0.0
  %1050 = vmatpush2.msra.mxu0 0.0
  %1051 = vmatprep.subr.mxu0 0.0
  %1052 = vmatpush2.msra.mxu0 0.0
  %1053 = vmatprep.subr.mxu0 0.0
  %1054 = vmatpush2.msra.mxu0 0.0
  %1055 = vmatprep.subr.mxu0 0.0
  %1056 = vmatpush2.msra.mxu0 0.0
  %1057 = vmatprep.subr.mxu0 0.0
  %1058 = vmatpush2.msra.mxu0 0.0
  %1059 = vmatprep.subr.mxu0 0.0
  %1060 = vmatpush2.msra.mxu0 0.0
  %1061 = vmatprep.subr.mxu0 0.0
  %1062 = vmatpush2.msra.mxu0 0.0
  %1063 = vmatprep.subr.mxu0 0.0
  %1064 = vmatpush2.msra.mxu0 0.0
  %1065 = vmatprep.subr.mxu0 0.0
  %1066 = vmatpush2.msra.mxu0 0.0
  %1067 = vmatprep.subr.mxu0 0.0
  %1068 = vmatpush2.msra.mxu0 0.0
  %1069 = vmatprep.subr.mxu0 0.0
  %1070 = vmatpush2.msra.mxu0 0.0
  %1071 = vmatprep.mubr.f32.mxu0 0.0
  %1072 = vmatmul.mubr.f32.gmra.mxu0 %v862
  %v1073 = vpop.f32.mrf.mxu0
  %v1074 = vadd.f32 0.0, %v1073
  %v1075 = vpop.f32.mrf.mxu0
  %v1076 = vadd.f32 0.0, %v1075
  %1077 = vdwg.mxu0
  %v1078 = vadd.f32 %v868, %v1003
  %v1079 = vadd.f32 %v869, %v1005
  %v1080 = vadd.f32 %v870, %v1074
  %v1081 = vadd.f32 %v871, %v1076
  %v1082 = vxor.u32 %v1078, 2147483648
  %v1083 = vmul.f32 %v1082, 1.442695
  %v1084 = vpow.pop %v1083
  %v1085 = vadd.f32 %v1084, 1.0
  %v1086 = vrcp.pop %v1085
  %v1087 = vmul.f32 1.0, %v1086
  %v1088 = vxor.u32 %v1079, 2147483648
  %v1089 = vmul.f32 %v1088, 1.442695
  %v1090 = vpow.pop %v1089
  %v1091 = vadd.f32 %v1090, 1.0
  %v1092 = vrcp.pop %v1091
  %v1093 = vmul.f32 1.0, %v1092
  %v1094 = vtanh.pop %v1080
  %v1095 = vxor.u32 %v1081, 2147483648
  %v1096 = vmul.f32 %v1095, 1.442695
  %v1097 = vpow.pop %v1096
  %v1098 = vadd.f32 %v1097, 1.0
  %v1099 = vrcp.pop %v1098
  %v1100 = vmul.f32 1.0, %v1099
  %v1101 = vmul.f32 %v1093, %v860
  %v1102 = vmul.f32 %v1087, %v1094
  %v1103 = vadd.f32 %v1101, %v1102
  %v1104 = vtanh.pop %v1103
  %v1105 = vmul.f32 %v1100, %v1104
  %s1106 = scalar_lea.vmem [#allocation3], 16
  %1107 = vst [vmem:[%s1106] sm:$0xff] %v1105
  %s1108 = smul.u32 3, 4
  %s1109 = smul.addr %s1108, 8
  %s1110 = scalar_lea.vmem [#allocation2], %s1109
  %v1111 = vld [vmem:[%s1110] sm:$0xff]
  %v1112 = vld [vmem:[%s1110 + $0x8] sm:$0xff]
  %v1113 = vld [vmem:[%s1110 + $0x10] sm:$0xff]
  %v1114 = vld [vmem:[%s1110 + $0x18] sm:$0xff]
  %v1115 = vld [vmem:[%s2] sm:$0xff]
  %v1116 = vld [vmem:[%s2 + $0x8] sm:$0xff]
  %v1117 = vld [vmem:[%s2 + $0x10] sm:$0xff]
  %v1118 = vld [vmem:[%s2 + $0x18] sm:$0xff]
  %v1119 = vld [vmem:[%s2 + $0x20] sm:$0xff]
  %v1120 = vld [vmem:[%s2 + $0x28] sm:$0xff]
  %v1121 = vld [vmem:[%s2 + $0x30] sm:$0xff]
  %v1122 = vld [vmem:[%s2 + $0x38] sm:$0xff]
  %v1123 = vld [vmem:[%s2 + $0x40] sm:$0xff]
  %v1124 = vld [vmem:[%s2 + $0x48] sm:$0xff]
  %v1125 = vld [vmem:[%s2 + $0x50] sm:$0xff]
  %v1126 = vld [vmem:[%s2 + $0x58] sm:$0xff]
  %v1127 = vld [vmem:[%s2 + $0x60] sm:$0xff]
  %v1128 = vld [vmem:[%s2 + $0x68] sm:$0xff]
  %v1129 = vld [vmem:[%s2 + $0x70] sm:$0xff]
  %v1130 = vld [vmem:[%s2 + $0x78] sm:$0xff]
  %v1131 = vld [vmem:[%s2 + $0x80] sm:$0xff]
  %v1132 = vld [vmem:[%s2 + $0x88] sm:$0xff]
  %v1133 = vld [vmem:[%s2 + $0x90] sm:$0xff]
  %v1134 = vld [vmem:[%s2 + $0x98] sm:$0xff]
  %v1135 = vld [vmem:[%s2 + $0xa0] sm:$0xff]
  %v1136 = vld [vmem:[%s2 + $0xa8] sm:$0xff]
  %v1137 = vld [vmem:[%s2 + $0xb0] sm:$0xff]
  %v1138 = vld [vmem:[%s2 + $0xb8] sm:$0xff]
  %v1139 = vld [vmem:[%s2 + $0xc0] sm:$0xff]
  %v1140 = vld [vmem:[%s2 + $0xc8] sm:$0xff]
  %v1141 = vld [vmem:[%s2 + $0xd0] sm:$0xff]
  %v1142 = vld [vmem:[%s2 + $0xd8] sm:$0xff]
  %v1143 = vld [vmem:[%s2 + $0xe0] sm:$0xff]
  %v1144 = vld [vmem:[%s2 + $0xe8] sm:$0xff]
  %v1145 = vld [vmem:[%s2 + $0xf0] sm:$0xff]
  %v1146 = vld [vmem:[%s2 + $0xf8] sm:$0xff]
  %v1147 = vld [vmem:[%s2 + $0x100] sm:$0xff]
  %v1148 = vld [vmem:[%s2 + $0x108] sm:$0xff]
  %v1149 = vld [vmem:[%s2 + $0x110] sm:$0xff]
  %v1150 = vld [vmem:[%s2 + $0x118] sm:$0xff]
  %v1151 = vld [vmem:[%s2 + $0x120] sm:$0xff]
  %v1152 = vld [vmem:[%s2 + $0x128] sm:$0xff]
  %v1153 = vld [vmem:[%s2 + $0x130] sm:$0xff]
  %v1154 = vld [vmem:[%s2 + $0x138] sm:$0xff]
  %v1155 = vld [vmem:[%s2 + $0x140] sm:$0xff]
  %v1156 = vld [vmem:[%s2 + $0x148] sm:$0xff]
  %v1157 = vld [vmem:[%s2 + $0x150] sm:$0xff]
  %v1158 = vld [vmem:[%s2 + $0x158] sm:$0xff]
  %v1159 = vld [vmem:[%s2 + $0x160] sm:$0xff]
  %v1160 = vld [vmem:[%s2 + $0x168] sm:$0xff]
  %v1161 = vld [vmem:[%s2 + $0x170] sm:$0xff]
  %v1162 = vld [vmem:[%s2 + $0x178] sm:$0xff]
  %v1163 = vld [vmem:[%s2 + $0x180] sm:$0xff]
  %v1164 = vld [vmem:[%s2 + $0x188] sm:$0xff]
  %v1165 = vld [vmem:[%s2 + $0x190] sm:$0xff]
  %v1166 = vld [vmem:[%s2 + $0x198] sm:$0xff]
  %v1167 = vld [vmem:[%s2 + $0x1a0] sm:$0xff]
  %v1168 = vld [vmem:[%s2 + $0x1a8] sm:$0xff]
  %v1169 = vld [vmem:[%s2 + $0x1b0] sm:$0xff]
  %v1170 = vld [vmem:[%s2 + $0x1b8] sm:$0xff]
  %v1171 = vld [vmem:[%s2 + $0x1c0] sm:$0xff]
  %v1172 = vld [vmem:[%s2 + $0x1c8] sm:$0xff]
  %v1173 = vld [vmem:[%s2 + $0x1d0] sm:$0xff]
  %v1174 = vld [vmem:[%s2 + $0x1d8] sm:$0xff]
  %v1175 = vld [vmem:[%s2 + $0x1e0] sm:$0xff]
  %v1176 = vld [vmem:[%s2 + $0x1e8] sm:$0xff]
  %v1177 = vld [vmem:[%s2 + $0x1f0] sm:$0xff]
  %v1178 = vld [vmem:[%s2 + $0x1f8] sm:$0xff]
  %1179 = vmatprep.subr.mxu0 %v1176
  %1180 = vmatpush1.msra.mxu0 %v1175
  %1181 = vmatprep.subr.mxu0 %v1172
  %1182 = vmatpush1.msra.mxu0 %v1171
  %1183 = vmatprep.subr.mxu0 %v1168
  %1184 = vmatpush1.msra.mxu0 %v1167
  %1185 = vmatprep.subr.mxu0 %v1164
  %1186 = vmatpush1.msra.mxu0 %v1163
  %1187 = vmatprep.subr.mxu0 %v1160
  %1188 = vmatpush1.msra.mxu0 %v1159
  %1189 = vmatprep.subr.mxu0 %v1156
  %1190 = vmatpush1.msra.mxu0 %v1155
  %1191 = vmatprep.subr.mxu0 %v1152
  %1192 = vmatpush1.msra.mxu0 %v1151
  %1193 = vmatprep.subr.mxu0 %v1148
  %1194 = vmatpush1.msra.mxu0 %v1147
  %1195 = vmatprep.subr.mxu0 %v1144
  %1196 = vmatpush1.msra.mxu0 %v1143
  %1197 = vmatprep.subr.mxu0 %v1140
  %1198 = vmatpush1.msra.mxu0 %v1139
  %1199 = vmatprep.subr.mxu0 %v1136
  %1200 = vmatpush1.msra.mxu0 %v1135
  %1201 = vmatprep.subr.mxu0 %v1132
  %1202 = vmatpush1.msra.mxu0 %v1131
  %1203 = vmatprep.subr.mxu0 %v1128
  %1204 = vmatpush1.msra.mxu0 %v1127
  %1205 = vmatprep.subr.mxu0 %v1124
  %1206 = vmatpush1.msra.mxu0 %v1123
  %1207 = vmatprep.subr.mxu0 %v1120
  %1208 = vmatpush1.msra.mxu0 %v1119
  %1209 = vmatprep.subr.mxu0 %v1116
  %1210 = vmatpush1.msra.mxu0 %v1115
  %1211 = vmatprep.subr.mxu0 0.0
  %1212 = vmatpush2.msra.mxu0 0.0
  %1213 = vmatprep.subr.mxu0 0.0
  %1214 = vmatpush2.msra.mxu0 0.0
  %1215 = vmatprep.subr.mxu0 0.0
  %1216 = vmatpush2.msra.mxu0 0.0
  %1217 = vmatprep.subr.mxu0 0.0
  %1218 = vmatpush2.msra.mxu0 0.0
  %1219 = vmatprep.subr.mxu0 0.0
  %1220 = vmatpush2.msra.mxu0 0.0
  %1221 = vmatprep.subr.mxu0 0.0
  %1222 = vmatpush2.msra.mxu0 0.0
  %1223 = vmatprep.subr.mxu0 0.0
  %1224 = vmatpush2.msra.mxu0 0.0
  %1225 = vmatprep.subr.mxu0 0.0
  %1226 = vmatpush2.msra.mxu0 0.0
  %1227 = vmatprep.subr.mxu0 0.0
  %1228 = vmatpush2.msra.mxu0 0.0
  %1229 = vmatprep.subr.mxu0 0.0
  %1230 = vmatpush2.msra.mxu0 0.0
  %1231 = vmatprep.subr.mxu0 0.0
  %1232 = vmatpush2.msra.mxu0 0.0
  %1233 = vmatprep.subr.mxu0 0.0
  %1234 = vmatpush2.msra.mxu0 0.0
  %1235 = vmatprep.subr.mxu0 0.0
  %1236 = vmatpush2.msra.mxu0 0.0
  %1237 = vmatprep.subr.mxu0 0.0
  %1238 = vmatpush2.msra.mxu0 0.0
  %1239 = vmatprep.subr.mxu0 0.0
  %1240 = vmatpush2.msra.mxu0 0.0
  %1241 = vmatprep.subr.mxu0 0.0
  %1242 = vmatpush2.msra.mxu0 0.0
  %1243 = vmatprep.mubr.f32.mxu0 0.0
  %1244 = vmatmul.mubr.f32.gmra.mxu0 %v1105
  %v1245 = vpop.f32.mrf.mxu0
  %v1246 = vadd.f32 0.0, %v1245
  %v1247 = vpop.f32.mrf.mxu0
  %v1248 = vadd.f32 0.0, %v1247
  %1249 = vdwg.mxu0
  %1250 = vmatprep.subr.mxu0 %v1178
  %1251 = vmatpush1.msra.mxu0 %v1177
  %1252 = vmatprep.subr.mxu0 %v1174
  %1253 = vmatpush1.msra.mxu0 %v1173
  %1254 = vmatprep.subr.mxu0 %v1170
  %1255 = vmatpush1.msra.mxu0 %v1169
  %1256 = vmatprep.subr.mxu0 %v1166
  %1257 = vmatpush1.msra.mxu0 %v1165
  %1258 = vmatprep.subr.mxu0 %v1162
  %1259 = vmatpush1.msra.mxu0 %v1161
  %1260 = vmatprep.subr.mxu0 %v1158
  %1261 = vmatpush1.msra.mxu0 %v1157
  %1262 = vmatprep.subr.mxu0 %v1154
  %1263 = vmatpush1.msra.mxu0 %v1153
  %1264 = vmatprep.subr.mxu0 %v1150
  %1265 = vmatpush1.msra.mxu0 %v1149
  %1266 = vmatprep.subr.mxu0 %v1146
  %1267 = vmatpush1.msra.mxu0 %v1145
  %1268 = vmatprep.subr.mxu0 %v1142
  %1269 = vmatpush1.msra.mxu0 %v1141
  %1270 = vmatprep.subr.mxu0 %v1138
  %1271 = vmatpush1.msra.mxu0 %v1137
  %1272 = vmatprep.subr.mxu0 %v1134
  %1273 = vmatpush1.msra.mxu0 %v1133
  %1274 = vmatprep.subr.mxu0 %v1130
  %1275 = vmatpush1.msra.mxu0 %v1129
  %1276 = vmatprep.subr.mxu0 %v1126
  %1277 = vmatpush1.msra.mxu0 %v1125
  %1278 = vmatprep.subr.mxu0 %v1122
  %1279 = vmatpush1.msra.mxu0 %v1121
  %1280 = vmatprep.subr.mxu0 %v1118
  %1281 = vmatpush1.msra.mxu0 %v1117
  %1282 = vmatprep.subr.mxu0 0.0
  %1283 = vmatpush2.msra.mxu0 0.0
  %1284 = vmatprep.subr.mxu0 0.0
  %1285 = vmatpush2.msra.mxu0 0.0
  %1286 = vmatprep.subr.mxu0 0.0
  %1287 = vmatpush2.msra.mxu0 0.0
  %1288 = vmatprep.subr.mxu0 0.0
  %1289 = vmatpush2.msra.mxu0 0.0
  %1290 = vmatprep.subr.mxu0 0.0
  %1291 = vmatpush2.msra.mxu0 0.0
  %1292 = vmatprep.subr.mxu0 0.0
  %1293 = vmatpush2.msra.mxu0 0.0
  %1294 = vmatprep.subr.mxu0 0.0
  %1295 = vmatpush2.msra.mxu0 0.0
  %1296 = vmatprep.subr.mxu0 0.0
  %1297 = vmatpush2.msra.mxu0 0.0
  %1298 = vmatprep.subr.mxu0 0.0
  %1299 = vmatpush2.msra.mxu0 0.0
  %1300 = vmatprep.subr.mxu0 0.0
  %1301 = vmatpush2.msra.mxu0 0.0
  %1302 = vmatprep.subr.mxu0 0.0
  %1303 = vmatpush2.msra.mxu0 0.0
  %1304 = vmatprep.subr.mxu0 0.0
  %1305 = vmatpush2.msra.mxu0 0.0
  %1306 = vmatprep.subr.mxu0 0.0
  %1307 = vmatpush2.msra.mxu0 0.0
  %1308 = vmatprep.subr.mxu0 0.0
  %1309 = vmatpush2.msra.mxu0 0.0
  %1310 = vmatprep.subr.mxu0 0.0
  %1311 = vmatpush2.msra.mxu0 0.0
  %1312 = vmatprep.subr.mxu0 0.0
  %1313 = vmatpush2.msra.mxu0 0.0
  %1314 = vmatprep.mubr.f32.mxu0 0.0
  %1315 = vmatmul.mubr.f32.gmra.mxu0 %v1105
  %v1316 = vpop.f32.mrf.mxu0
  %v1317 = vadd.f32 0.0, %v1316
  %v1318 = vpop.f32.mrf.mxu0
  %v1319 = vadd.f32 0.0, %v1318
  %1320 = vdwg.mxu0
  %v1321 = vadd.f32 %v1111, %v1246
  %v1322 = vadd.f32 %v1112, %v1248
  %v1323 = vadd.f32 %v1113, %v1317
  %v1324 = vadd.f32 %v1114, %v1319
  %v1325 = vxor.u32 %v1321, 2147483648
  %v1326 = vmul.f32 %v1325, 1.442695
  %v1327 = vpow.pop %v1326
  %v1328 = vadd.f32 %v1327, 1.0
  %v1329 = vrcp.pop %v1328
  %v1330 = vmul.f32 1.0, %v1329
  %v1331 = vxor.u32 %v1322, 2147483648
  %v1332 = vmul.f32 %v1331, 1.442695
  %v1333 = vpow.pop %v1332
  %v1334 = vadd.f32 %v1333, 1.0
  %v1335 = vrcp.pop %v1334
  %v1336 = vmul.f32 1.0, %v1335
  %v1337 = vtanh.pop %v1323
  %v1338 = vxor.u32 %v1324, 2147483648
  %v1339 = vmul.f32 %v1338, 1.442695
  %v1340 = vpow.pop %v1339
  %v1341 = vadd.f32 %v1340, 1.0
  %v1342 = vrcp.pop %v1341
  %v1343 = vmul.f32 1.0, %v1342
  %v1344 = vmul.f32 %v1336, %v1103
  %v1345 = vmul.f32 %v1330, %v1337
  %v1346 = vadd.f32 %v1344, %v1345
  %v1347 = vtanh.pop %v1346
  %v1348 = vmul.f32 %v1343, %v1347
  %s1349 = scalar_lea.vmem [#allocation3], 24
  %1350 = vst [vmem:[%s1349] sm:$0xff] %v1348
  %s1351 = smul.u32 4, 4
  %s1352 = smul.addr %s1351, 8
  %s1353 = scalar_lea.vmem [#allocation2], %s1352
  %v1354 = vld [vmem:[%s1353] sm:$0xff]
  %v1355 = vld [vmem:[%s1353 + $0x8] sm:$0xff]
  %v1356 = vld [vmem:[%s1353 + $0x10] sm:$0xff]
  %v1357 = vld [vmem:[%s1353 + $0x18] sm:$0xff]
  %v1358 = vld [vmem:[%s2] sm:$0xff]
  %v1359 = vld [vmem:[%s2 + $0x8] sm:$0xff]
  %v1360 = vld [vmem:[%s2 + $0x10] sm:$0xff]
  %v1361 = vld [vmem:[%s2 + $0x18] sm:$0xff]
  %v1362 = vld [vmem:[%s2 + $0x20] sm:$0xff]
  %v1363 = vld [vmem:[%s2 + $0x28] sm:$0xff]
  %v1364 = vld [vmem:[%s2 + $0x30] sm:$0xff]
  %v1365 = vld [vmem:[%s2 + $0x38] sm:$0xff]
  %v1366 = vld [vmem:[%s2 + $0x40] sm:$0xff]
  %v1367 = vld [vmem:[%s2 + $0x48] sm:$0xff]
  %v1368 = vld [vmem:[%s2 + $0x50] sm:$0xff]
  %v1369 = vld [vmem:[%s2 + $0x58] sm:$0xff]
  %v1370 = vld [vmem:[%s2 + $0x60] sm:$0xff]
  %v1371 = vld [vmem:[%s2 + $0x68] sm:$0xff]
  %v1372 = vld [vmem:[%s2 + $0x70] sm:$0xff]
  %v1373 = vld [vmem:[%s2 + $0x78] sm:$0xff]
  %v1374 = vld [vmem:[%s2 + $0x80] sm:$0xff]
  %v1375 = vld [vmem:[%s2 + $0x88] sm:$0xff]
  %v1376 = vld [vmem:[%s2 + $0x90] sm:$0xff]
  %v1377 = vld [vmem:[%s2 + $0x98] sm:$0xff]
  %v1378 = vld [vmem:[%s2 + $0xa0] sm:$0xff]
  %v1379 = vld [vmem:[%s2 + $0xa8] sm:$0xff]
  %v1380 = vld [vmem:[%s2 + $0xb0] sm:$0xff]
  %v1381 = vld [vmem:[%s2 + $0xb8] sm:$0xff]
  %v1382 = vld [vmem:[%s2 + $0xc0] sm:$0xff]
  %v1383 = vld [vmem:[%s2 + $0xc8] sm:$0xff]
  %v1384 = vld [vmem:[%s2 + $0xd0] sm:$0xff]
  %v1385 = vld [vmem:[%s2 + $0xd8] sm:$0xff]
  %v1386 = vld [vmem:[%s2 + $0xe0] sm:$0xff]
  %v1387 = vld [vmem:[%s2 + $0xe8] sm:$0xff]
  %v1388 = vld [vmem:[%s2 + $0xf0] sm:$0xff]
  %v1389 = vld [vmem:[%s2 + $0xf8] sm:$0xff]
  %v1390 = vld [vmem:[%s2 + $0x100] sm:$0xff]
  %v1391 = vld [vmem:[%s2 + $0x108] sm:$0xff]
  %v1392 = vld [vmem:[%s2 + $0x110] sm:$0xff]
  %v1393 = vld [vmem:[%s2 + $0x118] sm:$0xff]
  %v1394 = vld [vmem:[%s2 + $0x120] sm:$0xff]
  %v1395 = vld [vmem:[%s2 + $0x128] sm:$0xff]
  %v1396 = vld [vmem:[%s2 + $0x130] sm:$0xff]
  %v1397 = vld [vmem:[%s2 + $0x138] sm:$0xff]
  %v1398 = vld [vmem:[%s2 + $0x140] sm:$0xff]
  %v1399 = vld [vmem:[%s2 + $0x148] sm:$0xff]
  %v1400 = vld [vmem:[%s2 + $0x150] sm:$0xff]
  %v1401 = vld [vmem:[%s2 + $0x158] sm:$0xff]
  %v1402 = vld [vmem:[%s2 + $0x160] sm:$0xff]
  %v1403 = vld [vmem:[%s2 + $0x168] sm:$0xff]
  %v1404 = vld [vmem:[%s2 + $0x170] sm:$0xff]
  %v1405 = vld [vmem:[%s2 + $0x178] sm:$0xff]
  %v1406 = vld [vmem:[%s2 + $0x180] sm:$0xff]
  %v1407 = vld [vmem:[%s2 + $0x188] sm:$0xff]
  %v1408 = vld [vmem:[%s2 + $0x190] sm:$0xff]
  %v1409 = vld [vmem:[%s2 + $0x198] sm:$0xff]
  %v1410 = vld [vmem:[%s2 + $0x1a0] sm:$0xff]
  %v1411 = vld [vmem:[%s2 + $0x1a8] sm:$0xff]
  %v1412 = vld [vmem:[%s2 + $0x1b0] sm:$0xff]
  %v1413 = vld [vmem:[%s2 + $0x1b8] sm:$0xff]
  %v1414 = vld [vmem:[%s2 + $0x1c0] sm:$0xff]
  %v1415 = vld [vmem:[%s2 + $0x1c8] sm:$0xff]
  %v1416 = vld [vmem:[%s2 + $0x1d0] sm:$0xff]
  %v1417 = vld [vmem:[%s2 + $0x1d8] sm:$0xff]
  %v1418 = vld [vmem:[%s2 + $0x1e0] sm:$0xff]
  %v1419 = vld [vmem:[%s2 + $0x1e8] sm:$0xff]
  %v1420 = vld [vmem:[%s2 + $0x1f0] sm:$0xff]
  %v1421 = vld [vmem:[%s2 + $0x1f8] sm:$0xff]
  %1422 = vmatprep.subr.mxu0 %v1419
  %1423 = vmatpush1.msra.mxu0 %v1418
  %1424 = vmatprep.subr.mxu0 %v1415
  %1425 = vmatpush1.msra.mxu0 %v1414
  %1426 = vmatprep.subr.mxu0 %v1411
  %1427 = vmatpush1.msra.mxu0 %v1410
  %1428 = vmatprep.subr.mxu0 %v1407
  %1429 = vmatpush1.msra.mxu0 %v1406
  %1430 = vmatprep.subr.mxu0 %v1403
  %1431 = vmatpush1.msra.mxu0 %v1402
  %1432 = vmatprep.subr.mxu0 %v1399
  %1433 = vmatpush1.msra.mxu0 %v1398
  %1434 = vmatprep.subr.mxu0 %v1395
  %1435 = vmatpush1.msra.mxu0 %v1394
  %1436 = vmatprep.subr.mxu0 %v1391
  %1437 = vmatpush1.msra.mxu0 %v1390
  %1438 = vmatprep.subr.mxu0 %v1387
  %1439 = vmatpush1.msra.mxu0 %v1386
  %1440 = vmatprep.subr.mxu0 %v1383
  %1441 = vmatpush1.msra.mxu0 %v1382
  %1442 = vmatprep.subr.mxu0 %v1379
  %1443 = vmatpush1.msra.mxu0 %v1378
  %1444 = vmatprep.subr.mxu0 %v1375
  %1445 = vmatpush1.msra.mxu0 %v1374
  %1446 = vmatprep.subr.mxu0 %v1371
  %1447 = vmatpush1.msra.mxu0 %v1370
  %1448 = vmatprep.subr.mxu0 %v1367
  %1449 = vmatpush1.msra.mxu0 %v1366
  %1450 = vmatprep.subr.mxu0 %v1363
  %1451 = vmatpush1.msra.mxu0 %v1362
  %1452 = vmatprep.subr.mxu0 %v1359
  %1453 = vmatpush1.msra.mxu0 %v1358
  %1454 = vmatprep.subr.mxu0 0.0
  %1455 = vmatpush2.msra.mxu0 0.0
  %1456 = vmatprep.subr.mxu0 0.0
  %1457 = vmatpush2.msra.mxu0 0.0
  %1458 = vmatprep.subr.mxu0 0.0
  %1459 = vmatpush2.msra.mxu0 0.0
  %1460 = vmatprep.subr.mxu0 0.0
  %1461 = vmatpush2.msra.mxu0 0.0
  %1462 = vmatprep.subr.mxu0 0.0
  %1463 = vmatpush2.msra.mxu0 0.0
  %1464 = vmatprep.subr.mxu0 0.0
  %1465 = vmatpush2.msra.mxu0 0.0
  %1466 = vmatprep.subr.mxu0 0.0
  %1467 = vmatpush2.msra.mxu0 0.0
  %1468 = vmatprep.subr.mxu0 0.0
  %1469 = vmatpush2.msra.mxu0 0.0
  %1470 = vmatprep.subr.mxu0 0.0
  %1471 = vmatpush2.msra.mxu0 0.0
  %1472 = vmatprep.subr.mxu0 0.0
  %1473 = vmatpush2.msra.mxu0 0.0
  %1474 = vmatprep.subr.mxu0 0.0
  %1475 = vmatpush2.msra.mxu0 0.0
  %1476 = vmatprep.subr.mxu0 0.0
  %1477 = vmatpush2.msra.mxu0 0.0
  %1478 = vmatprep.subr.mxu0 0.0
  %1479 = vmatpush2.msra.mxu0 0.0
  %1480 = vmatprep.subr.mxu0 0.0
  %1481 = vmatpush2.msra.mxu0 0.0
  %1482 = vmatprep.subr.mxu0 0.0
  %1483 = vmatpush2.msra.mxu0 0.0
  %1484 = vmatprep.subr.mxu0 0.0
  %1485 = vmatpush2.msra.mxu0 0.0
  %1486 = vmatprep.mubr.f32.mxu0 0.0
  %1487 = vmatmul.mubr.f32.gmra.mxu0 %v1348
  %v1488 = vpop.f32.mrf.mxu0
  %v1489 = vadd.f32 0.0, %v1488
  %v1490 = vpop.f32.mrf.mxu0
  %v1491 = vadd.f32 0.0, %v1490
  %1492 = vdwg.mxu0
  %1493 = vmatprep.subr.mxu0 %v1421
  %1494 = vmatpush1.msra.mxu0 %v1420
  %1495 = vmatprep.subr.mxu0 %v1417
  %1496 = vmatpush1.msra.mxu0 %v1416
  %1497 = vmatprep.subr.mxu0 %v1413
  %1498 = vmatpush1.msra.mxu0 %v1412
  %1499 = vmatprep.subr.mxu0 %v1409
  %1500 = vmatpush1.msra.mxu0 %v1408
  %1501 = vmatprep.subr.mxu0 %v1405
  %1502 = vmatpush1.msra.mxu0 %v1404
  %1503 = vmatprep.subr.mxu0 %v1401
  %1504 = vmatpush1.msra.mxu0 %v1400
  %1505 = vmatprep.subr.mxu0 %v1397
  %1506 = vmatpush1.msra.mxu0 %v1396
  %1507 = vmatprep.subr.mxu0 %v1393
  %1508 = vmatpush1.msra.mxu0 %v1392
  %1509 = vmatprep.subr.mxu0 %v1389
  %1510 = vmatpush1.msra.mxu0 %v1388
  %1511 = vmatprep.subr.mxu0 %v1385
  %1512 = vmatpush1.msra.mxu0 %v1384
  %1513 = vmatprep.subr.mxu0 %v1381
  %1514 = vmatpush1.msra.mxu0 %v1380
  %1515 = vmatprep.subr.mxu0 %v1377
  %1516 = vmatpush1.msra.mxu0 %v1376
  %1517 = vmatprep.subr.mxu0 %v1373
  %1518 = vmatpush1.msra.mxu0 %v1372
  %1519 = vmatprep.subr.mxu0 %v1369
  %1520 = vmatpush1.msra.mxu0 %v1368
  %1521 = vmatprep.subr.mxu0 %v1365
  %1522 = vmatpush1.msra.mxu0 %v1364
  %1523 = vmatprep.subr.mxu0 %v1361
  %1524 = vmatpush1.msra.mxu0 %v1360
  %1525 = vmatprep.subr.mxu0 0.0
  %1526 = vmatpush2.msra.mxu0 0.0
  %1527 = vmatprep.subr.mxu0 0.0
  %1528 = vmatpush2.msra.mxu0 0.0
  %1529 = vmatprep.subr.mxu0 0.0
  %1530 = vmatpush2.msra.mxu0 0.0
  %1531 = vmatprep.subr.mxu0 0.0
  %1532 = vmatpush2.msra.mxu0 0.0
  %1533 = vmatprep.subr.mxu0 0.0
  %1534 = vmatpush2.msra.mxu0 0.0
  %1535 = vmatprep.subr.mxu0 0.0
  %1536 = vmatpush2.msra.mxu0 0.0
  %1537 = vmatprep.subr.mxu0 0.0
  %1538 = vmatpush2.msra.mxu0 0.0
  %1539 = vmatprep.subr.mxu0 0.0
  %1540 = vmatpush2.msra.mxu0 0.0
  %1541 = vmatprep.subr.mxu0 0.0
  %1542 = vmatpush2.msra.mxu0 0.0
  %1543 = vmatprep.subr.mxu0 0.0
  %1544 = vmatpush2.msra.mxu0 0.0
  %1545 = vmatprep.subr.mxu0 0.0
  %1546 = vmatpush2.msra.mxu0 0.0
  %1547 = vmatprep.subr.mxu0 0.0
  %1548 = vmatpush2.msra.mxu0 0.0
  %1549 = vmatprep.subr.mxu0 0.0
  %1550 = vmatpush2.msra.mxu0 0.0
  %1551 = vmatprep.subr.mxu0 0.0
  %1552 = vmatpush2.msra.mxu0 0.0
  %1553 = vmatprep.subr.mxu0 0.0
  %1554 = vmatpush2.msra.mxu0 0.0
  %1555 = vmatprep.subr.mxu0 0.0
  %1556 = vmatpush2.msra.mxu0 0.0
  %1557 = vmatprep.mubr.f32.mxu0 0.0
  %1558 = vmatmul.mubr.f32.gmra.mxu0 %v1348
  %v1559 = vpop.f32.mrf.mxu0
  %v1560 = vadd.f32 0.0, %v1559
  %v1561 = vpop.f32.mrf.mxu0
  %v1562 = vadd.f32 0.0, %v1561
  %1563 = vdwg.mxu0
  %v1564 = vadd.f32 %v1354, %v1489
  %v1565 = vadd.f32 %v1355, %v1491
  %v1566 = vadd.f32 %v1356, %v1560
  %v1567 = vadd.f32 %v1357, %v1562
  %v1568 = vxor.u32 %v1564, 2147483648
  %v1569 = vmul.f32 %v1568, 1.442695
  %v1570 = vpow.pop %v1569
  %v1571 = vadd.f32 %v1570, 1.0
  %v1572 = vrcp.pop %v1571
  %v1573 = vmul.f32 1.0, %v1572
  %v1574 = vxor.u32 %v1565, 2147483648
  %v1575 = vmul.f32 %v1574, 1.442695
  %v1576 = vpow.pop %v1575
  %v1577 = vadd.f32 %v1576, 1.0
  %v1578 = vrcp.pop %v1577
  %v1579 = vmul.f32 1.0, %v1578
  %v1580 = vtanh.pop %v1566
  %v1581 = vxor.u32 %v1567, 2147483648
  %v1582 = vmul.f32 %v1581, 1.442695
  %v1583 = vpow.pop %v1582
  %v1584 = vadd.f32 %v1583, 1.0
  %v1585 = vrcp.pop %v1584
  %v1586 = vmul.f32 1.0, %v1585
  %v1587 = vmul.f32 %v1579, %v1346
  %v1588 = vmul.f32 %v1573, %v1580
  %v1589 = vadd.f32 %v1587, %v1588
  %v1590 = vtanh.pop %v1589
  %v1591 = vmul.f32 %v1586, %v1590
  %s1592 = scalar_lea.vmem [#allocation3], 32
  %1593 = vst [vmem:[%s1592] sm:$0xff] %v1591
  %s1594 = smul.u32 5, 4
  %s1595 = smul.addr %s1594, 8
  %s1596 = scalar_lea.vmem [#allocation2], %s1595
  %v1597 = vld [vmem:[%s1596] sm:$0xff]
  %v1598 = vld [vmem:[%s1596 + $0x8] sm:$0xff]
  %v1599 = vld [vmem:[%s1596 + $0x10] sm:$0xff]
  %v1600 = vld [vmem:[%s1596 + $0x18] sm:$0xff]
  %v1601 = vld [vmem:[%s2] sm:$0xff]
  %v1602 = vld [vmem:[%s2 + $0x8] sm:$0xff]
  %v1603 = vld [vmem:[%s2 + $0x10] sm:$0xff]
  %v1604 = vld [vmem:[%s2 + $0x18] sm:$0xff]
  %v1605 = vld [vmem:[%s2 + $0x20] sm:$0xff]
  %v1606 = vld [vmem:[%s2 + $0x28] sm:$0xff]
  %v1607 = vld [vmem:[%s2 + $0x30] sm:$0xff]
  %v1608 = vld [vmem:[%s2 + $0x38] sm:$0xff]
  %v1609 = vld [vmem:[%s2 + $0x40] sm:$0xff]
  %v1610 = vld [vmem:[%s2 + $0x48] sm:$0xff]
  %v1611 = vld [vmem:[%s2 + $0x50] sm:$0xff]
  %v1612 = vld [vmem:[%s2 + $0x58] sm:$0xff]
  %v1613 = vld [vmem:[%s2 + $0x60] sm:$0xff]
  %v1614 = vld [vmem:[%s2 + $0x68] sm:$0xff]
  %v1615 = vld [vmem:[%s2 + $0x70] sm:$0xff]
  %v1616 = vld [vmem:[%s2 + $0x78] sm:$0xff]
  %v1617 = vld [vmem:[%s2 + $0x80] sm:$0xff]
  %v1618 = vld [vmem:[%s2 + $0x88] sm:$0xff]
  %v1619 = vld [vmem:[%s2 + $0x90] sm:$0xff]
  %v1620 = vld [vmem:[%s2 + $0x98] sm:$0xff]
  %v1621 = vld [vmem:[%s2 + $0xa0] sm:$0xff]
  %v1622 = vld [vmem:[%s2 + $0xa8] sm:$0xff]
  %v1623 = vld [vmem:[%s2 + $0xb0] sm:$0xff]
  %v1624 = vld [vmem:[%s2 + $0xb8] sm:$0xff]
  %v1625 = vld [vmem:[%s2 + $0xc0] sm:$0xff]
  %v1626 = vld [vmem:[%s2 + $0xc8] sm:$0xff]
  %v1627 = vld [vmem:[%s2 + $0xd0] sm:$0xff]
  %v1628 = vld [vmem:[%s2 + $0xd8] sm:$0xff]
  %v1629 = vld [vmem:[%s2 + $0xe0] sm:$0xff]
  %v1630 = vld [vmem:[%s2 + $0xe8] sm:$0xff]
  %v1631 = vld [vmem:[%s2 + $0xf0] sm:$0xff]
  %v1632 = vld [vmem:[%s2 + $0xf8] sm:$0xff]
  %v1633 = vld [vmem:[%s2 + $0x100] sm:$0xff]
  %v1634 = vld [vmem:[%s2 + $0x108] sm:$0xff]
  %v1635 = vld [vmem:[%s2 + $0x110] sm:$0xff]
  %v1636 = vld [vmem:[%s2 + $0x118] sm:$0xff]
  %v1637 = vld [vmem:[%s2 + $0x120] sm:$0xff]
  %v1638 = vld [vmem:[%s2 + $0x128] sm:$0xff]
  %v1639 = vld [vmem:[%s2 + $0x130] sm:$0xff]
  %v1640 = vld [vmem:[%s2 + $0x138] sm:$0xff]
  %v1641 = vld [vmem:[%s2 + $0x140] sm:$0xff]
  %v1642 = vld [vmem:[%s2 + $0x148] sm:$0xff]
  %v1643 = vld [vmem:[%s2 + $0x150] sm:$0xff]
  %v1644 = vld [vmem:[%s2 + $0x158] sm:$0xff]
  %v1645 = vld [vmem:[%s2 + $0x160] sm:$0xff]
  %v1646 = vld [vmem:[%s2 + $0x168] sm:$0xff]
  %v1647 = vld [vmem:[%s2 + $0x170] sm:$0xff]
  %v1648 = vld [vmem:[%s2 + $0x178] sm:$0xff]
  %v1649 = vld [vmem:[%s2 + $0x180] sm:$0xff]
  %v1650 = vld [vmem:[%s2 + $0x188] sm:$0xff]
  %v1651 = vld [vmem:[%s2 + $0x190] sm:$0xff]
  %v1652 = vld [vmem:[%s2 + $0x198] sm:$0xff]
  %v1653 = vld [vmem:[%s2 + $0x1a0] sm:$0xff]
  %v1654 = vld [vmem:[%s2 + $0x1a8] sm:$0xff]
  %v1655 = vld [vmem:[%s2 + $0x1b0] sm:$0xff]
  %v1656 = vld [vmem:[%s2 + $0x1b8] sm:$0xff]
  %v1657 = vld [vmem:[%s2 + $0x1c0] sm:$0xff]
  %v1658 = vld [vmem:[%s2 + $0x1c8] sm:$0xff]
  %v1659 = vld [vmem:[%s2 + $0x1d0] sm:$0xff]
  %v1660 = vld [vmem:[%s2 + $0x1d8] sm:$0xff]
  %v1661 = vld [vmem:[%s2 + $0x1e0] sm:$0xff]
  %v1662 = vld [vmem:[%s2 + $0x1e8] sm:$0xff]
  %v1663 = vld [vmem:[%s2 + $0x1f0] sm:$0xff]
  %v1664 = vld [vmem:[%s2 + $0x1f8] sm:$0xff]
  %1665 = vmatprep.subr.mxu0 %v1662
  %1666 = vmatpush1.msra.mxu0 %v1661
  %1667 = vmatprep.subr.mxu0 %v1658
  %1668 = vmatpush1.msra.mxu0 %v1657
  %1669 = vmatprep.subr.mxu0 %v1654
  %1670 = vmatpush1.msra.mxu0 %v1653
  %1671 = vmatprep.subr.mxu0 %v1650
  %1672 = vmatpush1.msra.mxu0 %v1649
  %1673 = vmatprep.subr.mxu0 %v1646
  %1674 = vmatpush1.msra.mxu0 %v1645
  %1675 = vmatprep.subr.mxu0 %v1642
  %1676 = vmatpush1.msra.mxu0 %v1641
  %1677 = vmatprep.subr.mxu0 %v1638
  %1678 = vmatpush1.msra.mxu0 %v1637
  %1679 = vmatprep.subr.mxu0 %v1634
  %1680 = vmatpush1.msra.mxu0 %v1633
  %1681 = vmatprep.subr.mxu0 %v1630
  %1682 = vmatpush1.msra.mxu0 %v1629
  %1683 = vmatprep.subr.mxu0 %v1626
  %1684 = vmatpush1.msra.mxu0 %v1625
  %1685 = vmatprep.subr.mxu0 %v1622
  %1686 = vmatpush1.msra.mxu0 %v1621
  %1687 = vmatprep.subr.mxu0 %v1618
  %1688 = vmatpush1.msra.mxu0 %v1617
  %1689 = vmatprep.subr.mxu0 %v1614
  %1690 = vmatpush1.msra.mxu0 %v1613
  %1691 = vmatprep.subr.mxu0 %v1610
  %1692 = vmatpush1.msra.mxu0 %v1609
  %1693 = vmatprep.subr.mxu0 %v1606
  %1694 = vmatpush1.msra.mxu0 %v1605
  %1695 = vmatprep.subr.mxu0 %v1602
  %1696 = vmatpush1.msra.mxu0 %v1601
  %1697 = vmatprep.subr.mxu0 0.0
  %1698 = vmatpush2.msra.mxu0 0.0
  %1699 = vmatprep.subr.mxu0 0.0
  %1700 = vmatpush2.msra.mxu0 0.0
  %1701 = vmatprep.subr.mxu0 0.0
  %1702 = vmatpush2.msra.mxu0 0.0
  %1703 = vmatprep.subr.mxu0 0.0
  %1704 = vmatpush2.msra.mxu0 0.0
  %1705 = vmatprep.subr.mxu0 0.0
  %1706 = vmatpush2.msra.mxu0 0.0
  %1707 = vmatprep.subr.mxu0 0.0
  %1708 = vmatpush2.msra.mxu0 0.0
  %1709 = vmatprep.subr.mxu0 0.0
  %1710 = vmatpush2.msra.mxu0 0.0
  %1711 = vmatprep.subr.mxu0 0.0
  %1712 = vmatpush2.msra.mxu0 0.0
  %1713 = vmatprep.subr.mxu0 0.0
  %1714 = vmatpush2.msra.mxu0 0.0
  %1715 = vmatprep.subr.mxu0 0.0
  %1716 = vmatpush2.msra.mxu0 0.0
  %1717 = vmatprep.subr.mxu0 0.0
  %1718 = vmatpush2.msra.mxu0 0.0
  %1719 = vmatprep.subr.mxu0 0.0
  %1720 = vmatpush2.msra.mxu0 0.0
  %1721 = vmatprep.subr.mxu0 0.0
  %1722 = vmatpush2.msra.mxu0 0.0
  %1723 = vmatprep.subr.mxu0 0.0
  %1724 = vmatpush2.msra.mxu0 0.0
  %1725 = vmatprep.subr.mxu0 0.0
  %1726 = vmatpush2.msra.mxu0 0.0
  %1727 = vmatprep.subr.mxu0 0.0
  %1728 = vmatpush2.msra.mxu0 0.0
  %1729 = vmatprep.mubr.f32.mxu0 0.0
  %1730 = vmatmul.mubr.f32.gmra.mxu0 %v1591
  %v1731 = vpop.f32.mrf.mxu0
  %v1732 = vadd.f32 0.0, %v1731
  %v1733 = vpop.f32.mrf.mxu0
  %v1734 = vadd.f32 0.0, %v1733
  %1735 = vdwg.mxu0
  %1736 = vmatprep.subr.mxu0 %v1664
  %1737 = vmatpush1.msra.mxu0 %v1663
  %1738 = vmatprep.subr.mxu0 %v1660
  %1739 = vmatpush1.msra.mxu0 %v1659
  %1740 = vmatprep.subr.mxu0 %v1656
  %1741 = vmatpush1.msra.mxu0 %v1655
  %1742 = vmatprep.subr.mxu0 %v1652
  %1743 = vmatpush1.msra.mxu0 %v1651
  %1744 = vmatprep.subr.mxu0 %v1648
  %1745 = vmatpush1.msra.mxu0 %v1647
  %1746 = vmatprep.subr.mxu0 %v1644
  %1747 = vmatpush1.msra.mxu0 %v1643
  %1748 = vmatprep.subr.mxu0 %v1640
  %1749 = vmatpush1.msra.mxu0 %v1639
  %1750 = vmatprep.subr.mxu0 %v1636
  %1751 = vmatpush1.msra.mxu0 %v1635
  %1752 = vmatprep.subr.mxu0 %v1632
  %1753 = vmatpush1.msra.mxu0 %v1631
  %1754 = vmatprep.subr.mxu0 %v1628
  %1755 = vmatpush1.msra.mxu0 %v1627
  %1756 = vmatprep.subr.mxu0 %v1624
  %1757 = vmatpush1.msra.mxu0 %v1623
  %1758 = vmatprep.subr.mxu0 %v1620
  %1759 = vmatpush1.msra.mxu0 %v1619
  %1760 = vmatprep.subr.mxu0 %v1616
  %1761 = vmatpush1.msra.mxu0 %v1615
  %1762 = vmatprep.subr.mxu0 %v1612
  %1763 = vmatpush1.msra.mxu0 %v1611
  %1764 = vmatprep.subr.mxu0 %v1608
  %1765 = vmatpush1.msra.mxu0 %v1607
  %1766 = vmatprep.subr.mxu0 %v1604
  %1767 = vmatpush1.msra.mxu0 %v1603
  %1768 = vmatprep.subr.mxu0 0.0
  %1769 = vmatpush2.msra.mxu0 0.0
  %1770 = vmatprep.subr.mxu0 0.0
  %1771 = vmatpush2.msra.mxu0 0.0
  %1772 = vmatprep.subr.mxu0 0.0
  %1773 = vmatpush2.msra.mxu0 0.0
  %1774 = vmatprep.subr.mxu0 0.0
  %1775 = vmatpush2.msra.mxu0 0.0
  %1776 = vmatprep.subr.mxu0 0.0
  %1777 = vmatpush2.msra.mxu0 0.0
  %1778 = vmatprep.subr.mxu0 0.0
  %1779 = vmatpush2.msra.mxu0 0.0
  %1780 = vmatprep.subr.mxu0 0.0
  %1781 = vmatpush2.msra.mxu0 0.0
  %1782 = vmatprep.subr.mxu0 0.0
  %1783 = vmatpush2.msra.mxu0 0.0
  %1784 = vmatprep.subr.mxu0 0.0
  %1785 = vmatpush2.msra.mxu0 0.0
  %1786 = vmatprep.subr.mxu0 0.0
  %1787 = vmatpush2.msra.mxu0 0.0
  %1788 = vmatprep.subr.mxu0 0.0
  %1789 = vmatpush2.msra.mxu0 0.0
  %1790 = vmatprep.subr.mxu0 0.0
  %1791 = vmatpush2.msra.mxu0 0.0
  %1792 = vmatprep.subr.mxu0 0.0
  %1793 = vmatpush2.msra.mxu0 0.0
  %1794 = vmatprep.subr.mxu0 0.0
  %1795 = vmatpush2.msra.mxu0 0.0
  %1796 = vmatprep.subr.mxu0 0.0
  %1797 = vmatpush2.msra.mxu0 0.0
  %1798 = vmatprep.subr.mxu0 0.0
  %1799 = vmatpush2.msra.mxu0 0.0
  %1800 = vmatprep.mubr.f32.mxu0 0.0
  %1801 = vmatmul.mubr.f32.gmra.mxu0 %v1591
  %v1802 = vpop.f32.mrf.mxu0
  %v1803 = vadd.f32 0.0, %v1802
  %v1804 = vpop.f32.mrf.mxu0
  %v1805 = vadd.f32 0.0, %v1804
  %1806 = vdwg.mxu0
  %v1807 = vadd.f32 %v1597, %v1732
  %v1808 = vadd.f32 %v1598, %v1734
  %v1809 = vadd.f32 %v1599, %v1803
  %v1810 = vadd.f32 %v1600, %v1805
  %v1811 = vxor.u32 %v1807, 2147483648
  %v1812 = vmul.f32 %v1811, 1.442695
  %v1813 = vpow.pop %v1812
  %v1814 = vadd.f32 %v1813, 1.0
  %v1815 = vrcp.pop %v1814
  %v1816 = vmul.f32 1.0, %v1815
  %v1817 = vxor.u32 %v1808, 2147483648
  %v1818 = vmul.f32 %v1817, 1.442695
  %v1819 = vpow.pop %v1818
  %v1820 = vadd.f32 %v1819, 1.0
  %v1821 = vrcp.pop %v1820
  %v1822 = vmul.f32 1.0, %v1821
  %v1823 = vtanh.pop %v1809
  %v1824 = vxor.u32 %v1810, 2147483648
  %v1825 = vmul.f32 %v1824, 1.442695
  %v1826 = vpow.pop %v1825
  %v1827 = vadd.f32 %v1826, 1.0
  %v1828 = vrcp.pop %v1827
  %v1829 = vmul.f32 1.0, %v1828
  %v1830 = vmul.f32 %v1822, %v1589
  %v1831 = vmul.f32 %v1816, %v1823
  %v1832 = vadd.f32 %v1830, %v1831
  %v1833 = vtanh.pop %v1832
  %v1834 = vmul.f32 %v1829, %v1833
  %s1835 = scalar_lea.vmem [#allocation3], 40
  %1836 = vst [vmem:[%s1835] sm:$0xff] %v1834
  %s1837 = smul.u32 6, 4
  %s1838 = smul.addr %s1837, 8
  %s1839 = scalar_lea.vmem [#allocation2], %s1838
  %v1840 = vld [vmem:[%s1839] sm:$0xff]
  %v1841 = vld [vmem:[%s1839 + $0x8] sm:$0xff]
  %v1842 = vld [vmem:[%s1839 + $0x10] sm:$0xff]
  %v1843 = vld [vmem:[%s1839 + $0x18] sm:$0xff]
  %v1844 = vld [vmem:[%s2] sm:$0xff]
  %v1845 = vld [vmem:[%s2 + $0x8] sm:$0xff]
  %v1846 = vld [vmem:[%s2 + $0x10] sm:$0xff]
  %v1847 = vld [vmem:[%s2 + $0x18] sm:$0xff]
  %v1848 = vld [vmem:[%s2 + $0x20] sm:$0xff]
  %v1849 = vld [vmem:[%s2 + $0x28] sm:$0xff]
  %v1850 = vld [vmem:[%s2 + $0x30] sm:$0xff]
  %v1851 = vld [vmem:[%s2 + $0x38] sm:$0xff]
  %v1852 = vld [vmem:[%s2 + $0x40] sm:$0xff]
  %v1853 = vld [vmem:[%s2 + $0x48] sm:$0xff]
  %v1854 = vld [vmem:[%s2 + $0x50] sm:$0xff]
  %v1855 = vld [vmem:[%s2 + $0x58] sm:$0xff]
  %v1856 = vld [vmem:[%s2 + $0x60] sm:$0xff]
  %v1857 = vld [vmem:[%s2 + $0x68] sm:$0xff]
  %v1858 = vld [vmem:[%s2 + $0x70] sm:$0xff]
  %v1859 = vld [vmem:[%s2 + $0x78] sm:$0xff]
  %v1860 = vld [vmem:[%s2 + $0x80] sm:$0xff]
  %v1861 = vld [vmem:[%s2 + $0x88] sm:$0xff]
  %v1862 = vld [vmem:[%s2 + $0x90] sm:$0xff]
  %v1863 = vld [vmem:[%s2 + $0x98] sm:$0xff]
  %v1864 = vld [vmem:[%s2 + $0xa0] sm:$0xff]
  %v1865 = vld [vmem:[%s2 + $0xa8] sm:$0xff]
  %v1866 = vld [vmem:[%s2 + $0xb0] sm:$0xff]
  %v1867 = vld [vmem:[%s2 + $0xb8] sm:$0xff]
  %v1868 = vld [vmem:[%s2 + $0xc0] sm:$0xff]
  %v1869 = vld [vmem:[%s2 + $0xc8] sm:$0xff]
  %v1870 = vld [vmem:[%s2 + $0xd0] sm:$0xff]
  %v1871 = vld [vmem:[%s2 + $0xd8] sm:$0xff]
  %v1872 = vld [vmem:[%s2 + $0xe0] sm:$0xff]
  %v1873 = vld [vmem:[%s2 + $0xe8] sm:$0xff]
  %v1874 = vld [vmem:[%s2 + $0xf0] sm:$0xff]
  %v1875 = vld [vmem:[%s2 + $0xf8] sm:$0xff]
  %v1876 = vld [vmem:[%s2 + $0x100] sm:$0xff]
  %v1877 = vld [vmem:[%s2 + $0x108] sm:$0xff]
  %v1878 = vld [vmem:[%s2 + $0x110] sm:$0xff]
  %v1879 = vld [vmem:[%s2 + $0x118] sm:$0xff]
  %v1880 = vld [vmem:[%s2 + $0x120] sm:$0xff]
  %v1881 = vld [vmem:[%s2 + $0x128] sm:$0xff]
  %v1882 = vld [vmem:[%s2 + $0x130] sm:$0xff]
  %v1883 = vld [vmem:[%s2 + $0x138] sm:$0xff]
  %v1884 = vld [vmem:[%s2 + $0x140] sm:$0xff]
  %v1885 = vld [vmem:[%s2 + $0x148] sm:$0xff]
  %v1886 = vld [vmem:[%s2 + $0x150] sm:$0xff]
  %v1887 = vld [vmem:[%s2 + $0x158] sm:$0xff]
  %v1888 = vld [vmem:[%s2 + $0x160] sm:$0xff]
  %v1889 = vld [vmem:[%s2 + $0x168] sm:$0xff]
  %v1890 = vld [vmem:[%s2 + $0x170] sm:$0xff]
  %v1891 = vld [vmem:[%s2 + $0x178] sm:$0xff]
  %v1892 = vld [vmem:[%s2 + $0x180] sm:$0xff]
  %v1893 = vld [vmem:[%s2 + $0x188] sm:$0xff]
  %v1894 = vld [vmem:[%s2 + $0x190] sm:$0xff]
  %v1895 = vld [vmem:[%s2 + $0x198] sm:$0xff]
  %v1896 = vld [vmem:[%s2 + $0x1a0] sm:$0xff]
  %v1897 = vld [vmem:[%s2 + $0x1a8] sm:$0xff]
  %v1898 = vld [vmem:[%s2 + $0x1b0] sm:$0xff]
  %v1899 = vld [vmem:[%s2 + $0x1b8] sm:$0xff]
  %v1900 = vld [vmem:[%s2 + $0x1c0] sm:$0xff]
  %v1901 = vld [vmem:[%s2 + $0x1c8] sm:$0xff]
  %v1902 = vld [vmem:[%s2 + $0x1d0] sm:$0xff]
  %v1903 = vld [vmem:[%s2 + $0x1d8] sm:$0xff]
  %v1904 = vld [vmem:[%s2 + $0x1e0] sm:$0xff]
  %v1905 = vld [vmem:[%s2 + $0x1e8] sm:$0xff]
  %v1906 = vld [vmem:[%s2 + $0x1f0] sm:$0xff]
  %v1907 = vld [vmem:[%s2 + $0x1f8] sm:$0xff]
  %1908 = vmatprep.subr.mxu0 %v1905
  %1909 = vmatpush1.msra.mxu0 %v1904
  %1910 = vmatprep.subr.mxu0 %v1901
  %1911 = vmatpush1.msra.mxu0 %v1900
  %1912 = vmatprep.subr.mxu0 %v1897
  %1913 = vmatpush1.msra.mxu0 %v1896
  %1914 = vmatprep.subr.mxu0 %v1893
  %1915 = vmatpush1.msra.mxu0 %v1892
  %1916 = vmatprep.subr.mxu0 %v1889
  %1917 = vmatpush1.msra.mxu0 %v1888
  %1918 = vmatprep.subr.mxu0 %v1885
  %1919 = vmatpush1.msra.mxu0 %v1884
  %1920 = vmatprep.subr.mxu0 %v1881
  %1921 = vmatpush1.msra.mxu0 %v1880
  %1922 = vmatprep.subr.mxu0 %v1877
  %1923 = vmatpush1.msra.mxu0 %v1876
  %1924 = vmatprep.subr.mxu0 %v1873
  %1925 = vmatpush1.msra.mxu0 %v1872
  %1926 = vmatprep.subr.mxu0 %v1869
  %1927 = vmatpush1.msra.mxu0 %v1868
  %1928 = vmatprep.subr.mxu0 %v1865
  %1929 = vmatpush1.msra.mxu0 %v1864
  %1930 = vmatprep.subr.mxu0 %v1861
  %1931 = vmatpush1.msra.mxu0 %v1860
  %1932 = vmatprep.subr.mxu0 %v1857
  %1933 = vmatpush1.msra.mxu0 %v1856
  %1934 = vmatprep.subr.mxu0 %v1853
  %1935 = vmatpush1.msra.mxu0 %v1852
  %1936 = vmatprep.subr.mxu0 %v1849
  %1937 = vmatpush1.msra.mxu0 %v1848
  %1938 = vmatprep.subr.mxu0 %v1845
  %1939 = vmatpush1.msra.mxu0 %v1844
  %1940 = vmatprep.subr.mxu0 0.0
  %1941 = vmatpush2.msra.mxu0 0.0
  %1942 = vmatprep.subr.mxu0 0.0
  %1943 = vmatpush2.msra.mxu0 0.0
  %1944 = vmatprep.subr.mxu0 0.0
  %1945 = vmatpush2.msra.mxu0 0.0
  %1946 = vmatprep.subr.mxu0 0.0
  %1947 = vmatpush2.msra.mxu0 0.0
  %1948 = vmatprep.subr.mxu0 0.0
  %1949 = vmatpush2.msra.mxu0 0.0
  %1950 = vmatprep.subr.mxu0 0.0
  %1951 = vmatpush2.msra.mxu0 0.0
  %1952 = vmatprep.subr.mxu0 0.0
  %1953 = vmatpush2.msra.mxu0 0.0
  %1954 = vmatprep.subr.mxu0 0.0
  %1955 = vmatpush2.msra.mxu0 0.0
  %1956 = vmatprep.subr.mxu0 0.0
  %1957 = vmatpush2.msra.mxu0 0.0
  %1958 = vmatprep.subr.mxu0 0.0
  %1959 = vmatpush2.msra.mxu0 0.0
  %1960 = vmatprep.subr.mxu0 0.0
  %1961 = vmatpush2.msra.mxu0 0.0
  %1962 = vmatprep.subr.mxu0 0.0
  %1963 = vmatpush2.msra.mxu0 0.0
  %1964 = vmatprep.subr.mxu0 0.0
  %1965 = vmatpush2.msra.mxu0 0.0
  %1966 = vmatprep.subr.mxu0 0.0
  %1967 = vmatpush2.msra.mxu0 0.0
  %1968 = vmatprep.subr.mxu0 0.0
  %1969 = vmatpush2.msra.mxu0 0.0
  %1970 = vmatprep.subr.mxu0 0.0
  %1971 = vmatpush2.msra.mxu0 0.0
  %1972 = vmatprep.mubr.f32.mxu0 0.0
  %1973 = vmatmul.mubr.f32.gmra.mxu0 %v1834
  %v1974 = vpop.f32.mrf.mxu0
  %v1975 = vadd.f32 0.0, %v1974
  %v1976 = vpop.f32.mrf.mxu0
  %v1977 = vadd.f32 0.0, %v1976
  %1978 = vdwg.mxu0
  %1979 = vmatprep.subr.mxu0 %v1907
  %1980 = vmatpush1.msra.mxu0 %v1906
  %1981 = vmatprep.subr.mxu0 %v1903
  %1982 = vmatpush1.msra.mxu0 %v1902
  %1983 = vmatprep.subr.mxu0 %v1899
  %1984 = vmatpush1.msra.mxu0 %v1898
  %1985 = vmatprep.subr.mxu0 %v1895
  %1986 = vmatpush1.msra.mxu0 %v1894
  %1987 = vmatprep.subr.mxu0 %v1891
  %1988 = vmatpush1.msra.mxu0 %v1890
  %1989 = vmatprep.subr.mxu0 %v1887
  %1990 = vmatpush1.msra.mxu0 %v1886
  %1991 = vmatprep.subr.mxu0 %v1883
  %1992 = vmatpush1.msra.mxu0 %v1882
  %1993 = vmatprep.subr.mxu0 %v1879
  %1994 = vmatpush1.msra.mxu0 %v1878
  %1995 = vmatprep.subr.mxu0 %v1875
  %1996 = vmatpush1.msra.mxu0 %v1874
  %1997 = vmatprep.subr.mxu0 %v1871
  %1998 = vmatpush1.msra.mxu0 %v1870
  %1999 = vmatprep.subr.mxu0 %v1867
  %2000 = vmatpush1.msra.mxu0 %v1866
  %2001 = vmatprep.subr.mxu0 %v1863
  %2002 = vmatpush1.msra.mxu0 %v1862
  %2003 = vmatprep.subr.mxu0 %v1859
  %2004 = vmatpush1.msra.mxu0 %v1858
  %2005 = vmatprep.subr.mxu0 %v1855
  %2006 = vmatpush1.msra.mxu0 %v1854
  %2007 = vmatprep.subr.mxu0 %v1851
  %2008 = vmatpush1.msra.mxu0 %v1850
  %2009 = vmatprep.subr.mxu0 %v1847
  %2010 = vmatpush1.msra.mxu0 %v1846
  %2011 = vmatprep.subr.mxu0 0.0
  %2012 = vmatpush2.msra.mxu0 0.0
  %2013 = vmatprep.subr.mxu0 0.0
  %2014 = vmatpush2.msra.mxu0 0.0
  %2015 = vmatprep.subr.mxu0 0.0
  %2016 = vmatpush2.msra.mxu0 0.0
  %2017 = vmatprep.subr.mxu0 0.0
  %2018 = vmatpush2.msra.mxu0 0.0
  %2019 = vmatprep.subr.mxu0 0.0
  %2020 = vmatpush2.msra.mxu0 0.0
  %2021 = vmatprep.subr.mxu0 0.0
  %2022 = vmatpush2.msra.mxu0 0.0
  %2023 = vmatprep.subr.mxu0 0.0
  %2024 = vmatpush2.msra.mxu0 0.0
  %2025 = vmatprep.subr.mxu0 0.0
  %2026 = vmatpush2.msra.mxu0 0.0
  %2027 = vmatprep.subr.mxu0 0.0
  %2028 = vmatpush2.msra.mxu0 0.0
  %2029 = vmatprep.subr.mxu0 0.0
  %2030 = vmatpush2.msra.mxu0 0.0
  %2031 = vmatprep.subr.mxu0 0.0
  %2032 = vmatpush2.msra.mxu0 0.0
  %2033 = vmatprep.subr.mxu0 0.0
  %2034 = vmatpush2.msra.mxu0 0.0
  %2035 = vmatprep.subr.mxu0 0.0
  %2036 = vmatpush2.msra.mxu0 0.0
  %2037 = vmatprep.subr.mxu0 0.0
  %2038 = vmatpush2.msra.mxu0 0.0
  %2039 = vmatprep.subr.mxu0 0.0
  %2040 = vmatpush2.msra.mxu0 0.0
  %2041 = vmatprep.subr.mxu0 0.0
  %2042 = vmatpush2.msra.mxu0 0.0
  %2043 = vmatprep.mubr.f32.mxu0 0.0
  %2044 = vmatmul.mubr.f32.gmra.mxu0 %v1834
  %v2045 = vpop.f32.mrf.mxu0
  %v2046 = vadd.f32 0.0, %v2045
  %v2047 = vpop.f32.mrf.mxu0
  %v2048 = vadd.f32 0.0, %v2047
  %2049 = vdwg.mxu0
  %v2050 = vadd.f32 %v1840, %v1975
  %v2051 = vadd.f32 %v1841, %v1977
  %v2052 = vadd.f32 %v1842, %v2046
  %v2053 = vadd.f32 %v1843, %v2048
  %v2054 = vxor.u32 %v2050, 2147483648
  %v2055 = vmul.f32 %v2054, 1.442695
  %v2056 = vpow.pop %v2055
  %v2057 = vadd.f32 %v2056, 1.0
  %v2058 = vrcp.pop %v2057
  %v2059 = vmul.f32 1.0, %v2058
  %v2060 = vxor.u32 %v2051, 2147483648
  %v2061 = vmul.f32 %v2060, 1.442695
  %v2062 = vpow.pop %v2061
  %v2063 = vadd.f32 %v2062, 1.0
  %v2064 = vrcp.pop %v2063
  %v2065 = vmul.f32 1.0, %v2064
  %v2066 = vtanh.pop %v2052
  %v2067 = vxor.u32 %v2053, 2147483648
  %v2068 = vmul.f32 %v2067, 1.442695
  %v2069 = vpow.pop %v2068
  %v2070 = vadd.f32 %v2069, 1.0
  %v2071 = vrcp.pop %v2070
  %v2072 = vmul.f32 1.0, %v2071
  %v2073 = vmul.f32 %v2065, %v1832
  %v2074 = vmul.f32 %v2059, %v2066
  %v2075 = vadd.f32 %v2073, %v2074
  %v2076 = vtanh.pop %v2075
  %v2077 = vmul.f32 %v2072, %v2076
  %s2078 = scalar_lea.vmem [#allocation3], 48
  %2079 = vst [vmem:[%s2078] sm:$0xff] %v2077
  %s2080 = smul.u32 7, 4
  %s2081 = smul.addr %s2080, 8
  %s2082 = scalar_lea.vmem [#allocation2], %s2081
  %v2083 = vld [vmem:[%s2082] sm:$0xff]
  %v2084 = vld [vmem:[%s2082 + $0x8] sm:$0xff]
  %v2085 = vld [vmem:[%s2082 + $0x10] sm:$0xff]
  %v2086 = vld [vmem:[%s2082 + $0x18] sm:$0xff]
  %v2087 = vld [vmem:[%s2] sm:$0xff]
  %v2088 = vld [vmem:[%s2 + $0x8] sm:$0xff]
  %v2089 = vld [vmem:[%s2 + $0x10] sm:$0xff]
  %v2090 = vld [vmem:[%s2 + $0x18] sm:$0xff]
  %v2091 = vld [vmem:[%s2 + $0x20] sm:$0xff]
  %v2092 = vld [vmem:[%s2 + $0x28] sm:$0xff]
  %v2093 = vld [vmem:[%s2 + $0x30] sm:$0xff]
  %v2094 = vld [vmem:[%s2 + $0x38] sm:$0xff]
  %v2095 = vld [vmem:[%s2 + $0x40] sm:$0xff]
  %v2096 = vld [vmem:[%s2 + $0x48] sm:$0xff]
  %v2097 = vld [vmem:[%s2 + $0x50] sm:$0xff]
  %v2098 = vld [vmem:[%s2 + $0x58] sm:$0xff]
  %v2099 = vld [vmem:[%s2 + $0x60] sm:$0xff]
  %v2100 = vld [vmem:[%s2 + $0x68] sm:$0xff]
  %v2101 = vld [vmem:[%s2 + $0x70] sm:$0xff]
  %v2102 = vld [vmem:[%s2 + $0x78] sm:$0xff]
  %v2103 = vld [vmem:[%s2 + $0x80] sm:$0xff]
  %v2104 = vld [vmem:[%s2 + $0x88] sm:$0xff]
  %v2105 = vld [vmem:[%s2 + $0x90] sm:$0xff]
  %v2106 = vld [vmem:[%s2 + $0x98] sm:$0xff]
  %v2107 = vld [vmem:[%s2 + $0xa0] sm:$0xff]
  %v2108 = vld [vmem:[%s2 + $0xa8] sm:$0xff]
  %v2109 = vld [vmem:[%s2 + $0xb0] sm:$0xff]
  %v2110 = vld [vmem:[%s2 + $0xb8] sm:$0xff]
  %v2111 = vld [vmem:[%s2 + $0xc0] sm:$0xff]
  %v2112 = vld [vmem:[%s2 + $0xc8] sm:$0xff]
  %v2113 = vld [vmem:[%s2 + $0xd0] sm:$0xff]
  %v2114 = vld [vmem:[%s2 + $0xd8] sm:$0xff]
  %v2115 = vld [vmem:[%s2 + $0xe0] sm:$0xff]
  %v2116 = vld [vmem:[%s2 + $0xe8] sm:$0xff]
  %v2117 = vld [vmem:[%s2 + $0xf0] sm:$0xff]
  %v2118 = vld [vmem:[%s2 + $0xf8] sm:$0xff]
  %v2119 = vld [vmem:[%s2 + $0x100] sm:$0xff]
  %v2120 = vld [vmem:[%s2 + $0x108] sm:$0xff]
  %v2121 = vld [vmem:[%s2 + $0x110] sm:$0xff]
  %v2122 = vld [vmem:[%s2 + $0x118] sm:$0xff]
  %v2123 = vld [vmem:[%s2 + $0x120] sm:$0xff]
  %v2124 = vld [vmem:[%s2 + $0x128] sm:$0xff]
  %v2125 = vld [vmem:[%s2 + $0x130] sm:$0xff]
  %v2126 = vld [vmem:[%s2 + $0x138] sm:$0xff]
  %v2127 = vld [vmem:[%s2 + $0x140] sm:$0xff]
  %v2128 = vld [vmem:[%s2 + $0x148] sm:$0xff]
  %v2129 = vld [vmem:[%s2 + $0x150] sm:$0xff]
  %v2130 = vld [vmem:[%s2 + $0x158] sm:$0xff]
  %v2131 = vld [vmem:[%s2 + $0x160] sm:$0xff]
  %v2132 = vld [vmem:[%s2 + $0x168] sm:$0xff]
  %v2133 = vld [vmem:[%s2 + $0x170] sm:$0xff]
  %v2134 = vld [vmem:[%s2 + $0x178] sm:$0xff]
  %v2135 = vld [vmem:[%s2 + $0x180] sm:$0xff]
  %v2136 = vld [vmem:[%s2 + $0x188] sm:$0xff]
  %v2137 = vld [vmem:[%s2 + $0x190] sm:$0xff]
  %v2138 = vld [vmem:[%s2 + $0x198] sm:$0xff]
  %v2139 = vld [vmem:[%s2 + $0x1a0] sm:$0xff]
  %v2140 = vld [vmem:[%s2 + $0x1a8] sm:$0xff]
  %v2141 = vld [vmem:[%s2 + $0x1b0] sm:$0xff]
  %v2142 = vld [vmem:[%s2 + $0x1b8] sm:$0xff]
  %v2143 = vld [vmem:[%s2 + $0x1c0] sm:$0xff]
  %v2144 = vld [vmem:[%s2 + $0x1c8] sm:$0xff]
  %v2145 = vld [vmem:[%s2 + $0x1d0] sm:$0xff]
  %v2146 = vld [vmem:[%s2 + $0x1d8] sm:$0xff]
  %v2147 = vld [vmem:[%s2 + $0x1e0] sm:$0xff]
  %v2148 = vld [vmem:[%s2 + $0x1e8] sm:$0xff]
  %v2149 = vld [vmem:[%s2 + $0x1f0] sm:$0xff]
  %v2150 = vld [vmem:[%s2 + $0x1f8] sm:$0xff]
  %2151 = vmatprep.subr.mxu0 %v2148
  %2152 = vmatpush1.msra.mxu0 %v2147
  %2153 = vmatprep.subr.mxu0 %v2144
  %2154 = vmatpush1.msra.mxu0 %v2143
  %2155 = vmatprep.subr.mxu0 %v2140
  %2156 = vmatpush1.msra.mxu0 %v2139
  %2157 = vmatprep.subr.mxu0 %v2136
  %2158 = vmatpush1.msra.mxu0 %v2135
  %2159 = vmatprep.subr.mxu0 %v2132
  %2160 = vmatpush1.msra.mxu0 %v2131
  %2161 = vmatprep.subr.mxu0 %v2128
  %2162 = vmatpush1.msra.mxu0 %v2127
  %2163 = vmatprep.subr.mxu0 %v2124
  %2164 = vmatpush1.msra.mxu0 %v2123
  %2165 = vmatprep.subr.mxu0 %v2120
  %2166 = vmatpush1.msra.mxu0 %v2119
  %2167 = vmatprep.subr.mxu0 %v2116
  %2168 = vmatpush1.msra.mxu0 %v2115
  %2169 = vmatprep.subr.mxu0 %v2112
  %2170 = vmatpush1.msra.mxu0 %v2111
  %2171 = vmatprep.subr.mxu0 %v2108
  %2172 = vmatpush1.msra.mxu0 %v2107
  %2173 = vmatprep.subr.mxu0 %v2104
  %2174 = vmatpush1.msra.mxu0 %v2103
  %2175 = vmatprep.subr.mxu0 %v2100
  %2176 = vmatpush1.msra.mxu0 %v2099
  %2177 = vmatprep.subr.mxu0 %v2096
  %2178 = vmatpush1.msra.mxu0 %v2095
  %2179 = vmatprep.subr.mxu0 %v2092
  %2180 = vmatpush1.msra.mxu0 %v2091
  %2181 = vmatprep.subr.mxu0 %v2088
  %2182 = vmatpush1.msra.mxu0 %v2087
  %2183 = vmatprep.subr.mxu0 0.0
  %2184 = vmatpush2.msra.mxu0 0.0
  %2185 = vmatprep.subr.mxu0 0.0
  %2186 = vmatpush2.msra.mxu0 0.0
  %2187 = vmatprep.subr.mxu0 0.0
  %2188 = vmatpush2.msra.mxu0 0.0
  %2189 = vmatprep.subr.mxu0 0.0
  %2190 = vmatpush2.msra.mxu0 0.0
  %2191 = vmatprep.subr.mxu0 0.0
  %2192 = vmatpush2.msra.mxu0 0.0
  %2193 = vmatprep.subr.mxu0 0.0
  %2194 = vmatpush2.msra.mxu0 0.0
  %2195 = vmatprep.subr.mxu0 0.0
  %2196 = vmatpush2.msra.mxu0 0.0
  %2197 = vmatprep.subr.mxu0 0.0
  %2198 = vmatpush2.msra.mxu0 0.0
  %2199 = vmatprep.subr.mxu0 0.0
  %2200 = vmatpush2.msra.mxu0 0.0
  %2201 = vmatprep.subr.mxu0 0.0
  %2202 = vmatpush2.msra.mxu0 0.0
  %2203 = vmatprep.subr.mxu0 0.0
  %2204 = vmatpush2.msra.mxu0 0.0
  %2205 = vmatprep.subr.mxu0 0.0
  %2206 = vmatpush2.msra.mxu0 0.0
  %2207 = vmatprep.subr.mxu0 0.0
  %2208 = vmatpush2.msra.mxu0 0.0
  %2209 = vmatprep.subr.mxu0 0.0
  %2210 = vmatpush2.msra.mxu0 0.0
  %2211 = vmatprep.subr.mxu0 0.0
  %2212 = vmatpush2.msra.mxu0 0.0
  %2213 = vmatprep.subr.mxu0 0.0
  %2214 = vmatpush2.msra.mxu0 0.0
  %2215 = vmatprep.mubr.f32.mxu0 0.0
  %2216 = vmatmul.mubr.f32.gmra.mxu0 %v2077
  %v2217 = vpop.f32.mrf.mxu0
  %v2218 = vadd.f32 0.0, %v2217
  %v2219 = vpop.f32.mrf.mxu0
  %v2220 = vadd.f32 0.0, %v2219
  %2221 = vdwg.mxu0
  %2222 = vmatprep.subr.mxu0 %v2150
  %2223 = vmatpush1.msra.mxu0 %v2149
  %2224 = vmatprep.subr.mxu0 %v2146
  %2225 = vmatpush1.msra.mxu0 %v2145
  %2226 = vmatprep.subr.mxu0 %v2142
  %2227 = vmatpush1.msra.mxu0 %v2141
  %2228 = vmatprep.subr.mxu0 %v2138
  %2229 = vmatpush1.msra.mxu0 %v2137
  %2230 = vmatprep.subr.mxu0 %v2134
  %2231 = vmatpush1.msra.mxu0 %v2133
  %2232 = vmatprep.subr.mxu0 %v2130
  %2233 = vmatpush1.msra.mxu0 %v2129
  %2234 = vmatprep.subr.mxu0 %v2126
  %2235 = vmatpush1.msra.mxu0 %v2125
  %2236 = vmatprep.subr.mxu0 %v2122
  %2237 = vmatpush1.msra.mxu0 %v2121
  %2238 = vmatprep.subr.mxu0 %v2118
  %2239 = vmatpush1.msra.mxu0 %v2117
  %2240 = vmatprep.subr.mxu0 %v2114
  %2241 = vmatpush1.msra.mxu0 %v2113
  %2242 = vmatprep.subr.mxu0 %v2110
  %2243 = vmatpush1.msra.mxu0 %v2109
  %2244 = vmatprep.subr.mxu0 %v2106
  %2245 = vmatpush1.msra.mxu0 %v2105
  %2246 = vmatprep.subr.mxu0 %v2102
  %2247 = vmatpush1.msra.mxu0 %v2101
  %2248 = vmatprep.subr.mxu0 %v2098
  %2249 = vmatpush1.msra.mxu0 %v2097
  %2250 = vmatprep.subr.mxu0 %v2094
  %2251 = vmatpush1.msra.mxu0 %v2093
  %2252 = vmatprep.subr.mxu0 %v2090
  %2253 = vmatpush1.msra.mxu0 %v2089
  %2254 = vmatprep.subr.mxu0 0.0
  %2255 = vmatpush2.msra.mxu0 0.0
  %2256 = vmatprep.subr.mxu0 0.0
  %2257 = vmatpush2.msra.mxu0 0.0
  %2258 = vmatprep.subr.mxu0 0.0
  %2259 = vmatpush2.msra.mxu0 0.0
  %2260 = vmatprep.subr.mxu0 0.0
  %2261 = vmatpush2.msra.mxu0 0.0
  %2262 = vmatprep.subr.mxu0 0.0
  %2263 = vmatpush2.msra.mxu0 0.0
  %2264 = vmatprep.subr.mxu0 0.0
  %2265 = vmatpush2.msra.mxu0 0.0
  %2266 = vmatprep.subr.mxu0 0.0
  %2267 = vmatpush2.msra.mxu0 0.0
  %2268 = vmatprep.subr.mxu0 0.0
  %2269 = vmatpush2.msra.mxu0 0.0
  %2270 = vmatprep.subr.mxu0 0.0
  %2271 = vmatpush2.msra.mxu0 0.0
  %2272 = vmatprep.subr.mxu0 0.0
  %2273 = vmatpush2.msra.mxu0 0.0
  %2274 = vmatprep.subr.mxu0 0.0
  %2275 = vmatpush2.msra.mxu0 0.0
  %2276 = vmatprep.subr.mxu0 0.0
  %2277 = vmatpush2.msra.mxu0 0.0
  %2278 = vmatprep.subr.mxu0 0.0
  %2279 = vmatpush2.msra.mxu0 0.0
  %2280 = vmatprep.subr.mxu0 0.0
  %2281 = vmatpush2.msra.mxu0 0.0
  %2282 = vmatprep.subr.mxu0 0.0
  %2283 = vmatpush2.msra.mxu0 0.0
  %2284 = vmatprep.subr.mxu0 0.0
  %2285 = vmatpush2.msra.mxu0 0.0
  %2286 = vmatprep.mubr.f32.mxu0 0.0
  %2287 = vmatmul.mubr.f32.gmra.mxu0 %v2077
  %v2288 = vpop.f32.mrf.mxu0
  %v2289 = vadd.f32 0.0, %v2288
  %v2290 = vpop.f32.mrf.mxu0
  %v2291 = vadd.f32 0.0, %v2290
  %2292 = vdwg.mxu0
  %v2293 = vadd.f32 %v2083, %v2218
  %v2294 = vadd.f32 %v2084, %v2220
  %v2295 = vadd.f32 %v2085, %v2289
  %v2296 = vadd.f32 %v2086, %v2291
  %v2297 = vxor.u32 %v2293, 2147483648
  %v2298 = vmul.f32 %v2297, 1.442695
  %v2299 = vpow.pop %v2298
  %v2300 = vadd.f32 %v2299, 1.0
  %v2301 = vrcp.pop %v2300
  %v2302 = vmul.f32 1.0, %v2301
  %v2303 = vxor.u32 %v2294, 2147483648
  %v2304 = vmul.f32 %v2303, 1.442695
  %v2305 = vpow.pop %v2304
  %v2306 = vadd.f32 %v2305, 1.0
  %v2307 = vrcp.pop %v2306
  %v2308 = vmul.f32 1.0, %v2307
  %v2309 = vtanh.pop %v2295
  %v2310 = vxor.u32 %v2296, 2147483648
  %v2311 = vmul.f32 %v2310, 1.442695
  %v2312 = vpow.pop %v2311
  %v2313 = vadd.f32 %v2312, 1.0
  %v2314 = vrcp.pop %v2313
  %v2315 = vmul.f32 1.0, %v2314
  %v2316 = vmul.f32 %v2308, %v2075
  %v2317 = vmul.f32 %v2302, %v2309
  %v2318 = vadd.f32 %v2316, %v2317
  %v2319 = vtanh.pop %v2318
  %v2320 = vmul.f32 %v2315, %v2319
  %s2321 = scalar_lea.vmem [#allocation3], 56
  %2322 = vst [vmem:[%s2321] sm:$0xff] %v2320
  %2323 = vst [vmem:[%s7] sm:$0xff] %v2320
  %2324 = vst [vmem:[%s8] sm:$0xff] %v2318
  %v2325 = vld [vmem:[#allocation3] sm:$0xff]
  %v2326 = vld [vmem:[#allocation3 + $0x8] sm:$0xff]
  %v2327 = vld [vmem:[#allocation3 + $0x10] sm:$0xff]
  %v2328 = vld [vmem:[#allocation3 + $0x18] sm:$0xff]
  %v2329 = vld [vmem:[#allocation3 + $0x20] sm:$0xff]
  %v2330 = vld [vmem:[#allocation3 + $0x28] sm:$0xff]
  %v2331 = vld [vmem:[#allocation3 + $0x30] sm:$0xff]
  %v2332 = vld [vmem:[#allocation3 + $0x38] sm:$0xff]
  %v2333 = vld [vmem:[%s4] sm:$0xff]
  %v2334 = vld [vmem:[%s4 + $0x8] sm:$0xff]
  %v2335 = vld [vmem:[%s4 + $0x10] sm:$0xff]
  %v2336 = vld [vmem:[%s4 + $0x18] sm:$0xff]
  %v2337 = vld [vmem:[%s4 + $0x20] sm:$0xff]
  %v2338 = vld [vmem:[%s4 + $0x28] sm:$0xff]
  %v2339 = vld [vmem:[%s4 + $0x30] sm:$0xff]
  %v2340 = vld [vmem:[%s4 + $0x38] sm:$0xff]
  %v2341 = vld [vmem:[%s4 + $0x40] sm:$0xff]
  %v2342 = vld [vmem:[%s4 + $0x48] sm:$0xff]
  %v2343 = vld [vmem:[%s4 + $0x50] sm:$0xff]
  %v2344 = vld [vmem:[%s4 + $0x58] sm:$0xff]
  %v2345 = vld [vmem:[%s4 + $0x60] sm:$0xff]
  %v2346 = vld [vmem:[%s4 + $0x68] sm:$0xff]
  %v2347 = vld [vmem:[%s4 + $0x70] sm:$0xff]
  %v2348 = vld [vmem:[%s4 + $0x78] sm:$0xff]
  %v2349 = vld [vmem:[%s4 + $0x80] sm:$0xff]
  %v2350 = vld [vmem:[%s4 + $0x88] sm:$0xff]
  %v2351 = vld [vmem:[%s4 + $0x90] sm:$0xff]
  %v2352 = vld [vmem:[%s4 + $0x98] sm:$0xff]
  %v2353 = vld [vmem:[%s4 + $0xa0] sm:$0xff]
  %v2354 = vld [vmem:[%s4 + $0xa8] sm:$0xff]
  %v2355 = vld [vmem:[%s4 + $0xb0] sm:$0xff]
  %v2356 = vld [vmem:[%s4 + $0xb8] sm:$0xff]
  %v2357 = vld [vmem:[%s4 + $0xc0] sm:$0xff]
  %v2358 = vld [vmem:[%s4 + $0xc8] sm:$0xff]
  %v2359 = vld [vmem:[%s4 + $0xd0] sm:$0xff]
  %v2360 = vld [vmem:[%s4 + $0xd8] sm:$0xff]
  %v2361 = vld [vmem:[%s4 + $0xe0] sm:$0xff]
  %v2362 = vld [vmem:[%s4 + $0xe8] sm:$0xff]
  %v2363 = vld [vmem:[%s4 + $0xf0] sm:$0xff]
  %v2364 = vld [vmem:[%s4 + $0xf8] sm:$0xff]
  %v2365 = vld [vmem:[%s4 + $0x100] sm:$0xff]
  %v2366 = vld [vmem:[%s4 + $0x108] sm:$0xff]
  %v2367 = vld [vmem:[%s4 + $0x110] sm:$0xff]
  %v2368 = vld [vmem:[%s4 + $0x118] sm:$0xff]
  %v2369 = vld [vmem:[%s4 + $0x120] sm:$0xff]
  %v2370 = vld [vmem:[%s4 + $0x128] sm:$0xff]
  %v2371 = vld [vmem:[%s4 + $0x130] sm:$0xff]
  %v2372 = vld [vmem:[%s4 + $0x138] sm:$0xff]
  %v2373 = vld [vmem:[%s4 + $0x140] sm:$0xff]
  %v2374 = vld [vmem:[%s4 + $0x148] sm:$0xff]
  %v2375 = vld [vmem:[%s4 + $0x150] sm:$0xff]
  %v2376 = vld [vmem:[%s4 + $0x158] sm:$0xff]
  %v2377 = vld [vmem:[%s4 + $0x160] sm:$0xff]
  %v2378 = vld [vmem:[%s4 + $0x168] sm:$0xff]
  %v2379 = vld [vmem:[%s4 + $0x170] sm:$0xff]
  %v2380 = vld [vmem:[%s4 + $0x178] sm:$0xff]
  %v2381 = vld [vmem:[%s4 + $0x180] sm:$0xff]
  %v2382 = vld [vmem:[%s4 + $0x188] sm:$0xff]
  %v2383 = vld [vmem:[%s4 + $0x190] sm:$0xff]
  %v2384 = vld [vmem:[%s4 + $0x198] sm:$0xff]
  %v2385 = vld [vmem:[%s4 + $0x1a0] sm:$0xff]
  %v2386 = vld [vmem:[%s4 + $0x1a8] sm:$0xff]
  %v2387 = vld [vmem:[%s4 + $0x1b0] sm:$0xff]
  %v2388 = vld [vmem:[%s4 + $0x1b8] sm:$0xff]
  %v2389 = vld [vmem:[%s4 + $0x1c0] sm:$0xff]
  %v2390 = vld [vmem:[%s4 + $0x1c8] sm:$0xff]
  %v2391 = vld [vmem:[%s4 + $0x1d0] sm:$0xff]
  %v2392 = vld [vmem:[%s4 + $0x1d8] sm:$0xff]
  %v2393 = vld [vmem:[%s4 + $0x1e0] sm:$0xff]
  %v2394 = vld [vmem:[%s4 + $0x1e8] sm:$0xff]
  %v2395 = vld [vmem:[%s4 + $0x1f0] sm:$0xff]
  %v2396 = vld [vmem:[%s4 + $0x1f8] sm:$0xff]
  %v2397 = vld [vmem:[%s6] sm:$0xf]
  %v2399 = vlaneseq
  %v2400 = vshrl.u32 %v2399, 7
  %v2401 = vsub.s32 0, %v2400
  %v2402 = vrot.slane %v2397, %v2401
  %v2403 = vlaneseq
  %v2404 = vshrl.u32 %v2403, 7
  %v2405 = vsub.s32 1, %v2404
  %v2406 = vrot.slane %v2397, %v2405
  %v2407 = vlaneseq
  %v2408 = vshrl.u32 %v2407, 7
  %v2409 = vsub.s32 2, %v2408
  %v2410 = vrot.slane %v2397, %v2409
  %v2411 = vlaneseq
  %v2412 = vshrl.u32 %v2411, 7
  %v2413 = vsub.s32 3, %v2412
  %v2414 = vrot.slane %v2397, %v2413
  %2419 = vmatprep.subr.mxu0 %v2394
  %2420 = vmatpush1.msra.mxu0 %v2393
  %2421 = vmatprep.subr.mxu0 %v2390
  %2422 = vmatpush1.msra.mxu0 %v2389
  %2423 = vmatprep.subr.mxu0 %v2386
  %2424 = vmatpush1.msra.mxu0 %v2385
  %2425 = vmatprep.subr.mxu0 %v2382
  %2426 = vmatpush1.msra.mxu0 %v2381
  %2427 = vmatprep.subr.mxu0 %v2378
  %2428 = vmatpush1.msra.mxu0 %v2377
  %2429 = vmatprep.subr.mxu0 %v2374
  %2430 = vmatpush1.msra.mxu0 %v2373
  %2431 = vmatprep.subr.mxu0 %v2370
  %2432 = vmatpush1.msra.mxu0 %v2369
  %2433 = vmatprep.subr.mxu0 %v2366
  %2434 = vmatpush1.msra.mxu0 %v2365
  %2435 = vmatprep.subr.mxu0 %v2362
  %2436 = vmatpush1.msra.mxu0 %v2361
  %2437 = vmatprep.subr.mxu0 %v2358
  %2438 = vmatpush1.msra.mxu0 %v2357
  %2439 = vmatprep.subr.mxu0 %v2354
  %2440 = vmatpush1.msra.mxu0 %v2353
  %2441 = vmatprep.subr.mxu0 %v2350
  %2442 = vmatpush1.msra.mxu0 %v2349
  %2443 = vmatprep.subr.mxu0 %v2346
  %2444 = vmatpush1.msra.mxu0 %v2345
  %2445 = vmatprep.subr.mxu0 %v2342
  %2446 = vmatpush1.msra.mxu0 %v2341
  %2447 = vmatprep.subr.mxu0 %v2338
  %2448 = vmatpush1.msra.mxu0 %v2337
  %2449 = vmatprep.subr.mxu0 %v2334
  %2450 = vmatpush1.msra.mxu0 %v2333
  %2451 = vmatprep.subr.mxu0 0.0
  %2452 = vmatpush2.msra.mxu0 0.0
  %2453 = vmatprep.subr.mxu0 0.0
  %2454 = vmatpush2.msra.mxu0 0.0
  %2455 = vmatprep.subr.mxu0 0.0
  %2456 = vmatpush2.msra.mxu0 0.0
  %2457 = vmatprep.subr.mxu0 0.0
  %2458 = vmatpush2.msra.mxu0 0.0
  %2459 = vmatprep.subr.mxu0 0.0
  %2460 = vmatpush2.msra.mxu0 0.0
  %2461 = vmatprep.subr.mxu0 0.0
  %2462 = vmatpush2.msra.mxu0 0.0
  %2463 = vmatprep.subr.mxu0 0.0
  %2464 = vmatpush2.msra.mxu0 0.0
  %2465 = vmatprep.subr.mxu0 0.0
  %2466 = vmatpush2.msra.mxu0 0.0
  %2467 = vmatprep.subr.mxu0 0.0
  %2468 = vmatpush2.msra.mxu0 0.0
  %2469 = vmatprep.subr.mxu0 0.0
  %2470 = vmatpush2.msra.mxu0 0.0
  %2471 = vmatprep.subr.mxu0 0.0
  %2472 = vmatpush2.msra.mxu0 0.0
  %2473 = vmatprep.subr.mxu0 0.0
  %2474 = vmatpush2.msra.mxu0 0.0
  %2475 = vmatprep.subr.mxu0 0.0
  %2476 = vmatpush2.msra.mxu0 0.0
  %2477 = vmatprep.subr.mxu0 0.0
  %2478 = vmatpush2.msra.mxu0 0.0
  %2479 = vmatprep.subr.mxu0 0.0
  %2480 = vmatpush2.msra.mxu0 0.0
  %2481 = vmatprep.subr.mxu0 0.0
  %2482 = vmatpush2.msra.mxu0 0.0
  %2483 = vmatprep.mubr.f32.mxu0 0.0
  %2484 = vmatmul.mubr.f32.gmra.mxu0 %v2325
  %v2485 = vpop.f32.mrf.mxu0
  %v2486 = vadd.f32 %v2402, %v2485
  %v2487 = vpop.f32.mrf.mxu0
  %v2488 = vadd.f32 %v2406, %v2487
  %2489 = vmatprep.mubr.f32.mxu0 0.0
  %2490 = vmatmul.mubr.f32.gmra.mxu0 %v2326
  %v2491 = vpop.f32.mrf.mxu0
  %v2492 = vadd.f32 %v2402, %v2491
  %v2493 = vpop.f32.mrf.mxu0
  %v2494 = vadd.f32 %v2406, %v2493
  %2495 = vmatprep.mubr.f32.mxu0 0.0
  %2496 = vmatmul.mubr.f32.gmra.mxu0 %v2327
  %v2497 = vpop.f32.mrf.mxu0
  %v2498 = vadd.f32 %v2402, %v2497
  %v2499 = vpop.f32.mrf.mxu0
  %v2500 = vadd.f32 %v2406, %v2499
  %2501 = vmatprep.mubr.f32.mxu0 0.0
  %2502 = vmatmul.mubr.f32.gmra.mxu0 %v2328
  %v2503 = vpop.f32.mrf.mxu0
  %v2504 = vadd.f32 %v2402, %v2503
  %v2505 = vpop.f32.mrf.mxu0
  %v2506 = vadd.f32 %v2406, %v2505
  %2507 = vmatprep.mubr.f32.mxu0 0.0
  %2508 = vmatmul.mubr.f32.gmra.mxu0 %v2329
  %v2509 = vpop.f32.mrf.mxu0
  %v2510 = vadd.f32 %v2402, %v2509
  %v2511 = vpop.f32.mrf.mxu0
  %v2512 = vadd.f32 %v2406, %v2511
  %2513 = vmatprep.mubr.f32.mxu0 0.0
  %2514 = vmatmul.mubr.f32.gmra.mxu0 %v2330
  %v2515 = vpop.f32.mrf.mxu0
  %v2516 = vadd.f32 %v2402, %v2515
  %v2517 = vpop.f32.mrf.mxu0
  %v2518 = vadd.f32 %v2406, %v2517
  %2519 = vmatprep.mubr.f32.mxu0 0.0
  %2520 = vmatmul.mubr.f32.gmra.mxu0 %v2331
  %v2521 = vpop.f32.mrf.mxu0
  %v2522 = vadd.f32 %v2402, %v2521
  %v2523 = vpop.f32.mrf.mxu0
  %v2524 = vadd.f32 %v2406, %v2523
  %2525 = vmatprep.mubr.f32.mxu0 0.0
  %2526 = vmatmul.mubr.f32.gmra.mxu0 %v2332
  %v2527 = vpop.f32.mrf.mxu0
  %v2528 = vadd.f32 %v2402, %v2527
  %v2529 = vpop.f32.mrf.mxu0
  %v2530 = vadd.f32 %v2406, %v2529
  %2531 = vdwg.mxu0
  %2532 = vmatprep.subr.mxu0 %v2396
  %2533 = vmatpush1.msra.mxu0 %v2395
  %2534 = vmatprep.subr.mxu0 %v2392
  %2535 = vmatpush1.msra.mxu0 %v2391
  %2536 = vmatprep.subr.mxu0 %v2388
  %2537 = vmatpush1.msra.mxu0 %v2387
  %2538 = vmatprep.subr.mxu0 %v2384
  %2539 = vmatpush1.msra.mxu0 %v2383
  %2540 = vmatprep.subr.mxu0 %v2380
  %2541 = vmatpush1.msra.mxu0 %v2379
  %2542 = vmatprep.subr.mxu0 %v2376
  %2543 = vmatpush1.msra.mxu0 %v2375
  %2544 = vmatprep.subr.mxu0 %v2372
  %2545 = vmatpush1.msra.mxu0 %v2371
  %2546 = vmatprep.subr.mxu0 %v2368
  %2547 = vmatpush1.msra.mxu0 %v2367
  %2548 = vmatprep.subr.mxu0 %v2364
  %2549 = vmatpush1.msra.mxu0 %v2363
  %2550 = vmatprep.subr.mxu0 %v2360
  %2551 = vmatpush1.msra.mxu0 %v2359
  %2552 = vmatprep.subr.mxu0 %v2356
  %2553 = vmatpush1.msra.mxu0 %v2355
  %2554 = vmatprep.subr.mxu0 %v2352
  %2555 = vmatpush1.msra.mxu0 %v2351
  %2556 = vmatprep.subr.mxu0 %v2348
  %2557 = vmatpush1.msra.mxu0 %v2347
  %2558 = vmatprep.subr.mxu0 %v2344
  %2559 = vmatpush1.msra.mxu0 %v2343
  %2560 = vmatprep.subr.mxu0 %v2340
  %2561 = vmatpush1.msra.mxu0 %v2339
  %2562 = vmatprep.subr.mxu0 %v2336
  %2563 = vmatpush1.msra.mxu0 %v2335
  %2564 = vmatprep.subr.mxu0 0.0
  %2565 = vmatpush2.msra.mxu0 0.0
  %2566 = vmatprep.subr.mxu0 0.0
  %2567 = vmatpush2.msra.mxu0 0.0
  %2568 = vmatprep.subr.mxu0 0.0
  %2569 = vmatpush2.msra.mxu0 0.0
  %2570 = vmatprep.subr.mxu0 0.0
  %2571 = vmatpush2.msra.mxu0 0.0
  %2572 = vmatprep.subr.mxu0 0.0
  %2573 = vmatpush2.msra.mxu0 0.0
  %2574 = vmatprep.subr.mxu0 0.0
  %2575 = vmatpush2.msra.mxu0 0.0
  %2576 = vmatprep.subr.mxu0 0.0
  %2577 = vmatpush2.msra.mxu0 0.0
  %2578 = vmatprep.subr.mxu0 0.0
  %2579 = vmatpush2.msra.mxu0 0.0
  %2580 = vmatprep.subr.mxu0 0.0
  %2581 = vmatpush2.msra.mxu0 0.0
  %2582 = vmatprep.subr.mxu0 0.0
  %2583 = vmatpush2.msra.mxu0 0.0
  %2584 = vmatprep.subr.mxu0 0.0
  %2585 = vmatpush2.msra.mxu0 0.0
  %2586 = vmatprep.subr.mxu0 0.0
  %2587 = vmatpush2.msra.mxu0 0.0
  %2588 = vmatprep.subr.mxu0 0.0
  %2589 = vmatpush2.msra.mxu0 0.0
  %2590 = vmatprep.subr.mxu0 0.0
  %2591 = vmatpush2.msra.mxu0 0.0
  %2592 = vmatprep.subr.mxu0 0.0
  %2593 = vmatpush2.msra.mxu0 0.0
  %2594 = vmatprep.subr.mxu0 0.0
  %2595 = vmatpush2.msra.mxu0 0.0
  %2596 = vmatprep.mubr.f32.mxu0 0.0
  %2597 = vmatmul.mubr.f32.gmra.mxu0 %v2325
  %v2598 = vpop.f32.mrf.mxu0
  %v2599 = vadd.f32 %v2410, %v2598
  %v2600 = vpop.f32.mrf.mxu0
  %v2601 = vadd.f32 %v2414, %v2600
  %2602 = vmatprep.mubr.f32.mxu0 0.0
  %2603 = vmatmul.mubr.f32.gmra.mxu0 %v2326
  %v2604 = vpop.f32.mrf.mxu0
  %v2605 = vadd.f32 %v2410, %v2604
  %v2606 = vpop.f32.mrf.mxu0
  %v2607 = vadd.f32 %v2414, %v2606
  %2608 = vmatprep.mubr.f32.mxu0 0.0
  %2609 = vmatmul.mubr.f32.gmra.mxu0 %v2327
  %v2610 = vpop.f32.mrf.mxu0
  %v2611 = vadd.f32 %v2410, %v2610
  %v2612 = vpop.f32.mrf.mxu0
  %v2613 = vadd.f32 %v2414, %v2612
  %2614 = vmatprep.mubr.f32.mxu0 0.0
  %2615 = vmatmul.mubr.f32.gmra.mxu0 %v2328
  %v2616 = vpop.f32.mrf.mxu0
  %v2617 = vadd.f32 %v2410, %v2616
  %v2618 = vpop.f32.mrf.mxu0
  %v2619 = vadd.f32 %v2414, %v2618
  %2620 = vmatprep.mubr.f32.mxu0 0.0
  %2621 = vmatmul.mubr.f32.gmra.mxu0 %v2329
  %v2622 = vpop.f32.mrf.mxu0
  %v2623 = vadd.f32 %v2410, %v2622
  %v2624 = vpop.f32.mrf.mxu0
  %v2625 = vadd.f32 %v2414, %v2624
  %2626 = vmatprep.mubr.f32.mxu0 0.0
  %2627 = vmatmul.mubr.f32.gmra.mxu0 %v2330
  %v2628 = vpop.f32.mrf.mxu0
  %v2629 = vadd.f32 %v2410, %v2628
  %v2630 = vpop.f32.mrf.mxu0
  %v2631 = vadd.f32 %v2414, %v2630
  %2632 = vmatprep.mubr.f32.mxu0 0.0
  %2633 = vmatmul.mubr.f32.gmra.mxu0 %v2331
  %v2634 = vpop.f32.mrf.mxu0
  %v2635 = vadd.f32 %v2410, %v2634
  %v2636 = vpop.f32.mrf.mxu0
  %v2637 = vadd.f32 %v2414, %v2636
  %2638 = vmatprep.mubr.f32.mxu0 0.0
  %2639 = vmatmul.mubr.f32.gmra.mxu0 %v2332
  %v2640 = vpop.f32.mrf.mxu0
  %v2641 = vadd.f32 %v2410, %v2640
  %v2642 = vpop.f32.mrf.mxu0
  %v2643 = vadd.f32 %v2414, %v2642
  %2644 = vdwg.mxu0
  %2645 = vst [vmem:[#allocation2] sm:$0xff] %v2486
  %2646 = vst [vmem:[#allocation2 + $0x8] sm:$0xff] %v2488
  %2647 = vst [vmem:[#allocation2 + $0x10] sm:$0xff] %v2599
  %2648 = vst [vmem:[#allocation2 + $0x18] sm:$0xff] %v2601
  %2649 = vst [vmem:[#allocation2 + $0x20] sm:$0xff] %v2492
  %2650 = vst [vmem:[#allocation2 + $0x28] sm:$0xff] %v2494
  %2651 = vst [vmem:[#allocation2 + $0x30] sm:$0xff] %v2605
  %2652 = vst [vmem:[#allocation2 + $0x38] sm:$0xff] %v2607
  %2653 = vst [vmem:[#allocation2 + $0x40] sm:$0xff] %v2498
  %2654 = vst [vmem:[#allocation2 + $0x48] sm:$0xff] %v2500
  %2655 = vst [vmem:[#allocation2 + $0x50] sm:$0xff] %v2611
  %2656 = vst [vmem:[#allocation2 + $0x58] sm:$0xff] %v2613
  %2657 = vst [vmem:[#allocation2 + $0x60] sm:$0xff] %v2504
  %2658 = vst [vmem:[#allocation2 + $0x68] sm:$0xff] %v2506
  %2659 = vst [vmem:[#allocation2 + $0x70] sm:$0xff] %v2617
  %2660 = vst [vmem:[#allocation2 + $0x78] sm:$0xff] %v2619
  %2661 = vst [vmem:[#allocation2 + $0x80] sm:$0xff] %v2510
  %2662 = vst [vmem:[#allocation2 + $0x88] sm:$0xff] %v2512
  %2663 = vst [vmem:[#allocation2 + $0x90] sm:$0xff] %v2623
  %2664 = vst [vmem:[#allocation2 + $0x98] sm:$0xff] %v2625
  %2665 = vst [vmem:[#allocation2 + $0xa0] sm:$0xff] %v2516
  %2666 = vst [vmem:[#allocation2 + $0xa8] sm:$0xff] %v2518
  %2667 = vst [vmem:[#allocation2 + $0xb0] sm:$0xff] %v2629
  %2668 = vst [vmem:[#allocation2 + $0xb8] sm:$0xff] %v2631
  %2669 = vst [vmem:[#allocation2 + $0xc0] sm:$0xff] %v2522
  %2670 = vst [vmem:[#allocation2 + $0xc8] sm:$0xff] %v2524
  %2671 = vst [vmem:[#allocation2 + $0xd0] sm:$0xff] %v2635
  %2672 = vst [vmem:[#allocation2 + $0xd8] sm:$0xff] %v2637
  %2673 = vst [vmem:[#allocation2 + $0xe0] sm:$0xff] %v2528
  %2674 = vst [vmem:[#allocation2 + $0xe8] sm:$0xff] %v2530
  %2675 = vst [vmem:[#allocation2 + $0xf0] sm:$0xff] %v2641
  %2676 = vst [vmem:[#allocation2 + $0xf8] sm:$0xff] %v2643
  %v2677 = vld [vmem:[%s382] sm:$0xff]
  %v2678 = vld [vmem:[%s382 + $0x8] sm:$0xff]
  %v2679 = vld [vmem:[%s382 + $0x10] sm:$0xff]
  %v2680 = vld [vmem:[%s382 + $0x18] sm:$0xff]
  %v2681 = vld [vmem:[%s5] sm:$0xff]
  %v2682 = vld [vmem:[%s5 + $0x8] sm:$0xff]
  %v2683 = vld [vmem:[%s5 + $0x10] sm:$0xff]
  %v2684 = vld [vmem:[%s5 + $0x18] sm:$0xff]
  %v2685 = vld [vmem:[%s5 + $0x20] sm:$0xff]
  %v2686 = vld [vmem:[%s5 + $0x28] sm:$0xff]
  %v2687 = vld [vmem:[%s5 + $0x30] sm:$0xff]
  %v2688 = vld [vmem:[%s5 + $0x38] sm:$0xff]
  %v2689 = vld [vmem:[%s5 + $0x40] sm:$0xff]
  %v2690 = vld [vmem:[%s5 + $0x48] sm:$0xff]
  %v2691 = vld [vmem:[%s5 + $0x50] sm:$0xff]
  %v2692 = vld [vmem:[%s5 + $0x58] sm:$0xff]
  %v2693 = vld [vmem:[%s5 + $0x60] sm:$0xff]
  %v2694 = vld [vmem:[%s5 + $0x68] sm:$0xff]
  %v2695 = vld [vmem:[%s5 + $0x70] sm:$0xff]
  %v2696 = vld [vmem:[%s5 + $0x78] sm:$0xff]
  %v2697 = vld [vmem:[%s5 + $0x80] sm:$0xff]
  %v2698 = vld [vmem:[%s5 + $0x88] sm:$0xff]
  %v2699 = vld [vmem:[%s5 + $0x90] sm:$0xff]
  %v2700 = vld [vmem:[%s5 + $0x98] sm:$0xff]
  %v2701 = vld [vmem:[%s5 + $0xa0] sm:$0xff]
  %v2702 = vld [vmem:[%s5 + $0xa8] sm:$0xff]
  %v2703 = vld [vmem:[%s5 + $0xb0] sm:$0xff]
  %v2704 = vld [vmem:[%s5 + $0xb8] sm:$0xff]
  %v2705 = vld [vmem:[%s5 + $0xc0] sm:$0xff]
  %v2706 = vld [vmem:[%s5 + $0xc8] sm:$0xff]
  %v2707 = vld [vmem:[%s5 + $0xd0] sm:$0xff]
  %v2708 = vld [vmem:[%s5 + $0xd8] sm:$0xff]
  %v2709 = vld [vmem:[%s5 + $0xe0] sm:$0xff]
  %v2710 = vld [vmem:[%s5 + $0xe8] sm:$0xff]
  %v2711 = vld [vmem:[%s5 + $0xf0] sm:$0xff]
  %v2712 = vld [vmem:[%s5 + $0xf8] sm:$0xff]
  %v2713 = vld [vmem:[%s5 + $0x100] sm:$0xff]
  %v2714 = vld [vmem:[%s5 + $0x108] sm:$0xff]
  %v2715 = vld [vmem:[%s5 + $0x110] sm:$0xff]
  %v2716 = vld [vmem:[%s5 + $0x118] sm:$0xff]
  %v2717 = vld [vmem:[%s5 + $0x120] sm:$0xff]
  %v2718 = vld [vmem:[%s5 + $0x128] sm:$0xff]
  %v2719 = vld [vmem:[%s5 + $0x130] sm:$0xff]
  %v2720 = vld [vmem:[%s5 + $0x138] sm:$0xff]
  %v2721 = vld [vmem:[%s5 + $0x140] sm:$0xff]
  %v2722 = vld [vmem:[%s5 + $0x148] sm:$0xff]
  %v2723 = vld [vmem:[%s5 + $0x150] sm:$0xff]
  %v2724 = vld [vmem:[%s5 + $0x158] sm:$0xff]
  %v2725 = vld [vmem:[%s5 + $0x160] sm:$0xff]
  %v2726 = vld [vmem:[%s5 + $0x168] sm:$0xff]
  %v2727 = vld [vmem:[%s5 + $0x170] sm:$0xff]
  %v2728 = vld [vmem:[%s5 + $0x178] sm:$0xff]
  %v2729 = vld [vmem:[%s5 + $0x180] sm:$0xff]
  %v2730 = vld [vmem:[%s5 + $0x188] sm:$0xff]
  %v2731 = vld [vmem:[%s5 + $0x190] sm:$0xff]
  %v2732 = vld [vmem:[%s5 + $0x198] sm:$0xff]
  %v2733 = vld [vmem:[%s5 + $0x1a0] sm:$0xff]
  %v2734 = vld [vmem:[%s5 + $0x1a8] sm:$0xff]
  %v2735 = vld [vmem:[%s5 + $0x1b0] sm:$0xff]
  %v2736 = vld [vmem:[%s5 + $0x1b8] sm:$0xff]
  %v2737 = vld [vmem:[%s5 + $0x1c0] sm:$0xff]
  %v2738 = vld [vmem:[%s5 + $0x1c8] sm:$0xff]
  %v2739 = vld [vmem:[%s5 + $0x1d0] sm:$0xff]
  %v2740 = vld [vmem:[%s5 + $0x1d8] sm:$0xff]
  %v2741 = vld [vmem:[%s5 + $0x1e0] sm:$0xff]
  %v2742 = vld [vmem:[%s5 + $0x1e8] sm:$0xff]
  %v2743 = vld [vmem:[%s5 + $0x1f0] sm:$0xff]
  %v2744 = vld [vmem:[%s5 + $0x1f8] sm:$0xff]
  %2745 = vmatprep.subr.mxu0 %v2742
  %2746 = vmatpush1.msra.mxu0 %v2741
  %2747 = vmatprep.subr.mxu0 %v2738
  %2748 = vmatpush1.msra.mxu0 %v2737
  %2749 = vmatprep.subr.mxu0 %v2734
  %2750 = vmatpush1.msra.mxu0 %v2733
  %2751 = vmatprep.subr.mxu0 %v2730
  %2752 = vmatpush1.msra.mxu0 %v2729
  %2753 = vmatprep.subr.mxu0 %v2726
  %2754 = vmatpush1.msra.mxu0 %v2725
  %2755 = vmatprep.subr.mxu0 %v2722
  %2756 = vmatpush1.msra.mxu0 %v2721
  %2757 = vmatprep.subr.mxu0 %v2718
  %2758 = vmatpush1.msra.mxu0 %v2717
  %2759 = vmatprep.subr.mxu0 %v2714
  %2760 = vmatpush1.msra.mxu0 %v2713
  %2761 = vmatprep.subr.mxu0 %v2710
  %2762 = vmatpush1.msra.mxu0 %v2709
  %2763 = vmatprep.subr.mxu0 %v2706
  %2764 = vmatpush1.msra.mxu0 %v2705
  %2765 = vmatprep.subr.mxu0 %v2702
  %2766 = vmatpush1.msra.mxu0 %v2701
  %2767 = vmatprep.subr.mxu0 %v2698
  %2768 = vmatpush1.msra.mxu0 %v2697
  %2769 = vmatprep.subr.mxu0 %v2694
  %2770 = vmatpush1.msra.mxu0 %v2693
  %2771 = vmatprep.subr.mxu0 %v2690
  %2772 = vmatpush1.msra.mxu0 %v2689
  %2773 = vmatprep.subr.mxu0 %v2686
  %2774 = vmatpush1.msra.mxu0 %v2685
  %2775 = vmatprep.subr.mxu0 %v2682
  %2776 = vmatpush1.msra.mxu0 %v2681
  %2777 = vmatprep.subr.mxu0 0.0
  %2778 = vmatpush2.msra.mxu0 0.0
  %2779 = vmatprep.subr.mxu0 0.0
  %2780 = vmatpush2.msra.mxu0 0.0
  %2781 = vmatprep.subr.mxu0 0.0
  %2782 = vmatpush2.msra.mxu0 0.0
  %2783 = vmatprep.subr.mxu0 0.0
  %2784 = vmatpush2.msra.mxu0 0.0
  %2785 = vmatprep.subr.mxu0 0.0
  %2786 = vmatpush2.msra.mxu0 0.0
  %2787 = vmatprep.subr.mxu0 0.0
  %2788 = vmatpush2.msra.mxu0 0.0
  %2789 = vmatprep.subr.mxu0 0.0
  %2790 = vmatpush2.msra.mxu0 0.0
  %2791 = vmatprep.subr.mxu0 0.0
  %2792 = vmatpush2.msra.mxu0 0.0
  %2793 = vmatprep.subr.mxu0 0.0
  %2794 = vmatpush2.msra.mxu0 0.0
  %2795 = vmatprep.subr.mxu0 0.0
  %2796 = vmatpush2.msra.mxu0 0.0
  %2797 = vmatprep.subr.mxu0 0.0
  %2798 = vmatpush2.msra.mxu0 0.0
  %2799 = vmatprep.subr.mxu0 0.0
  %2800 = vmatpush2.msra.mxu0 0.0
  %2801 = vmatprep.subr.mxu0 0.0
  %2802 = vmatpush2.msra.mxu0 0.0
  %2803 = vmatprep.subr.mxu0 0.0
  %2804 = vmatpush2.msra.mxu0 0.0
  %2805 = vmatprep.subr.mxu0 0.0
  %2806 = vmatpush2.msra.mxu0 0.0
  %2807 = vmatprep.subr.mxu0 0.0
  %2808 = vmatpush2.msra.mxu0 0.0
  %2809 = vmatprep.mubr.f32.mxu0 0.0
  %2810 = vmatmul.mubr.f32.gmra.mxu0 0.0
  %v2811 = vpop.f32.mrf.mxu0
  %v2812 = vadd.f32 0.0, %v2811
  %v2813 = vpop.f32.mrf.mxu0
  %v2814 = vadd.f32 0.0, %v2813
  %2815 = vdwg.mxu0
  %2816 = vmatprep.subr.mxu0 %v2744
  %2817 = vmatpush1.msra.mxu0 %v2743
  %2818 = vmatprep.subr.mxu0 %v2740
  %2819 = vmatpush1.msra.mxu0 %v2739
  %2820 = vmatprep.subr.mxu0 %v2736
  %2821 = vmatpush1.msra.mxu0 %v2735
  %2822 = vmatprep.subr.mxu0 %v2732
  %2823 = vmatpush1.msra.mxu0 %v2731
  %2824 = vmatprep.subr.mxu0 %v2728
  %2825 = vmatpush1.msra.mxu0 %v2727
  %2826 = vmatprep.subr.mxu0 %v2724
  %2827 = vmatpush1.msra.mxu0 %v2723
  %2828 = vmatprep.subr.mxu0 %v2720
  %2829 = vmatpush1.msra.mxu0 %v2719
  %2830 = vmatprep.subr.mxu0 %v2716
  %2831 = vmatpush1.msra.mxu0 %v2715
  %2832 = vmatprep.subr.mxu0 %v2712
  %2833 = vmatpush1.msra.mxu0 %v2711
  %2834 = vmatprep.subr.mxu0 %v2708
  %2835 = vmatpush1.msra.mxu0 %v2707
  %2836 = vmatprep.subr.mxu0 %v2704
  %2837 = vmatpush1.msra.mxu0 %v2703
  %2838 = vmatprep.subr.mxu0 %v2700
  %2839 = vmatpush1.msra.mxu0 %v2699
  %2840 = vmatprep.subr.mxu0 %v2696
  %2841 = vmatpush1.msra.mxu0 %v2695
  %2842 = vmatprep.subr.mxu0 %v2692
  %2843 = vmatpush1.msra.mxu0 %v2691
  %2844 = vmatprep.subr.mxu0 %v2688
  %2845 = vmatpush1.msra.mxu0 %v2687
  %2846 = vmatprep.subr.mxu0 %v2684
  %2847 = vmatpush1.msra.mxu0 %v2683
  %2848 = vmatprep.subr.mxu0 0.0
  %2849 = vmatpush2.msra.mxu0 0.0
  %2850 = vmatprep.subr.mxu0 0.0
  %2851 = vmatpush2.msra.mxu0 0.0
  %2852 = vmatprep.subr.mxu0 0.0
  %2853 = vmatpush2.msra.mxu0 0.0
  %2854 = vmatprep.subr.mxu0 0.0
  %2855 = vmatpush2.msra.mxu0 0.0
  %2856 = vmatprep.subr.mxu0 0.0
  %2857 = vmatpush2.msra.mxu0 0.0
  %2858 = vmatprep.subr.mxu0 0.0
  %2859 = vmatpush2.msra.mxu0 0.0
  %2860 = vmatprep.subr.mxu0 0.0
  %2861 = vmatpush2.msra.mxu0 0.0
  %2862 = vmatprep.subr.mxu0 0.0
  %2863 = vmatpush2.msra.mxu0 0.0
  %2864 = vmatprep.subr.mxu0 0.0
  %2865 = vmatpush2.msra.mxu0 0.0
  %2866 = vmatprep.subr.mxu0 0.0
  %2867 = vmatpush2.msra.mxu0 0.0
  %2868 = vmatprep.subr.mxu0 0.0
  %2869 = vmatpush2.msra.mxu0 0.0
  %2870 = vmatprep.subr.mxu0 0.0
  %2871 = vmatpush2.msra.mxu0 0.0
  %2872 = vmatprep.subr.mxu0 0.0
  %2873 = vmatpush2.msra.mxu0 0.0
  %2874 = vmatprep.subr.mxu0 0.0
  %2875 = vmatpush2.msra.mxu0 0.0
  %2876 = vmatprep.subr.mxu0 0.0
  %2877 = vmatpush2.msra.mxu0 0.0
  %2878 = vmatprep.subr.mxu0 0.0
  %2879 = vmatpush2.msra.mxu0 0.0
  %2880 = vmatprep.mubr.f32.mxu0 0.0
  %2881 = vmatmul.mubr.f32.gmra.mxu0 0.0
  %v2882 = vpop.f32.mrf.mxu0
  %v2883 = vadd.f32 0.0, %v2882
  %v2884 = vpop.f32.mrf.mxu0
  %v2885 = vadd.f32 0.0, %v2884
  %2886 = vdwg.mxu0
  %v2887 = vadd.f32 %v2677, %v2812
  %v2888 = vadd.f32 %v2678, %v2814
  %v2889 = vadd.f32 %v2679, %v2883
  %v2890 = vadd.f32 %v2680, %v2885
  %v2891 = vxor.u32 %v2887, 2147483648
  %v2892 = vmul.f32 %v2891, 1.442695
  %v2893 = vpow.pop %v2892
  %v2894 = vadd.f32 %v2893, 1.0
  %v2895 = vrcp.pop %v2894
  %v2896 = vmul.f32 1.0, %v2895
  %v2897 = vxor.u32 %v2888, 2147483648
  %v2898 = vmul.f32 %v2897, 1.442695
  %v2899 = vpow.pop %v2898
  %v2900 = vadd.f32 %v2899, 1.0
  %v2901 = vrcp.pop %v2900
  %v2902 = vmul.f32 1.0, %v2901
  %v2903 = vtanh.pop %v2889
  %v2904 = vxor.u32 %v2890, 2147483648
  %v2905 = vmul.f32 %v2904, 1.442695
  %v2906 = vpow.pop %v2905
  %v2907 = vadd.f32 %v2906, 1.0
  %v2908 = vrcp.pop %v2907
  %v2909 = vmul.f32 1.0, %v2908
  %v2910 = vmul.f32 %v2902, 0.0
  %v2911 = vmul.f32 %v2896, %v2903
  %v2912 = vadd.f32 %v2910, %v2911
  %v2913 = vtanh.pop %v2912
  %v2914 = vmul.f32 %v2909, %v2913
  %v2915 = vld [vmem:[%s624] sm:$0xff]
  %v2916 = vld [vmem:[%s624 + $0x8] sm:$0xff]
  %v2917 = vld [vmem:[%s624 + $0x10] sm:$0xff]
  %v2918 = vld [vmem:[%s624 + $0x18] sm:$0xff]
  %2919 = vmatprep.subr.mxu0 %v2742
  %2920 = vmatpush1.msra.mxu0 %v2741
  %2921 = vmatprep.subr.mxu0 %v2738
  %2922 = vmatpush1.msra.mxu0 %v2737
  %2923 = vmatprep.subr.mxu0 %v2734
  %2924 = vmatpush1.msra.mxu0 %v2733
  %2925 = vmatprep.subr.mxu0 %v2730
  %2926 = vmatpush1.msra.mxu0 %v2729
  %2927 = vmatprep.subr.mxu0 %v2726
  %2928 = vmatpush1.msra.mxu0 %v2725
  %2929 = vmatprep.subr.mxu0 %v2722
  %2930 = vmatpush1.msra.mxu0 %v2721
  %2931 = vmatprep.subr.mxu0 %v2718
  %2932 = vmatpush1.msra.mxu0 %v2717
  %2933 = vmatprep.subr.mxu0 %v2714
  %2934 = vmatpush1.msra.mxu0 %v2713
  %2935 = vmatprep.subr.mxu0 %v2710
  %2936 = vmatpush1.msra.mxu0 %v2709
  %2937 = vmatprep.subr.mxu0 %v2706
  %2938 = vmatpush1.msra.mxu0 %v2705
  %2939 = vmatprep.subr.mxu0 %v2702
  %2940 = vmatpush1.msra.mxu0 %v2701
  %2941 = vmatprep.subr.mxu0 %v2698
  %2942 = vmatpush1.msra.mxu0 %v2697
  %2943 = vmatprep.subr.mxu0 %v2694
  %2944 = vmatpush1.msra.mxu0 %v2693
  %2945 = vmatprep.subr.mxu0 %v2690
  %2946 = vmatpush1.msra.mxu0 %v2689
  %2947 = vmatprep.subr.mxu0 %v2686
  %2948 = vmatpush1.msra.mxu0 %v2685
  %2949 = vmatprep.subr.mxu0 %v2682
  %2950 = vmatpush1.msra.mxu0 %v2681
  %2951 = vmatprep.subr.mxu0 0.0
  %2952 = vmatpush2.msra.mxu0 0.0
  %2953 = vmatprep.subr.mxu0 0.0
  %2954 = vmatpush2.msra.mxu0 0.0
  %2955 = vmatprep.subr.mxu0 0.0
  %2956 = vmatpush2.msra.mxu0 0.0
  %2957 = vmatprep.subr.mxu0 0.0
  %2958 = vmatpush2.msra.mxu0 0.0
  %2959 = vmatprep.subr.mxu0 0.0
  %2960 = vmatpush2.msra.mxu0 0.0
  %2961 = vmatprep.subr.mxu0 0.0
  %2962 = vmatpush2.msra.mxu0 0.0
  %2963 = vmatprep.subr.mxu0 0.0
  %2964 = vmatpush2.msra.mxu0 0.0
  %2965 = vmatprep.subr.mxu0 0.0
  %2966 = vmatpush2.msra.mxu0 0.0
  %2967 = vmatprep.subr.mxu0 0.0
  %2968 = vmatpush2.msra.mxu0 0.0
  %2969 = vmatprep.subr.mxu0 0.0
  %2970 = vmatpush2.msra.mxu0 0.0
  %2971 = vmatprep.subr.mxu0 0.0
  %2972 = vmatpush2.msra.mxu0 0.0
  %2973 = vmatprep.subr.mxu0 0.0
  %2974 = vmatpush2.msra.mxu0 0.0
  %2975 = vmatprep.subr.mxu0 0.0
  %2976 = vmatpush2.msra.mxu0 0.0
  %2977 = vmatprep.subr.mxu0 0.0
  %2978 = vmatpush2.msra.mxu0 0.0
  %2979 = vmatprep.subr.mxu0 0.0
  %2980 = vmatpush2.msra.mxu0 0.0
  %2981 = vmatprep.subr.mxu0 0.0
  %2982 = vmatpush2.msra.mxu0 0.0
  %2983 = vmatprep.mubr.f32.mxu0 0.0
  %2984 = vmatmul.mubr.f32.gmra.mxu0 %v2914
  %v2985 = vpop.f32.mrf.mxu0
  %v2986 = vadd.f32 0.0, %v2985
  %v2987 = vpop.f32.mrf.mxu0
  %v2988 = vadd.f32 0.0, %v2987
  %2989 = vdwg.mxu0
  %2990 = vmatprep.subr.mxu0 %v2744
  %2991 = vmatpush1.msra.mxu0 %v2743
  %2992 = vmatprep.subr.mxu0 %v2740
  %2993 = vmatpush1.msra.mxu0 %v2739
  %2994 = vmatprep.subr.mxu0 %v2736
  %2995 = vmatpush1.msra.mxu0 %v2735
  %2996 = vmatprep.subr.mxu0 %v2732
  %2997 = vmatpush1.msra.mxu0 %v2731
  %2998 = vmatprep.subr.mxu0 %v2728
  %2999 = vmatpush1.msra.mxu0 %v2727
  %3000 = vmatprep.subr.mxu0 %v2724
  %3001 = vmatpush1.msra.mxu0 %v2723
  %3002 = vmatprep.subr.mxu0 %v2720
  %3003 = vmatpush1.msra.mxu0 %v2719
  %3004 = vmatprep.subr.mxu0 %v2716
  %3005 = vmatpush1.msra.mxu0 %v2715
  %3006 = vmatprep.subr.mxu0 %v2712
  %3007 = vmatpush1.msra.mxu0 %v2711
  %3008 = vmatprep.subr.mxu0 %v2708
  %3009 = vmatpush1.msra.mxu0 %v2707
  %3010 = vmatprep.subr.mxu0 %v2704
  %3011 = vmatpush1.msra.mxu0 %v2703
  %3012 = vmatprep.subr.mxu0 %v2700
  %3013 = vmatpush1.msra.mxu0 %v2699
  %3014 = vmatprep.subr.mxu0 %v2696
  %3015 = vmatpush1.msra.mxu0 %v2695
  %3016 = vmatprep.subr.mxu0 %v2692
  %3017 = vmatpush1.msra.mxu0 %v2691
  %3018 = vmatprep.subr.mxu0 %v2688
  %3019 = vmatpush1.msra.mxu0 %v2687
  %3020 = vmatprep.subr.mxu0 %v2684
  %3021 = vmatpush1.msra.mxu0 %v2683
  %3022 = vmatprep.subr.mxu0 0.0
  %3023 = vmatpush2.msra.mxu0 0.0
  %3024 = vmatprep.subr.mxu0 0.0
  %3025 = vmatpush2.msra.mxu0 0.0
  %3026 = vmatprep.subr.mxu0 0.0
  %3027 = vmatpush2.msra.mxu0 0.0
  %3028 = vmatprep.subr.mxu0 0.0
  %3029 = vmatpush2.msra.mxu0 0.0
  %3030 = vmatprep.subr.mxu0 0.0
  %3031 = vmatpush2.msra.mxu0 0.0
  %3032 = vmatprep.subr.mxu0 0.0
  %3033 = vmatpush2.msra.mxu0 0.0
  %3034 = vmatprep.subr.mxu0 0.0
  %3035 = vmatpush2.msra.mxu0 0.0
  %3036 = vmatprep.subr.mxu0 0.0
  %3037 = vmatpush2.msra.mxu0 0.0
  %3038 = vmatprep.subr.mxu0 0.0
  %3039 = vmatpush2.msra.mxu0 0.0
  %3040 = vmatprep.subr.mxu0 0.0
  %3041 = vmatpush2.msra.mxu0 0.0
  %3042 = vmatprep.subr.mxu0 0.0
  %3043 = vmatpush2.msra.mxu0 0.0
  %3044 = vmatprep.subr.mxu0 0.0
  %3045 = vmatpush2.msra.mxu0 0.0
  %3046 = vmatprep.subr.mxu0 0.0
  %3047 = vmatpush2.msra.mxu0 0.0
  %3048 = vmatprep.subr.mxu0 0.0
  %3049 = vmatpush2.msra.mxu0 0.0
  %3050 = vmatprep.subr.mxu0 0.0
  %3051 = vmatpush2.msra.mxu0 0.0
  %3052 = vmatprep.subr.mxu0 0.0
  %3053 = vmatpush2.msra.mxu0 0.0
  %3054 = vmatprep.mubr.f32.mxu0 0.0
  %3055 = vmatmul.mubr.f32.gmra.mxu0 %v2914
  %v3056 = vpop.f32.mrf.mxu0
  %v3057 = vadd.f32 0.0, %v3056
  %v3058 = vpop.f32.mrf.mxu0
  %v3059 = vadd.f32 0.0, %v3058
  %3060 = vdwg.mxu0
  %v3061 = vadd.f32 %v2915, %v2986
  %v3062 = vadd.f32 %v2916, %v2988
  %v3063 = vadd.f32 %v2917, %v3057
  %v3064 = vadd.f32 %v2918, %v3059
  %v3065 = vxor.u32 %v3061, 2147483648
  %v3066 = vmul.f32 %v3065, 1.442695
  %v3067 = vpow.pop %v3066
  %v3068 = vadd.f32 %v3067, 1.0
  %v3069 = vrcp.pop %v3068
  %v3070 = vmul.f32 1.0, %v3069
  %v3071 = vxor.u32 %v3062, 2147483648
  %v3072 = vmul.f32 %v3071, 1.442695
  %v3073 = vpow.pop %v3072
  %v3074 = vadd.f32 %v3073, 1.0
  %v3075 = vrcp.pop %v3074
  %v3076 = vmul.f32 1.0, %v3075
  %v3077 = vtanh.pop %v3063
  %v3078 = vxor.u32 %v3064, 2147483648
  %v3079 = vmul.f32 %v3078, 1.442695
  %v3080 = vpow.pop %v3079
  %v3081 = vadd.f32 %v3080, 1.0
  %v3082 = vrcp.pop %v3081
  %v3083 = vmul.f32 1.0, %v3082
  %v3084 = vmul.f32 %v3076, %v2912
  %v3085 = vmul.f32 %v3070, %v3077
  %v3086 = vadd.f32 %v3084, %v3085
  %v3087 = vtanh.pop %v3086
  %v3088 = vmul.f32 %v3083, %v3087
  %v3089 = vld [vmem:[%s867] sm:$0xff]
  %v3090 = vld [vmem:[%s867 + $0x8] sm:$0xff]
  %v3091 = vld [vmem:[%s867 + $0x10] sm:$0xff]
  %v3092 = vld [vmem:[%s867 + $0x18] sm:$0xff]
  %3093 = vmatprep.subr.mxu0 %v2742
  %3094 = vmatpush1.msra.mxu0 %v2741
  %3095 = vmatprep.subr.mxu0 %v2738
  %3096 = vmatpush1.msra.mxu0 %v2737
  %3097 = vmatprep.subr.mxu0 %v2734
  %3098 = vmatpush1.msra.mxu0 %v2733
  %3099 = vmatprep.subr.mxu0 %v2730
  %3100 = vmatpush1.msra.mxu0 %v2729
  %3101 = vmatprep.subr.mxu0 %v2726
  %3102 = vmatpush1.msra.mxu0 %v2725
  %3103 = vmatprep.subr.mxu0 %v2722
  %3104 = vmatpush1.msra.mxu0 %v2721
  %3105 = vmatprep.subr.mxu0 %v2718
  %3106 = vmatpush1.msra.mxu0 %v2717
  %3107 = vmatprep.subr.mxu0 %v2714
  %3108 = vmatpush1.msra.mxu0 %v2713
  %3109 = vmatprep.subr.mxu0 %v2710
  %3110 = vmatpush1.msra.mxu0 %v2709
  %3111 = vmatprep.subr.mxu0 %v2706
  %3112 = vmatpush1.msra.mxu0 %v2705
  %3113 = vmatprep.subr.mxu0 %v2702
  %3114 = vmatpush1.msra.mxu0 %v2701
  %3115 = vmatprep.subr.mxu0 %v2698
  %3116 = vmatpush1.msra.mxu0 %v2697
  %3117 = vmatprep.subr.mxu0 %v2694
  %3118 = vmatpush1.msra.mxu0 %v2693
  %3119 = vmatprep.subr.mxu0 %v2690
  %3120 = vmatpush1.msra.mxu0 %v2689
  %3121 = vmatprep.subr.mxu0 %v2686
  %3122 = vmatpush1.msra.mxu0 %v2685
  %3123 = vmatprep.subr.mxu0 %v2682
  %3124 = vmatpush1.msra.mxu0 %v2681
  %3125 = vmatprep.subr.mxu0 0.0
  %3126 = vmatpush2.msra.mxu0 0.0
  %3127 = vmatprep.subr.mxu0 0.0
  %3128 = vmatpush2.msra.mxu0 0.0
  %3129 = vmatprep.subr.mxu0 0.0
  %3130 = vmatpush2.msra.mxu0 0.0
  %3131 = vmatprep.subr.mxu0 0.0
  %3132 = vmatpush2.msra.mxu0 0.0
  %3133 = vmatprep.subr.mxu0 0.0
  %3134 = vmatpush2.msra.mxu0 0.0
  %3135 = vmatprep.subr.mxu0 0.0
  %3136 = vmatpush2.msra.mxu0 0.0
  %3137 = vmatprep.subr.mxu0 0.0
  %3138 = vmatpush2.msra.mxu0 0.0
  %3139 = vmatprep.subr.mxu0 0.0
  %3140 = vmatpush2.msra.mxu0 0.0
  %3141 = vmatprep.subr.mxu0 0.0
  %3142 = vmatpush2.msra.mxu0 0.0
  %3143 = vmatprep.subr.mxu0 0.0
  %3144 = vmatpush2.msra.mxu0 0.0
  %3145 = vmatprep.subr.mxu0 0.0
  %3146 = vmatpush2.msra.mxu0 0.0
  %3147 = vmatprep.subr.mxu0 0.0
  %3148 = vmatpush2.msra.mxu0 0.0
  %3149 = vmatprep.subr.mxu0 0.0
  %3150 = vmatpush2.msra.mxu0 0.0
  %3151 = vmatprep.subr.mxu0 0.0
  %3152 = vmatpush2.msra.mxu0 0.0
  %3153 = vmatprep.subr.mxu0 0.0
  %3154 = vmatpush2.msra.mxu0 0.0
  %3155 = vmatprep.subr.mxu0 0.0
  %3156 = vmatpush2.msra.mxu0 0.0
  %3157 = vmatprep.mubr.f32.mxu0 0.0
  %3158 = vmatmul.mubr.f32.gmra.mxu0 %v3088
  %v3159 = vpop.f32.mrf.mxu0
  %v3160 = vadd.f32 0.0, %v3159
  %v3161 = vpop.f32.mrf.mxu0
  %v3162 = vadd.f32 0.0, %v3161
  %3163 = vdwg.mxu0
  %3164 = vmatprep.subr.mxu0 %v2744
  %3165 = vmatpush1.msra.mxu0 %v2743
  %3166 = vmatprep.subr.mxu0 %v2740
  %3167 = vmatpush1.msra.mxu0 %v2739
  %3168 = vmatprep.subr.mxu0 %v2736
  %3169 = vmatpush1.msra.mxu0 %v2735
  %3170 = vmatprep.subr.mxu0 %v2732
  %3171 = vmatpush1.msra.mxu0 %v2731
  %3172 = vmatprep.subr.mxu0 %v2728
  %3173 = vmatpush1.msra.mxu0 %v2727
  %3174 = vmatprep.subr.mxu0 %v2724
  %3175 = vmatpush1.msra.mxu0 %v2723
  %3176 = vmatprep.subr.mxu0 %v2720
  %3177 = vmatpush1.msra.mxu0 %v2719
  %3178 = vmatprep.subr.mxu0 %v2716
  %3179 = vmatpush1.msra.mxu0 %v2715
  %3180 = vmatprep.subr.mxu0 %v2712
  %3181 = vmatpush1.msra.mxu0 %v2711
  %3182 = vmatprep.subr.mxu0 %v2708
  %3183 = vmatpush1.msra.mxu0 %v2707
  %3184 = vmatprep.subr.mxu0 %v2704
  %3185 = vmatpush1.msra.mxu0 %v2703
  %3186 = vmatprep.subr.mxu0 %v2700
  %3187 = vmatpush1.msra.mxu0 %v2699
  %3188 = vmatprep.subr.mxu0 %v2696
  %3189 = vmatpush1.msra.mxu0 %v2695
  %3190 = vmatprep.subr.mxu0 %v2692
  %3191 = vmatpush1.msra.mxu0 %v2691
  %3192 = vmatprep.subr.mxu0 %v2688
  %3193 = vmatpush1.msra.mxu0 %v2687
  %3194 = vmatprep.subr.mxu0 %v2684
  %3195 = vmatpush1.msra.mxu0 %v2683
  %3196 = vmatprep.subr.mxu0 0.0
  %3197 = vmatpush2.msra.mxu0 0.0
  %3198 = vmatprep.subr.mxu0 0.0
  %3199 = vmatpush2.msra.mxu0 0.0
  %3200 = vmatprep.subr.mxu0 0.0
  %3201 = vmatpush2.msra.mxu0 0.0
  %3202 = vmatprep.subr.mxu0 0.0
  %3203 = vmatpush2.msra.mxu0 0.0
  %3204 = vmatprep.subr.mxu0 0.0
  %3205 = vmatpush2.msra.mxu0 0.0
  %3206 = vmatprep.subr.mxu0 0.0
  %3207 = vmatpush2.msra.mxu0 0.0
  %3208 = vmatprep.subr.mxu0 0.0
  %3209 = vmatpush2.msra.mxu0 0.0
  %3210 = vmatprep.subr.mxu0 0.0
  %3211 = vmatpush2.msra.mxu0 0.0
  %3212 = vmatprep.subr.mxu0 0.0
  %3213 = vmatpush2.msra.mxu0 0.0
  %3214 = vmatprep.subr.mxu0 0.0
  %3215 = vmatpush2.msra.mxu0 0.0
  %3216 = vmatprep.subr.mxu0 0.0
  %3217 = vmatpush2.msra.mxu0 0.0
  %3218 = vmatprep.subr.mxu0 0.0
  %3219 = vmatpush2.msra.mxu0 0.0
  %3220 = vmatprep.subr.mxu0 0.0
  %3221 = vmatpush2.msra.mxu0 0.0
  %3222 = vmatprep.subr.mxu0 0.0
  %3223 = vmatpush2.msra.mxu0 0.0
  %3224 = vmatprep.subr.mxu0 0.0
  %3225 = vmatpush2.msra.mxu0 0.0
  %3226 = vmatprep.subr.mxu0 0.0
  %3227 = vmatpush2.msra.mxu0 0.0
  %3228 = vmatprep.mubr.f32.mxu0 0.0
  %3229 = vmatmul.mubr.f32.gmra.mxu0 %v3088
  %v3230 = vpop.f32.mrf.mxu0
  %v3231 = vadd.f32 0.0, %v3230
  %v3232 = vpop.f32.mrf.mxu0
  %v3233 = vadd.f32 0.0, %v3232
  %3234 = vdwg.mxu0
  %v3235 = vadd.f32 %v3089, %v3160
  %v3236 = vadd.f32 %v3090, %v3162
  %v3237 = vadd.f32 %v3091, %v3231
  %v3238 = vadd.f32 %v3092, %v3233
  %v3239 = vxor.u32 %v3235, 2147483648
  %v3240 = vmul.f32 %v3239, 1.442695
  %v3241 = vpow.pop %v3240
  %v3242 = vadd.f32 %v3241, 1.0
  %v3243 = vrcp.pop %v3242
  %v3244 = vmul.f32 1.0, %v3243
  %v3245 = vxor.u32 %v3236, 2147483648
  %v3246 = vmul.f32 %v3245, 1.442695
  %v3247 = vpow.pop %v3246
  %v3248 = vadd.f32 %v3247, 1.0
  %v3249 = vrcp.pop %v3248
  %v3250 = vmul.f32 1.0, %v3249
  %v3251 = vtanh.pop %v3237
  %v3252 = vxor.u32 %v3238, 2147483648
  %v3253 = vmul.f32 %v3252, 1.442695
  %v3254 = vpow.pop %v3253
  %v3255 = vadd.f32 %v3254, 1.0
  %v3256 = vrcp.pop %v3255
  %v3257 = vmul.f32 1.0, %v3256
  %v3258 = vmul.f32 %v3250, %v3086
  %v3259 = vmul.f32 %v3244, %v3251
  %v3260 = vadd.f32 %v3258, %v3259
  %v3261 = vtanh.pop %v3260
  %v3262 = vmul.f32 %v3257, %v3261
  %v3263 = vld [vmem:[%s1110] sm:$0xff]
  %v3264 = vld [vmem:[%s1110 + $0x8] sm:$0xff]
  %v3265 = vld [vmem:[%s1110 + $0x10] sm:$0xff]
  %v3266 = vld [vmem:[%s1110 + $0x18] sm:$0xff]
  %3267 = vmatprep.subr.mxu0 %v2742
  %3268 = vmatpush1.msra.mxu0 %v2741
  %3269 = vmatprep.subr.mxu0 %v2738
  %3270 = vmatpush1.msra.mxu0 %v2737
  %3271 = vmatprep.subr.mxu0 %v2734
  %3272 = vmatpush1.msra.mxu0 %v2733
  %3273 = vmatprep.subr.mxu0 %v2730
  %3274 = vmatpush1.msra.mxu0 %v2729
  %3275 = vmatprep.subr.mxu0 %v2726
  %3276 = vmatpush1.msra.mxu0 %v2725
  %3277 = vmatprep.subr.mxu0 %v2722
  %3278 = vmatpush1.msra.mxu0 %v2721
  %3279 = vmatprep.subr.mxu0 %v2718
  %3280 = vmatpush1.msra.mxu0 %v2717
  %3281 = vmatprep.subr.mxu0 %v2714
  %3282 = vmatpush1.msra.mxu0 %v2713
  %3283 = vmatprep.subr.mxu0 %v2710
  %3284 = vmatpush1.msra.mxu0 %v2709
  %3285 = vmatprep.subr.mxu0 %v2706
  %3286 = vmatpush1.msra.mxu0 %v2705
  %3287 = vmatprep.subr.mxu0 %v2702
  %3288 = vmatpush1.msra.mxu0 %v2701
  %3289 = vmatprep.subr.mxu0 %v2698
  %3290 = vmatpush1.msra.mxu0 %v2697
  %3291 = vmatprep.subr.mxu0 %v2694
  %3292 = vmatpush1.msra.mxu0 %v2693
  %3293 = vmatprep.subr.mxu0 %v2690
  %3294 = vmatpush1.msra.mxu0 %v2689
  %3295 = vmatprep.subr.mxu0 %v2686
  %3296 = vmatpush1.msra.mxu0 %v2685
  %3297 = vmatprep.subr.mxu0 %v2682
  %3298 = vmatpush1.msra.mxu0 %v2681
  %3299 = vmatprep.subr.mxu0 0.0
  %3300 = vmatpush2.msra.mxu0 0.0
  %3301 = vmatprep.subr.mxu0 0.0
  %3302 = vmatpush2.msra.mxu0 0.0
  %3303 = vmatprep.subr.mxu0 0.0
  %3304 = vmatpush2.msra.mxu0 0.0
  %3305 = vmatprep.subr.mxu0 0.0
  %3306 = vmatpush2.msra.mxu0 0.0
  %3307 = vmatprep.subr.mxu0 0.0
  %3308 = vmatpush2.msra.mxu0 0.0
  %3309 = vmatprep.subr.mxu0 0.0
  %3310 = vmatpush2.msra.mxu0 0.0
  %3311 = vmatprep.subr.mxu0 0.0
  %3312 = vmatpush2.msra.mxu0 0.0
  %3313 = vmatprep.subr.mxu0 0.0
  %3314 = vmatpush2.msra.mxu0 0.0
  %3315 = vmatprep.subr.mxu0 0.0
  %3316 = vmatpush2.msra.mxu0 0.0
  %3317 = vmatprep.subr.mxu0 0.0
  %3318 = vmatpush2.msra.mxu0 0.0
  %3319 = vmatprep.subr.mxu0 0.0
  %3320 = vmatpush2.msra.mxu0 0.0
  %3321 = vmatprep.subr.mxu0 0.0
  %3322 = vmatpush2.msra.mxu0 0.0
  %3323 = vmatprep.subr.mxu0 0.0
  %3324 = vmatpush2.msra.mxu0 0.0
  %3325 = vmatprep.subr.mxu0 0.0
  %3326 = vmatpush2.msra.mxu0 0.0
  %3327 = vmatprep.subr.mxu0 0.0
  %3328 = vmatpush2.msra.mxu0 0.0
  %3329 = vmatprep.subr.mxu0 0.0
  %3330 = vmatpush2.msra.mxu0 0.0
  %3331 = vmatprep.mubr.f32.mxu0 0.0
  %3332 = vmatmul.mubr.f32.gmra.mxu0 %v3262
  %v3333 = vpop.f32.mrf.mxu0
  %v3334 = vadd.f32 0.0, %v3333
  %v3335 = vpop.f32.mrf.mxu0
  %v3336 = vadd.f32 0.0, %v3335
  %3337 = vdwg.mxu0
  %3338 = vmatprep.subr.mxu0 %v2744
  %3339 = vmatpush1.msra.mxu0 %v2743
  %3340 = vmatprep.subr.mxu0 %v2740
  %3341 = vmatpush1.msra.mxu0 %v2739
  %3342 = vmatprep.subr.mxu0 %v2736
  %3343 = vmatpush1.msra.mxu0 %v2735
  %3344 = vmatprep.subr.mxu0 %v2732
  %3345 = vmatpush1.msra.mxu0 %v2731
  %3346 = vmatprep.subr.mxu0 %v2728
  %3347 = vmatpush1.msra.mxu0 %v2727
  %3348 = vmatprep.subr.mxu0 %v2724
  %3349 = vmatpush1.msra.mxu0 %v2723
  %3350 = vmatprep.subr.mxu0 %v2720
  %3351 = vmatpush1.msra.mxu0 %v2719
  %3352 = vmatprep.subr.mxu0 %v2716
  %3353 = vmatpush1.msra.mxu0 %v2715
  %3354 = vmatprep.subr.mxu0 %v2712
  %3355 = vmatpush1.msra.mxu0 %v2711
  %3356 = vmatprep.subr.mxu0 %v2708
  %3357 = vmatpush1.msra.mxu0 %v2707
  %3358 = vmatprep.subr.mxu0 %v2704
  %3359 = vmatpush1.msra.mxu0 %v2703
  %3360 = vmatprep.subr.mxu0 %v2700
  %3361 = vmatpush1.msra.mxu0 %v2699
  %3362 = vmatprep.subr.mxu0 %v2696
  %3363 = vmatpush1.msra.mxu0 %v2695
  %3364 = vmatprep.subr.mxu0 %v2692
  %3365 = vmatpush1.msra.mxu0 %v2691
  %3366 = vmatprep.subr.mxu0 %v2688
  %3367 = vmatpush1.msra.mxu0 %v2687
  %3368 = vmatprep.subr.mxu0 %v2684
  %3369 = vmatpush1.msra.mxu0 %v2683
  %3370 = vmatprep.subr.mxu0 0.0
  %3371 = vmatpush2.msra.mxu0 0.0
  %3372 = vmatprep.subr.mxu0 0.0
  %3373 = vmatpush2.msra.mxu0 0.0
  %3374 = vmatprep.subr.mxu0 0.0
  %3375 = vmatpush2.msra.mxu0 0.0
  %3376 = vmatprep.subr.mxu0 0.0
  %3377 = vmatpush2.msra.mxu0 0.0
  %3378 = vmatprep.subr.mxu0 0.0
  %3379 = vmatpush2.msra.mxu0 0.0
  %3380 = vmatprep.subr.mxu0 0.0
  %3381 = vmatpush2.msra.mxu0 0.0
  %3382 = vmatprep.subr.mxu0 0.0
  %3383 = vmatpush2.msra.mxu0 0.0
  %3384 = vmatprep.subr.mxu0 0.0
  %3385 = vmatpush2.msra.mxu0 0.0
  %3386 = vmatprep.subr.mxu0 0.0
  %3387 = vmatpush2.msra.mxu0 0.0
  %3388 = vmatprep.subr.mxu0 0.0
  %3389 = vmatpush2.msra.mxu0 0.0
  %3390 = vmatprep.subr.mxu0 0.0
  %3391 = vmatpush2.msra.mxu0 0.0
  %3392 = vmatprep.subr.mxu0 0.0
  %3393 = vmatpush2.msra.mxu0 0.0
  %3394 = vmatprep.subr.mxu0 0.0
  %3395 = vmatpush2.msra.mxu0 0.0
  %3396 = vmatprep.subr.mxu0 0.0
  %3397 = vmatpush2.msra.mxu0 0.0
  %3398 = vmatprep.subr.mxu0 0.0
  %3399 = vmatpush2.msra.mxu0 0.0
  %3400 = vmatprep.subr.mxu0 0.0
  %3401 = vmatpush2.msra.mxu0 0.0
  %3402 = vmatprep.mubr.f32.mxu0 0.0
  %3403 = vmatmul.mubr.f32.gmra.mxu0 %v3262
  %v3404 = vpop.f32.mrf.mxu0
  %v3405 = vadd.f32 0.0, %v3404
  %v3406 = vpop.f32.mrf.mxu0
  %v3407 = vadd.f32 0.0, %v3406
  %3408 = vdwg.mxu0
  %v3409 = vadd.f32 %v3263, %v3334
  %v3410 = vadd.f32 %v3264, %v3336
  %v3411 = vadd.f32 %v3265, %v3405
  %v3412 = vadd.f32 %v3266, %v3407
  %v3413 = vxor.u32 %v3409, 2147483648
  %v3414 = vmul.f32 %v3413, 1.442695
  %v3415 = vpow.pop %v3414
  %v3416 = vadd.f32 %v3415, 1.0
  %v3417 = vrcp.pop %v3416
  %v3418 = vmul.f32 1.0, %v3417
  %v3419 = vxor.u32 %v3410, 2147483648
  %v3420 = vmul.f32 %v3419, 1.442695
  %v3421 = vpow.pop %v3420
  %v3422 = vadd.f32 %v3421, 1.0
  %v3423 = vrcp.pop %v3422
  %v3424 = vmul.f32 1.0, %v3423
  %v3425 = vtanh.pop %v3411
  %v3426 = vxor.u32 %v3412, 2147483648
  %v3427 = vmul.f32 %v3426, 1.442695
  %v3428 = vpow.pop %v3427
  %v3429 = vadd.f32 %v3428, 1.0
  %v3430 = vrcp.pop %v3429
  %v3431 = vmul.f32 1.0, %v3430
  %v3432 = vmul.f32 %v3424, %v3260
  %v3433 = vmul.f32 %v3418, %v3425
  %v3434 = vadd.f32 %v3432, %v3433
  %v3435 = vtanh.pop %v3434
  %v3436 = vmul.f32 %v3431, %v3435
  %v3437 = vld [vmem:[%s1353] sm:$0xff]
  %v3438 = vld [vmem:[%s1353 + $0x8] sm:$0xff]
  %v3439 = vld [vmem:[%s1353 + $0x10] sm:$0xff]
  %v3440 = vld [vmem:[%s1353 + $0x18] sm:$0xff]
  %3441 = vmatprep.subr.mxu0 %v2742
  %3442 = vmatpush1.msra.mxu0 %v2741
  %3443 = vmatprep.subr.mxu0 %v2738
  %3444 = vmatpush1.msra.mxu0 %v2737
  %3445 = vmatprep.subr.mxu0 %v2734
  %3446 = vmatpush1.msra.mxu0 %v2733
  %3447 = vmatprep.subr.mxu0 %v2730
  %3448 = vmatpush1.msra.mxu0 %v2729
  %3449 = vmatprep.subr.mxu0 %v2726
  %3450 = vmatpush1.msra.mxu0 %v2725
  %3451 = vmatprep.subr.mxu0 %v2722
  %3452 = vmatpush1.msra.mxu0 %v2721
  %3453 = vmatprep.subr.mxu0 %v2718
  %3454 = vmatpush1.msra.mxu0 %v2717
  %3455 = vmatprep.subr.mxu0 %v2714
  %3456 = vmatpush1.msra.mxu0 %v2713
  %3457 = vmatprep.subr.mxu0 %v2710
  %3458 = vmatpush1.msra.mxu0 %v2709
  %3459 = vmatprep.subr.mxu0 %v2706
  %3460 = vmatpush1.msra.mxu0 %v2705
  %3461 = vmatprep.subr.mxu0 %v2702
  %3462 = vmatpush1.msra.mxu0 %v2701
  %3463 = vmatprep.subr.mxu0 %v2698
  %3464 = vmatpush1.msra.mxu0 %v2697
  %3465 = vmatprep.subr.mxu0 %v2694
  %3466 = vmatpush1.msra.mxu0 %v2693
  %3467 = vmatprep.subr.mxu0 %v2690
  %3468 = vmatpush1.msra.mxu0 %v2689
  %3469 = vmatprep.subr.mxu0 %v2686
  %3470 = vmatpush1.msra.mxu0 %v2685
  %3471 = vmatprep.subr.mxu0 %v2682
  %3472 = vmatpush1.msra.mxu0 %v2681
  %3473 = vmatprep.subr.mxu0 0.0
  %3474 = vmatpush2.msra.mxu0 0.0
  %3475 = vmatprep.subr.mxu0 0.0
  %3476 = vmatpush2.msra.mxu0 0.0
  %3477 = vmatprep.subr.mxu0 0.0
  %3478 = vmatpush2.msra.mxu0 0.0
  %3479 = vmatprep.subr.mxu0 0.0
  %3480 = vmatpush2.msra.mxu0 0.0
  %3481 = vmatprep.subr.mxu0 0.0
  %3482 = vmatpush2.msra.mxu0 0.0
  %3483 = vmatprep.subr.mxu0 0.0
  %3484 = vmatpush2.msra.mxu0 0.0
  %3485 = vmatprep.subr.mxu0 0.0
  %3486 = vmatpush2.msra.mxu0 0.0
  %3487 = vmatprep.subr.mxu0 0.0
  %3488 = vmatpush2.msra.mxu0 0.0
  %3489 = vmatprep.subr.mxu0 0.0
  %3490 = vmatpush2.msra.mxu0 0.0
  %3491 = vmatprep.subr.mxu0 0.0
  %3492 = vmatpush2.msra.mxu0 0.0
  %3493 = vmatprep.subr.mxu0 0.0
  %3494 = vmatpush2.msra.mxu0 0.0
  %3495 = vmatprep.subr.mxu0 0.0
  %3496 = vmatpush2.msra.mxu0 0.0
  %3497 = vmatprep.subr.mxu0 0.0
  %3498 = vmatpush2.msra.mxu0 0.0
  %3499 = vmatprep.subr.mxu0 0.0
  %3500 = vmatpush2.msra.mxu0 0.0
  %3501 = vmatprep.subr.mxu0 0.0
  %3502 = vmatpush2.msra.mxu0 0.0
  %3503 = vmatprep.subr.mxu0 0.0
  %3504 = vmatpush2.msra.mxu0 0.0
  %3505 = vmatprep.mubr.f32.mxu0 0.0
  %3506 = vmatmul.mubr.f32.gmra.mxu0 %v3436
  %v3507 = vpop.f32.mrf.mxu0
  %v3508 = vadd.f32 0.0, %v3507
  %v3509 = vpop.f32.mrf.mxu0
  %v3510 = vadd.f32 0.0, %v3509
  %3511 = vdwg.mxu0
  %3512 = vmatprep.subr.mxu0 %v2744
  %3513 = vmatpush1.msra.mxu0 %v2743
  %3514 = vmatprep.subr.mxu0 %v2740
  %3515 = vmatpush1.msra.mxu0 %v2739
  %3516 = vmatprep.subr.mxu0 %v2736
  %3517 = vmatpush1.msra.mxu0 %v2735
  %3518 = vmatprep.subr.mxu0 %v2732
  %3519 = vmatpush1.msra.mxu0 %v2731
  %3520 = vmatprep.subr.mxu0 %v2728
  %3521 = vmatpush1.msra.mxu0 %v2727
  %3522 = vmatprep.subr.mxu0 %v2724
  %3523 = vmatpush1.msra.mxu0 %v2723
  %3524 = vmatprep.subr.mxu0 %v2720
  %3525 = vmatpush1.msra.mxu0 %v2719
  %3526 = vmatprep.subr.mxu0 %v2716
  %3527 = vmatpush1.msra.mxu0 %v2715
  %3528 = vmatprep.subr.mxu0 %v2712
  %3529 = vmatpush1.msra.mxu0 %v2711
  %3530 = vmatprep.subr.mxu0 %v2708
  %3531 = vmatpush1.msra.mxu0 %v2707
  %3532 = vmatprep.subr.mxu0 %v2704
  %3533 = vmatpush1.msra.mxu0 %v2703
  %3534 = vmatprep.subr.mxu0 %v2700
  %3535 = vmatpush1.msra.mxu0 %v2699
  %3536 = vmatprep.subr.mxu0 %v2696
  %3537 = vmatpush1.msra.mxu0 %v2695
  %3538 = vmatprep.subr.mxu0 %v2692
  %3539 = vmatpush1.msra.mxu0 %v2691
  %3540 = vmatprep.subr.mxu0 %v2688
  %3541 = vmatpush1.msra.mxu0 %v2687
  %3542 = vmatprep.subr.mxu0 %v2684
  %3543 = vmatpush1.msra.mxu0 %v2683
  %3544 = vmatprep.subr.mxu0 0.0
  %3545 = vmatpush2.msra.mxu0 0.0
  %3546 = vmatprep.subr.mxu0 0.0
  %3547 = vmatpush2.msra.mxu0 0.0
  %3548 = vmatprep.subr.mxu0 0.0
  %3549 = vmatpush2.msra.mxu0 0.0
  %3550 = vmatprep.subr.mxu0 0.0
  %3551 = vmatpush2.msra.mxu0 0.0
  %3552 = vmatprep.subr.mxu0 0.0
  %3553 = vmatpush2.msra.mxu0 0.0
  %3554 = vmatprep.subr.mxu0 0.0
  %3555 = vmatpush2.msra.mxu0 0.0
  %3556 = vmatprep.subr.mxu0 0.0
  %3557 = vmatpush2.msra.mxu0 0.0
  %3558 = vmatprep.subr.mxu0 0.0
  %3559 = vmatpush2.msra.mxu0 0.0
  %3560 = vmatprep.subr.mxu0 0.0
  %3561 = vmatpush2.msra.mxu0 0.0
  %3562 = vmatprep.subr.mxu0 0.0
  %3563 = vmatpush2.msra.mxu0 0.0
  %3564 = vmatprep.subr.mxu0 0.0
  %3565 = vmatpush2.msra.mxu0 0.0
  %3566 = vmatprep.subr.mxu0 0.0
  %3567 = vmatpush2.msra.mxu0 0.0
  %3568 = vmatprep.subr.mxu0 0.0
  %3569 = vmatpush2.msra.mxu0 0.0
  %3570 = vmatprep.subr.mxu0 0.0
  %3571 = vmatpush2.msra.mxu0 0.0
  %3572 = vmatprep.subr.mxu0 0.0
  %3573 = vmatpush2.msra.mxu0 0.0
  %3574 = vmatprep.subr.mxu0 0.0
  %3575 = vmatpush2.msra.mxu0 0.0
  %3576 = vmatprep.mubr.f32.mxu0 0.0
  %3577 = vmatmul.mubr.f32.gmra.mxu0 %v3436
  %v3578 = vpop.f32.mrf.mxu0
  %v3579 = vadd.f32 0.0, %v3578
  %v3580 = vpop.f32.mrf.mxu0
  %v3581 = vadd.f32 0.0, %v3580
  %3582 = vdwg.mxu0
  %v3583 = vadd.f32 %v3437, %v3508
  %v3584 = vadd.f32 %v3438, %v3510
  %v3585 = vadd.f32 %v3439, %v3579
  %v3586 = vadd.f32 %v3440, %v3581
  %v3587 = vxor.u32 %v3583, 2147483648
  %v3588 = vmul.f32 %v3587, 1.442695
  %v3589 = vpow.pop %v3588
  %v3590 = vadd.f32 %v3589, 1.0
  %v3591 = vrcp.pop %v3590
  %v3592 = vmul.f32 1.0, %v3591
  %v3593 = vxor.u32 %v3584, 2147483648
  %v3594 = vmul.f32 %v3593, 1.442695
  %v3595 = vpow.pop %v3594
  %v3596 = vadd.f32 %v3595, 1.0
  %v3597 = vrcp.pop %v3596
  %v3598 = vmul.f32 1.0, %v3597
  %v3599 = vtanh.pop %v3585
  %v3600 = vxor.u32 %v3586, 2147483648
  %v3601 = vmul.f32 %v3600, 1.442695
  %v3602 = vpow.pop %v3601
  %v3603 = vadd.f32 %v3602, 1.0
  %v3604 = vrcp.pop %v3603
  %v3605 = vmul.f32 1.0, %v3604
  %v3606 = vmul.f32 %v3598, %v3434
  %v3607 = vmul.f32 %v3592, %v3599
  %v3608 = vadd.f32 %v3606, %v3607
  %v3609 = vtanh.pop %v3608
  %v3610 = vmul.f32 %v3605, %v3609
  %v3611 = vld [vmem:[%s1596] sm:$0xff]
  %v3612 = vld [vmem:[%s1596 + $0x8] sm:$0xff]
  %v3613 = vld [vmem:[%s1596 + $0x10] sm:$0xff]
  %v3614 = vld [vmem:[%s1596 + $0x18] sm:$0xff]
  %3615 = vmatprep.subr.mxu0 %v2742
  %3616 = vmatpush1.msra.mxu0 %v2741
  %3617 = vmatprep.subr.mxu0 %v2738
  %3618 = vmatpush1.msra.mxu0 %v2737
  %3619 = vmatprep.subr.mxu0 %v2734
  %3620 = vmatpush1.msra.mxu0 %v2733
  %3621 = vmatprep.subr.mxu0 %v2730
  %3622 = vmatpush1.msra.mxu0 %v2729
  %3623 = vmatprep.subr.mxu0 %v2726
  %3624 = vmatpush1.msra.mxu0 %v2725
  %3625 = vmatprep.subr.mxu0 %v2722
  %3626 = vmatpush1.msra.mxu0 %v2721
  %3627 = vmatprep.subr.mxu0 %v2718
  %3628 = vmatpush1.msra.mxu0 %v2717
  %3629 = vmatprep.subr.mxu0 %v2714
  %3630 = vmatpush1.msra.mxu0 %v2713
  %3631 = vmatprep.subr.mxu0 %v2710
  %3632 = vmatpush1.msra.mxu0 %v2709
  %3633 = vmatprep.subr.mxu0 %v2706
  %3634 = vmatpush1.msra.mxu0 %v2705
  %3635 = vmatprep.subr.mxu0 %v2702
  %3636 = vmatpush1.msra.mxu0 %v2701
  %3637 = vmatprep.subr.mxu0 %v2698
  %3638 = vmatpush1.msra.mxu0 %v2697
  %3639 = vmatprep.subr.mxu0 %v2694
  %3640 = vmatpush1.msra.mxu0 %v2693
  %3641 = vmatprep.subr.mxu0 %v2690
  %3642 = vmatpush1.msra.mxu0 %v2689
  %3643 = vmatprep.subr.mxu0 %v2686
  %3644 = vmatpush1.msra.mxu0 %v2685
  %3645 = vmatprep.subr.mxu0 %v2682
  %3646 = vmatpush1.msra.mxu0 %v2681
  %3647 = vmatprep.subr.mxu0 0.0
  %3648 = vmatpush2.msra.mxu0 0.0
  %3649 = vmatprep.subr.mxu0 0.0
  %3650 = vmatpush2.msra.mxu0 0.0
  %3651 = vmatprep.subr.mxu0 0.0
  %3652 = vmatpush2.msra.mxu0 0.0
  %3653 = vmatprep.subr.mxu0 0.0
  %3654 = vmatpush2.msra.mxu0 0.0
  %3655 = vmatprep.subr.mxu0 0.0
  %3656 = vmatpush2.msra.mxu0 0.0
  %3657 = vmatprep.subr.mxu0 0.0
  %3658 = vmatpush2.msra.mxu0 0.0
  %3659 = vmatprep.subr.mxu0 0.0
  %3660 = vmatpush2.msra.mxu0 0.0
  %3661 = vmatprep.subr.mxu0 0.0
  %3662 = vmatpush2.msra.mxu0 0.0
  %3663 = vmatprep.subr.mxu0 0.0
  %3664 = vmatpush2.msra.mxu0 0.0
  %3665 = vmatprep.subr.mxu0 0.0
  %3666 = vmatpush2.msra.mxu0 0.0
  %3667 = vmatprep.subr.mxu0 0.0
  %3668 = vmatpush2.msra.mxu0 0.0
  %3669 = vmatprep.subr.mxu0 0.0
  %3670 = vmatpush2.msra.mxu0 0.0
  %3671 = vmatprep.subr.mxu0 0.0
  %3672 = vmatpush2.msra.mxu0 0.0
  %3673 = vmatprep.subr.mxu0 0.0
  %3674 = vmatpush2.msra.mxu0 0.0
  %3675 = vmatprep.subr.mxu0 0.0
  %3676 = vmatpush2.msra.mxu0 0.0
  %3677 = vmatprep.subr.mxu0 0.0
  %3678 = vmatpush2.msra.mxu0 0.0
  %3679 = vmatprep.mubr.f32.mxu0 0.0
  %3680 = vmatmul.mubr.f32.gmra.mxu0 %v3610
  %v3681 = vpop.f32.mrf.mxu0
  %v3682 = vadd.f32 0.0, %v3681
  %v3683 = vpop.f32.mrf.mxu0
  %v3684 = vadd.f32 0.0, %v3683
  %3685 = vdwg.mxu0
  %3686 = vmatprep.subr.mxu0 %v2744
  %3687 = vmatpush1.msra.mxu0 %v2743
  %3688 = vmatprep.subr.mxu0 %v2740
  %3689 = vmatpush1.msra.mxu0 %v2739
  %3690 = vmatprep.subr.mxu0 %v2736
  %3691 = vmatpush1.msra.mxu0 %v2735
  %3692 = vmatprep.subr.mxu0 %v2732
  %3693 = vmatpush1.msra.mxu0 %v2731
  %3694 = vmatprep.subr.mxu0 %v2728
  %3695 = vmatpush1.msra.mxu0 %v2727
  %3696 = vmatprep.subr.mxu0 %v2724
  %3697 = vmatpush1.msra.mxu0 %v2723
  %3698 = vmatprep.subr.mxu0 %v2720
  %3699 = vmatpush1.msra.mxu0 %v2719
  %3700 = vmatprep.subr.mxu0 %v2716
  %3701 = vmatpush1.msra.mxu0 %v2715
  %3702 = vmatprep.subr.mxu0 %v2712
  %3703 = vmatpush1.msra.mxu0 %v2711
  %3704 = vmatprep.subr.mxu0 %v2708
  %3705 = vmatpush1.msra.mxu0 %v2707
  %3706 = vmatprep.subr.mxu0 %v2704
  %3707 = vmatpush1.msra.mxu0 %v2703
  %3708 = vmatprep.subr.mxu0 %v2700
  %3709 = vmatpush1.msra.mxu0 %v2699
  %3710 = vmatprep.subr.mxu0 %v2696
  %3711 = vmatpush1.msra.mxu0 %v2695
  %3712 = vmatprep.subr.mxu0 %v2692
  %3713 = vmatpush1.msra.mxu0 %v2691
  %3714 = vmatprep.subr.mxu0 %v2688
  %3715 = vmatpush1.msra.mxu0 %v2687
  %3716 = vmatprep.subr.mxu0 %v2684
  %3717 = vmatpush1.msra.mxu0 %v2683
  %3718 = vmatprep.subr.mxu0 0.0
  %3719 = vmatpush2.msra.mxu0 0.0
  %3720 = vmatprep.subr.mxu0 0.0
  %3721 = vmatpush2.msra.mxu0 0.0
  %3722 = vmatprep.subr.mxu0 0.0
  %3723 = vmatpush2.msra.mxu0 0.0
  %3724 = vmatprep.subr.mxu0 0.0
  %3725 = vmatpush2.msra.mxu0 0.0
  %3726 = vmatprep.subr.mxu0 0.0
  %3727 = vmatpush2.msra.mxu0 0.0
  %3728 = vmatprep.subr.mxu0 0.0
  %3729 = vmatpush2.msra.mxu0 0.0
  %3730 = vmatprep.subr.mxu0 0.0
  %3731 = vmatpush2.msra.mxu0 0.0
  %3732 = vmatprep.subr.mxu0 0.0
  %3733 = vmatpush2.msra.mxu0 0.0
  %3734 = vmatprep.subr.mxu0 0.0
  %3735 = vmatpush2.msra.mxu0 0.0
  %3736 = vmatprep.subr.mxu0 0.0
  %3737 = vmatpush2.msra.mxu0 0.0
  %3738 = vmatprep.subr.mxu0 0.0
  %3739 = vmatpush2.msra.mxu0 0.0
  %3740 = vmatprep.subr.mxu0 0.0
  %3741 = vmatpush2.msra.mxu0 0.0
  %3742 = vmatprep.subr.mxu0 0.0
  %3743 = vmatpush2.msra.mxu0 0.0
  %3744 = vmatprep.subr.mxu0 0.0
  %3745 = vmatpush2.msra.mxu0 0.0
  %3746 = vmatprep.subr.mxu0 0.0
  %3747 = vmatpush2.msra.mxu0 0.0
  %3748 = vmatprep.subr.mxu0 0.0
  %3749 = vmatpush2.msra.mxu0 0.0
  %3750 = vmatprep.mubr.f32.mxu0 0.0
  %3751 = vmatmul.mubr.f32.gmra.mxu0 %v3610
  %v3752 = vpop.f32.mrf.mxu0
  %v3753 = vadd.f32 0.0, %v3752
  %v3754 = vpop.f32.mrf.mxu0
  %v3755 = vadd.f32 0.0, %v3754
  %3756 = vdwg.mxu0
  %v3757 = vadd.f32 %v3611, %v3682
  %v3758 = vadd.f32 %v3612, %v3684
  %v3759 = vadd.f32 %v3613, %v3753
  %v3760 = vadd.f32 %v3614, %v3755
  %v3761 = vxor.u32 %v3757, 2147483648
  %v3762 = vmul.f32 %v3761, 1.442695
  %v3763 = vpow.pop %v3762
  %v3764 = vadd.f32 %v3763, 1.0
  %v3765 = vrcp.pop %v3764
  %v3766 = vmul.f32 1.0, %v3765
  %v3767 = vxor.u32 %v3758, 2147483648
  %v3768 = vmul.f32 %v3767, 1.442695
  %v3769 = vpow.pop %v3768
  %v3770 = vadd.f32 %v3769, 1.0
  %v3771 = vrcp.pop %v3770
  %v3772 = vmul.f32 1.0, %v3771
  %v3773 = vtanh.pop %v3759
  %v3774 = vxor.u32 %v3760, 2147483648
  %v3775 = vmul.f32 %v3774, 1.442695
  %v3776 = vpow.pop %v3775
  %v3777 = vadd.f32 %v3776, 1.0
  %v3778 = vrcp.pop %v3777
  %v3779 = vmul.f32 1.0, %v3778
  %v3780 = vmul.f32 %v3772, %v3608
  %v3781 = vmul.f32 %v3766, %v3773
  %v3782 = vadd.f32 %v3780, %v3781
  %v3783 = vtanh.pop %v3782
  %v3784 = vmul.f32 %v3779, %v3783
  %v3785 = vld [vmem:[%s1839] sm:$0xff]
  %v3786 = vld [vmem:[%s1839 + $0x8] sm:$0xff]
  %v3787 = vld [vmem:[%s1839 + $0x10] sm:$0xff]
  %v3788 = vld [vmem:[%s1839 + $0x18] sm:$0xff]
  %3789 = vmatprep.subr.mxu0 %v2742
  %3790 = vmatpush1.msra.mxu0 %v2741
  %3791 = vmatprep.subr.mxu0 %v2738
  %3792 = vmatpush1.msra.mxu0 %v2737
  %3793 = vmatprep.subr.mxu0 %v2734
  %3794 = vmatpush1.msra.mxu0 %v2733
  %3795 = vmatprep.subr.mxu0 %v2730
  %3796 = vmatpush1.msra.mxu0 %v2729
  %3797 = vmatprep.subr.mxu0 %v2726
  %3798 = vmatpush1.msra.mxu0 %v2725
  %3799 = vmatprep.subr.mxu0 %v2722
  %3800 = vmatpush1.msra.mxu0 %v2721
  %3801 = vmatprep.subr.mxu0 %v2718
  %3802 = vmatpush1.msra.mxu0 %v2717
  %3803 = vmatprep.subr.mxu0 %v2714
  %3804 = vmatpush1.msra.mxu0 %v2713
  %3805 = vmatprep.subr.mxu0 %v2710
  %3806 = vmatpush1.msra.mxu0 %v2709
  %3807 = vmatprep.subr.mxu0 %v2706
  %3808 = vmatpush1.msra.mxu0 %v2705
  %3809 = vmatprep.subr.mxu0 %v2702
  %3810 = vmatpush1.msra.mxu0 %v2701
  %3811 = vmatprep.subr.mxu0 %v2698
  %3812 = vmatpush1.msra.mxu0 %v2697
  %3813 = vmatprep.subr.mxu0 %v2694
  %3814 = vmatpush1.msra.mxu0 %v2693
  %3815 = vmatprep.subr.mxu0 %v2690
  %3816 = vmatpush1.msra.mxu0 %v2689
  %3817 = vmatprep.subr.mxu0 %v2686
  %3818 = vmatpush1.msra.mxu0 %v2685
  %3819 = vmatprep.subr.mxu0 %v2682
  %3820 = vmatpush1.msra.mxu0 %v2681
  %3821 = vmatprep.subr.mxu0 0.0
  %3822 = vmatpush2.msra.mxu0 0.0
  %3823 = vmatprep.subr.mxu0 0.0
  %3824 = vmatpush2.msra.mxu0 0.0
  %3825 = vmatprep.subr.mxu0 0.0
  %3826 = vmatpush2.msra.mxu0 0.0
  %3827 = vmatprep.subr.mxu0 0.0
  %3828 = vmatpush2.msra.mxu0 0.0
  %3829 = vmatprep.subr.mxu0 0.0
  %3830 = vmatpush2.msra.mxu0 0.0
  %3831 = vmatprep.subr.mxu0 0.0
  %3832 = vmatpush2.msra.mxu0 0.0
  %3833 = vmatprep.subr.mxu0 0.0
  %3834 = vmatpush2.msra.mxu0 0.0
  %3835 = vmatprep.subr.mxu0 0.0
  %3836 = vmatpush2.msra.mxu0 0.0
  %3837 = vmatprep.subr.mxu0 0.0
  %3838 = vmatpush2.msra.mxu0 0.0
  %3839 = vmatprep.subr.mxu0 0.0
  %3840 = vmatpush2.msra.mxu0 0.0
  %3841 = vmatprep.subr.mxu0 0.0
  %3842 = vmatpush2.msra.mxu0 0.0
  %3843 = vmatprep.subr.mxu0 0.0
  %3844 = vmatpush2.msra.mxu0 0.0
  %3845 = vmatprep.subr.mxu0 0.0
  %3846 = vmatpush2.msra.mxu0 0.0
  %3847 = vmatprep.subr.mxu0 0.0
  %3848 = vmatpush2.msra.mxu0 0.0
  %3849 = vmatprep.subr.mxu0 0.0
  %3850 = vmatpush2.msra.mxu0 0.0
  %3851 = vmatprep.subr.mxu0 0.0
  %3852 = vmatpush2.msra.mxu0 0.0
  %3853 = vmatprep.mubr.f32.mxu0 0.0
  %3854 = vmatmul.mubr.f32.gmra.mxu0 %v3784
  %v3855 = vpop.f32.mrf.mxu0
  %v3856 = vadd.f32 0.0, %v3855
  %v3857 = vpop.f32.mrf.mxu0
  %v3858 = vadd.f32 0.0, %v3857
  %3859 = vdwg.mxu0
  %3860 = vmatprep.subr.mxu0 %v2744
  %3861 = vmatpush1.msra.mxu0 %v2743
  %3862 = vmatprep.subr.mxu0 %v2740
  %3863 = vmatpush1.msra.mxu0 %v2739
  %3864 = vmatprep.subr.mxu0 %v2736
  %3865 = vmatpush1.msra.mxu0 %v2735
  %3866 = vmatprep.subr.mxu0 %v2732
  %3867 = vmatpush1.msra.mxu0 %v2731
  %3868 = vmatprep.subr.mxu0 %v2728
  %3869 = vmatpush1.msra.mxu0 %v2727
  %3870 = vmatprep.subr.mxu0 %v2724
  %3871 = vmatpush1.msra.mxu0 %v2723
  %3872 = vmatprep.subr.mxu0 %v2720
  %3873 = vmatpush1.msra.mxu0 %v2719
  %3874 = vmatprep.subr.mxu0 %v2716
  %3875 = vmatpush1.msra.mxu0 %v2715
  %3876 = vmatprep.subr.mxu0 %v2712
  %3877 = vmatpush1.msra.mxu0 %v2711
  %3878 = vmatprep.subr.mxu0 %v2708
  %3879 = vmatpush1.msra.mxu0 %v2707
  %3880 = vmatprep.subr.mxu0 %v2704
  %3881 = vmatpush1.msra.mxu0 %v2703
  %3882 = vmatprep.subr.mxu0 %v2700
  %3883 = vmatpush1.msra.mxu0 %v2699
  %3884 = vmatprep.subr.mxu0 %v2696
  %3885 = vmatpush1.msra.mxu0 %v2695
  %3886 = vmatprep.subr.mxu0 %v2692
  %3887 = vmatpush1.msra.mxu0 %v2691
  %3888 = vmatprep.subr.mxu0 %v2688
  %3889 = vmatpush1.msra.mxu0 %v2687
  %3890 = vmatprep.subr.mxu0 %v2684
  %3891 = vmatpush1.msra.mxu0 %v2683
  %3892 = vmatprep.subr.mxu0 0.0
  %3893 = vmatpush2.msra.mxu0 0.0
  %3894 = vmatprep.subr.mxu0 0.0
  %3895 = vmatpush2.msra.mxu0 0.0
  %3896 = vmatprep.subr.mxu0 0.0
  %3897 = vmatpush2.msra.mxu0 0.0
  %3898 = vmatprep.subr.mxu0 0.0
  %3899 = vmatpush2.msra.mxu0 0.0
  %3900 = vmatprep.subr.mxu0 0.0
  %3901 = vmatpush2.msra.mxu0 0.0
  %3902 = vmatprep.subr.mxu0 0.0
  %3903 = vmatpush2.msra.mxu0 0.0
  %3904 = vmatprep.subr.mxu0 0.0
  %3905 = vmatpush2.msra.mxu0 0.0
  %3906 = vmatprep.subr.mxu0 0.0
  %3907 = vmatpush2.msra.mxu0 0.0
  %3908 = vmatprep.subr.mxu0 0.0
  %3909 = vmatpush2.msra.mxu0 0.0
  %3910 = vmatprep.subr.mxu0 0.0
  %3911 = vmatpush2.msra.mxu0 0.0
  %3912 = vmatprep.subr.mxu0 0.0
  %3913 = vmatpush2.msra.mxu0 0.0
  %3914 = vmatprep.subr.mxu0 0.0
  %3915 = vmatpush2.msra.mxu0 0.0
  %3916 = vmatprep.subr.mxu0 0.0
  %3917 = vmatpush2.msra.mxu0 0.0
  %3918 = vmatprep.subr.mxu0 0.0
  %3919 = vmatpush2.msra.mxu0 0.0
  %3920 = vmatprep.subr.mxu0 0.0
  %3921 = vmatpush2.msra.mxu0 0.0
  %3922 = vmatprep.subr.mxu0 0.0
  %3923 = vmatpush2.msra.mxu0 0.0
  %3924 = vmatprep.mubr.f32.mxu0 0.0
  %3925 = vmatmul.mubr.f32.gmra.mxu0 %v3784
  %v3926 = vpop.f32.mrf.mxu0
  %v3927 = vadd.f32 0.0, %v3926
  %v3928 = vpop.f32.mrf.mxu0
  %v3929 = vadd.f32 0.0, %v3928
  %3930 = vdwg.mxu0
  %v3931 = vadd.f32 %v3785, %v3856
  %v3932 = vadd.f32 %v3786, %v3858
  %v3933 = vadd.f32 %v3787, %v3927
  %v3934 = vadd.f32 %v3788, %v3929
  %v3935 = vxor.u32 %v3931, 2147483648
  %v3936 = vmul.f32 %v3935, 1.442695
  %v3937 = vpow.pop %v3936
  %v3938 = vadd.f32 %v3937, 1.0
  %v3939 = vrcp.pop %v3938
  %v3940 = vmul.f32 1.0, %v3939
  %v3941 = vxor.u32 %v3932, 2147483648
  %v3942 = vmul.f32 %v3941, 1.442695
  %v3943 = vpow.pop %v3942
  %v3944 = vadd.f32 %v3943, 1.0
  %v3945 = vrcp.pop %v3944
  %v3946 = vmul.f32 1.0, %v3945
  %v3947 = vtanh.pop %v3933
  %v3948 = vxor.u32 %v3934, 2147483648
  %v3949 = vmul.f32 %v3948, 1.442695
  %v3950 = vpow.pop %v3949
  %v3951 = vadd.f32 %v3950, 1.0
  %v3952 = vrcp.pop %v3951
  %v3953 = vmul.f32 1.0, %v3952
  %v3954 = vmul.f32 %v3946, %v3782
  %v3955 = vmul.f32 %v3940, %v3947
  %v3956 = vadd.f32 %v3954, %v3955
  %v3957 = vtanh.pop %v3956
  %v3958 = vmul.f32 %v3953, %v3957
  %v3959 = vld [vmem:[%s2082] sm:$0xff]
  %v3960 = vld [vmem:[%s2082 + $0x8] sm:$0xff]
  %v3961 = vld [vmem:[%s2082 + $0x10] sm:$0xff]
  %v3962 = vld [vmem:[%s2082 + $0x18] sm:$0xff]
  %3963 = vmatprep.subr.mxu0 %v2742
  %3964 = vmatpush1.msra.mxu0 %v2741
  %3965 = vmatprep.subr.mxu0 %v2738
  %3966 = vmatpush1.msra.mxu0 %v2737
  %3967 = vmatprep.subr.mxu0 %v2734
  %3968 = vmatpush1.msra.mxu0 %v2733
  %3969 = vmatprep.subr.mxu0 %v2730
  %3970 = vmatpush1.msra.mxu0 %v2729
  %3971 = vmatprep.subr.mxu0 %v2726
  %3972 = vmatpush1.msra.mxu0 %v2725
  %3973 = vmatprep.subr.mxu0 %v2722
  %3974 = vmatpush1.msra.mxu0 %v2721
  %3975 = vmatprep.subr.mxu0 %v2718
  %3976 = vmatpush1.msra.mxu0 %v2717
  %3977 = vmatprep.subr.mxu0 %v2714
  %3978 = vmatpush1.msra.mxu0 %v2713
  %3979 = vmatprep.subr.mxu0 %v2710
  %3980 = vmatpush1.msra.mxu0 %v2709
  %3981 = vmatprep.subr.mxu0 %v2706
  %3982 = vmatpush1.msra.mxu0 %v2705
  %3983 = vmatprep.subr.mxu0 %v2702
  %3984 = vmatpush1.msra.mxu0 %v2701
  %3985 = vmatprep.subr.mxu0 %v2698
  %3986 = vmatpush1.msra.mxu0 %v2697
  %3987 = vmatprep.subr.mxu0 %v2694
  %3988 = vmatpush1.msra.mxu0 %v2693
  %3989 = vmatprep.subr.mxu0 %v2690
  %3990 = vmatpush1.msra.mxu0 %v2689
  %3991 = vmatprep.subr.mxu0 %v2686
  %3992 = vmatpush1.msra.mxu0 %v2685
  %3993 = vmatprep.subr.mxu0 %v2682
  %3994 = vmatpush1.msra.mxu0 %v2681
  %3995 = vmatprep.subr.mxu0 0.0
  %3996 = vmatpush2.msra.mxu0 0.0
  %3997 = vmatprep.subr.mxu0 0.0
  %3998 = vmatpush2.msra.mxu0 0.0
  %3999 = vmatprep.subr.mxu0 0.0
  %4000 = vmatpush2.msra.mxu0 0.0
  %4001 = vmatprep.subr.mxu0 0.0
  %4002 = vmatpush2.msra.mxu0 0.0
  %4003 = vmatprep.subr.mxu0 0.0
  %4004 = vmatpush2.msra.mxu0 0.0
  %4005 = vmatprep.subr.mxu0 0.0
  %4006 = vmatpush2.msra.mxu0 0.0
  %4007 = vmatprep.subr.mxu0 0.0
  %4008 = vmatpush2.msra.mxu0 0.0
  %4009 = vmatprep.subr.mxu0 0.0
  %4010 = vmatpush2.msra.mxu0 0.0
  %4011 = vmatprep.subr.mxu0 0.0
  %4012 = vmatpush2.msra.mxu0 0.0
  %4013 = vmatprep.subr.mxu0 0.0
  %4014 = vmatpush2.msra.mxu0 0.0
  %4015 = vmatprep.subr.mxu0 0.0
  %4016 = vmatpush2.msra.mxu0 0.0
  %4017 = vmatprep.subr.mxu0 0.0
  %4018 = vmatpush2.msra.mxu0 0.0
  %4019 = vmatprep.subr.mxu0 0.0
  %4020 = vmatpush2.msra.mxu0 0.0
  %4021 = vmatprep.subr.mxu0 0.0
  %4022 = vmatpush2.msra.mxu0 0.0
  %4023 = vmatprep.subr.mxu0 0.0
  %4024 = vmatpush2.msra.mxu0 0.0
  %4025 = vmatprep.subr.mxu0 0.0
  %4026 = vmatpush2.msra.mxu0 0.0
  %4027 = vmatprep.mubr.f32.mxu0 0.0
  %4028 = vmatmul.mubr.f32.gmra.mxu0 %v3958
  %v4029 = vpop.f32.mrf.mxu0
  %v4030 = vadd.f32 0.0, %v4029
  %v4031 = vpop.f32.mrf.mxu0
  %v4032 = vadd.f32 0.0, %v4031
  %4033 = vdwg.mxu0
  %4034 = vmatprep.subr.mxu0 %v2744
  %4035 = vmatpush1.msra.mxu0 %v2743
  %4036 = vmatprep.subr.mxu0 %v2740
  %4037 = vmatpush1.msra.mxu0 %v2739
  %4038 = vmatprep.subr.mxu0 %v2736
  %4039 = vmatpush1.msra.mxu0 %v2735
  %4040 = vmatprep.subr.mxu0 %v2732
  %4041 = vmatpush1.msra.mxu0 %v2731
  %4042 = vmatprep.subr.mxu0 %v2728
  %4043 = vmatpush1.msra.mxu0 %v2727
  %4044 = vmatprep.subr.mxu0 %v2724
  %4045 = vmatpush1.msra.mxu0 %v2723
  %4046 = vmatprep.subr.mxu0 %v2720
  %4047 = vmatpush1.msra.mxu0 %v2719
  %4048 = vmatprep.subr.mxu0 %v2716
  %4049 = vmatpush1.msra.mxu0 %v2715
  %4050 = vmatprep.subr.mxu0 %v2712
  %4051 = vmatpush1.msra.mxu0 %v2711
  %4052 = vmatprep.subr.mxu0 %v2708
  %4053 = vmatpush1.msra.mxu0 %v2707
  %4054 = vmatprep.subr.mxu0 %v2704
  %4055 = vmatpush1.msra.mxu0 %v2703
  %4056 = vmatprep.subr.mxu0 %v2700
  %4057 = vmatpush1.msra.mxu0 %v2699
  %4058 = vmatprep.subr.mxu0 %v2696
  %4059 = vmatpush1.msra.mxu0 %v2695
  %4060 = vmatprep.subr.mxu0 %v2692
  %4061 = vmatpush1.msra.mxu0 %v2691
  %4062 = vmatprep.subr.mxu0 %v2688
  %4063 = vmatpush1.msra.mxu0 %v2687
  %4064 = vmatprep.subr.mxu0 %v2684
  %4065 = vmatpush1.msra.mxu0 %v2683
  %4066 = vmatprep.subr.mxu0 0.0
  %4067 = vmatpush2.msra.mxu0 0.0
  %4068 = vmatprep.subr.mxu0 0.0
  %4069 = vmatpush2.msra.mxu0 0.0
  %4070 = vmatprep.subr.mxu0 0.0
  %4071 = vmatpush2.msra.mxu0 0.0
  %4072 = vmatprep.subr.mxu0 0.0
  %4073 = vmatpush2.msra.mxu0 0.0
  %4074 = vmatprep.subr.mxu0 0.0
  %4075 = vmatpush2.msra.mxu0 0.0
  %4076 = vmatprep.subr.mxu0 0.0
  %4077 = vmatpush2.msra.mxu0 0.0
  %4078 = vmatprep.subr.mxu0 0.0
  %4079 = vmatpush2.msra.mxu0 0.0
  %4080 = vmatprep.subr.mxu0 0.0
  %4081 = vmatpush2.msra.mxu0 0.0
  %4082 = vmatprep.subr.mxu0 0.0
  %4083 = vmatpush2.msra.mxu0 0.0
  %4084 = vmatprep.subr.mxu0 0.0
  %4085 = vmatpush2.msra.mxu0 0.0
  %4086 = vmatprep.subr.mxu0 0.0
  %4087 = vmatpush2.msra.mxu0 0.0
  %4088 = vmatprep.subr.mxu0 0.0
  %4089 = vmatpush2.msra.mxu0 0.0
  %4090 = vmatprep.subr.mxu0 0.0
  %4091 = vmatpush2.msra.mxu0 0.0
  %4092 = vmatprep.subr.mxu0 0.0
  %4093 = vmatpush2.msra.mxu0 0.0
  %4094 = vmatprep.subr.mxu0 0.0
  %4095 = vmatpush2.msra.mxu0 0.0
  %4096 = vmatprep.subr.mxu0 0.0
  %4097 = vmatpush2.msra.mxu0 0.0
  %4098 = vmatprep.mubr.f32.mxu0 0.0
  %4099 = vmatmul.mubr.f32.gmra.mxu0 %v3958
  %v4100 = vpop.f32.mrf.mxu0
  %v4101 = vadd.f32 0.0, %v4100
  %v4102 = vpop.f32.mrf.mxu0
  %v4103 = vadd.f32 0.0, %v4102
  %4104 = vdwg.mxu0
  %v4105 = vadd.f32 %v3959, %v4030
  %v4106 = vadd.f32 %v3960, %v4032
  %v4107 = vadd.f32 %v3961, %v4101
  %v4108 = vadd.f32 %v3962, %v4103
  %v4109 = vxor.u32 %v4105, 2147483648
  %v4110 = vmul.f32 %v4109, 1.442695
  %v4111 = vpow.pop %v4110
  %v4112 = vadd.f32 %v4111, 1.0
  %v4113 = vrcp.pop %v4112
  %v4114 = vmul.f32 1.0, %v4113
  %v4115 = vxor.u32 %v4106, 2147483648
  %v4116 = vmul.f32 %v4115, 1.442695
  %v4117 = vpow.pop %v4116
  %v4118 = vadd.f32 %v4117, 1.0
  %v4119 = vrcp.pop %v4118
  %v4120 = vmul.f32 1.0, %v4119
  %v4121 = vtanh.pop %v4107
  %v4122 = vxor.u32 %v4108, 2147483648
  %v4123 = vmul.f32 %v4122, 1.442695
  %v4124 = vpow.pop %v4123
  %v4125 = vadd.f32 %v4124, 1.0
  %v4126 = vrcp.pop %v4125
  %v4127 = vmul.f32 1.0, %v4126
  %v4128 = vmul.f32 %v4120, %v3956
  %v4129 = vmul.f32 %v4114, %v4121
  %v4130 = vadd.f32 %v4128, %v4129
  %v4131 = vtanh.pop %v4130
  %v4132 = vmul.f32 %v4127, %v4131
  %s4133 = scalar_lea.vmem %s7, 8
  %4134 = vst [vmem:[%s4133] sm:$0xff] %v4132
  %s4135 = scalar_lea.vmem %s8, 8
  %4136 = vst [vmem:[%s4135] sm:$0xff] %v4130
  // Predicated region
  $region30: #{encoder_forward.1} parent=0 // pred_check
    _
  $region31: #{encoder_forward.1} parent=0 // pred_check_branch
    %4138 = sbr.rel (0) target = $region33
  $region32: #{encoder_forward.1} parent=0 // pred_region
    _
  $region33: #{encoder_forward.1} parent=0 // pred_fallthru
    _
  // Predicated region
  $region34: #{encoder_forward.1} parent=0 // pred_check
    _
  $region35: #{encoder_forward.1} parent=0 // pred_check_branch
    %4140 = sbr.rel (0) target = $region37
  $region36: #{encoder_forward.1} parent=0 // pred_region
    _
  $region37: #{encoder_forward.1} parent=0 // pred_fallthru
    _
  // Predicated region
  $region38: #{encoder_forward.1} parent=0 // pred_check
    _
  $region39: #{encoder_forward.1} parent=0 // pred_check_branch
    %4142 = sbr.rel (0) target = $region41
  $region40: #{encoder_forward.1} parent=0 // pred_region
    _
  $region41: #{encoder_forward.1} parent=0 // pred_fallthru
    _
  // Predicated region
  $region42: #{encoder_forward.1} parent=0 // pred_check
    _
  $region43: #{encoder_forward.1} parent=0 // pred_check_branch
    %4144 = sbr.rel (0) target = $region45
  $region44: #{encoder_forward.1} parent=0 // pred_region
    _
  $region45: #{encoder_forward.1} parent=0 // pred_fallthru
    _

</llo_original>
